<compile_context>
chip_gen: v5e
topology: v5e:2x2
jax: 0.10.0
libtpu: 0.0.40
codegen_flags: <defaults>
</compile_context>

<pallas_src>
import functools
import math

import jax
import jax.numpy as jnp
from jax.experimental import pallas as pl
from jax.experimental.pallas import tpu as pltpu

TOTAL_SEQ_LEN = 64
FFN_DIM = 2048            # nn.TransformerEncoderLayer default dim_feedforward
LN_EPS = 1e-5             # nn.LayerNorm / TransformerEncoderLayer default eps


# ----------------------------- in-kernel helpers -----------------------------
def _layer_norm(x, w, b, eps=LN_EPS):
    mu = jnp.mean(x, axis=-1, keepdims=True)
    var = jnp.mean((x - mu) ** 2, axis=-1, keepdims=True)
    return (x - mu) * jax.lax.rsqrt(var + eps) * w + b


# --------------------------------- kernel ------------------------------------
def fused_model_kernel(ids_ref, table_ref, pos_ref,
                       wqkv_ref, bqkv_ref, wo_ref, bo_ref,
                       n1w_ref, n1b_ref, w1_ref, b1_ref, w2_ref, b2_ref,
                       n2w_ref, n2b_ref,
                       nw_ref, nb_ref, wd_ref, bd_ref,
                       out_ref, act_ref, *, num_heads):
    # grid = (batch, layer).  act_ref is VMEM scratch holding the [T, E]
    # activation for this batch row across all layer steps.
    layer = pl.program_id(1)
    num_layers = pl.num_programs(1)
    T, E = act_ref.shape
    H = num_heads
    hd = E // H

    # ---- token embedding (one-hot matmul) + positional embedding on step 0 ----
    # TODO(synk): for large vocab use memory_space=pl.ANY + scalar-prefetched row
    # gather instead of a VMEM-resident table and an O(T*V*E) one-hot matmul.
    @pl.when(layer == 0)
    def _():
        V = table_ref.shape[0]
        ids = ids_ref[...]                                        # [T, 1] int32
        iota = jax.lax.broadcasted_iota(jnp.int32, (T, V), 1)
        onehot = (iota == ids).astype(jnp.bfloat16)               # [T, V]
        act_ref[...] = jnp.dot(onehot, table_ref[...],
                               preferred_element_type=jnp.float32) + pos_ref[...]

    x = act_ref[...]                                              # [T, E] f32
    x_b = x.astype(jnp.bfloat16)

    # --- multi-head self-attention (post-norm TransformerEncoderLayer, eval) ---
    # One fused QKV matmul; the 1/sqrt(hd) scale is already folded into Wq/bq.
    qkv = jnp.dot(x_b, wqkv_ref[0],
                  preferred_element_type=jnp.float32) + bqkv_ref[0]   # [T, 3E]
    qkv_b = qkv.astype(jnp.bfloat16)

    def split_heads(base):                                        # -> [H, T, hd]
        return jnp.stack(
            [qkv_b[:, base + h * hd: base + (h + 1) * hd] for h in range(H)],
            axis=0)

    qh = split_heads(0)
    kh = split_heads(E)
    vh = split_heads(2 * E)

    s = jnp.einsum('hqd,hkd->hqk', qh, kh,
                   preferred_element_type=jnp.float32)            # [H, T, T]
    s = s - jnp.max(s, axis=-1, keepdims=True)
    p = jnp.exp(s)
    p = p * pl.reciprocal(jnp.sum(p, axis=-1, keepdims=True), approx=True)
    o = jnp.einsum('hqk,hkd->hqd', p.astype(jnp.bfloat16), vh,
                   preferred_element_type=jnp.float32)            # [H, T, hd]
    ctx = jnp.concatenate([o[h] for h in range(H)], axis=-1)      # [T, E] concat
    attn = jnp.dot(ctx.astype(jnp.bfloat16), wo_ref[0],
                   preferred_element_type=jnp.float32) + bo_ref[0]

    x1 = _layer_norm(x + attn, n1w_ref[0], n1b_ref[0])

    # --- feed-forward (relu activation, PyTorch default) ---
    # TODO(synk): at production E/FFN/BT sizes tile FFN_DIM into ~512-wide slabs
    # (fori_loop / emit_pipeline) to respect v7x's 64 MiB VMEM.
    h1 = jnp.dot(x1.astype(jnp.bfloat16), w1_ref[0],
                 preferred_element_type=jnp.float32) + b1_ref[0]
    h1 = jnp.maximum(h1, 0.0)
    h2 = jnp.dot(h1.astype(jnp.bfloat16), w2_ref[0],
                 preferred_element_type=jnp.float32) + b2_ref[0]

    y = _layer_norm(x1 + h2, n2w_ref[0], n2b_ref[0])
    act_ref[...] = y

    # ---- final LayerNorm + vocab decoder on the last layer step ----
    @pl.when(layer == num_layers - 1)
    def _():
        xn = _layer_norm(y, nw_ref[...], nb_ref[...])
        out_ref[...] = jnp.dot(xn.astype(jnp.bfloat16), wd_ref[...],
                               preferred_element_type=jnp.float32) + bd_ref[...]


# --------------------------- parameters (host side) ---------------------------
def init_params(key, vocab_size, embed_dim, num_layers, num_heads):
    E, H, V = embed_dim, num_heads, vocab_size
    hd = E // H
    attn_scale = 1.0 / math.sqrt(hd)

    def normal(k, shape, scale=0.02):
        return (scale * jax.random.normal(k, shape)).astype(jnp.float32)

    keys = jax.random.split(key, 2 + 4 * num_layers + 1)
    kit = iter(keys)

    params = {
        "token_embedding": normal(next(kit), (V, E), 1.0).astype(jnp.bfloat16),
        "pos_embedding": normal(next(kit), (TOTAL_SEQ_LEN, E), 1.0),
    }

    acc = {name: [] for name in ("wqkv", "bqkv", "wo", "bo", "n1w", "n1b",
                                 "w1", "b1", "w2", "b2", "n2w", "n2b")}
    for _ in range(num_layers):
        in_proj_w = normal(next(kit), (3 * E, E))        # PyTorch [3E, E] ([out, in])
        in_proj_b = jnp.zeros((3 * E,), jnp.float32)
        out_proj_w = normal(next(kit), (E, E))
        lin1_w = normal(next(kit), (FFN_DIM, E))
        lin2_w = normal(next(kit), (E, FFN_DIM))

        # Fold attention scale into Wq/bq; transpose to [in, out]; pack q|k|v.
        wq = (in_proj_w[0 * E:1 * E] * attn_scale).T      # [E, E]
        wk = in_proj_w[1 * E:2 * E].T
        wv = in_proj_w[2 * E:3 * E].T
        bq = in_proj_b[0 * E:1 * E] * attn_scale
        bk = in_proj_b[1 * E:2 * E]
        bv = in_proj_b[2 * E:3 * E]

        acc["wqkv"].append(jnp.concatenate([wq, wk, wv], axis=1))       # [E, 3E]
        acc["bqkv"].append(jnp.concatenate([bq, bk, bv]).reshape(1, 3 * E))
        acc["wo"].append(out_proj_w.T)                                  # [E, E] [in, out]
        acc["bo"].append(jnp.zeros((1, E), jnp.float32))
        acc["n1w"].append(jnp.ones((1, E), jnp.float32))
        acc["n1b"].append(jnp.zeros((1, E), jnp.float32))
        acc["w1"].append(lin1_w.T)                                      # [E, FFN]
        acc["b1"].append(jnp.zeros((1, FFN_DIM), jnp.float32))
        acc["w2"].append(lin2_w.T)                                      # [FFN, E]
        acc["b2"].append(jnp.zeros((1, E), jnp.float32))
        acc["n2w"].append(jnp.ones((1, E), jnp.float32))
        acc["n2b"].append(jnp.zeros((1, E), jnp.float32))

    bf16_names = {"wqkv", "wo", "w1", "w2"}
    params["layers"] = {
        name: jnp.stack(vals).astype(jnp.bfloat16 if name in bf16_names else jnp.float32)
        for name, vals in acc.items()
    }
    params["norm_w"] = jnp.ones((1, E), jnp.float32)
    params["norm_b"] = jnp.zeros((1, E), jnp.float32)
    params["dec_w"] = normal(next(kit), (V, E)).T.astype(jnp.bfloat16)   # [E, V]
    params["dec_b"] = jnp.zeros((1, V), jnp.float32)
    return params


# --------------------------------- wrapper ------------------------------------
def masked_diffusion_lm_forward(params, combined_ids, num_heads):
    # TODO(synk): dropout inside TransformerEncoderLayer is identity (eval mode).
    B, T = combined_ids.shape
    V, E = params["token_embedding"].shape
    lyr = params["layers"]
    L = lyr["wqkv"].shape[0]
    BT = B * T

    ids2d = combined_ids.reshape(BT, 1).astype(jnp.int32)

    def lspec(a):
        shape = (1,) + a.shape[1:]
        nd = len(shape)
        return pl.BlockSpec(shape, lambda b, l, _nd=nd: (l,) + (0,) * (_nd - 1))

    args = (
        ids2d, params["token_embedding"], params["pos_embedding"],
        lyr["wqkv"], lyr["bqkv"], lyr["wo"], lyr["bo"],
        lyr["n1w"], lyr["n1b"], lyr["w1"], lyr["b1"], lyr["w2"], lyr["b2"],
        lyr["n2w"], lyr["n2b"],
        params["norm_w"], params["norm_b"], params["dec_w"], params["dec_b"],
    )
    in_specs = [
        pl.BlockSpec((T, 1), lambda b, l: (b, 0)),           # ids (per batch row)
        pl.BlockSpec((V, E), lambda b, l: (0, 0)),           # token table
        pl.BlockSpec((T, E), lambda b, l: (0, 0)),           # positional embedding
    ] + [lspec(a) for a in args[3:15]] + [                   # stacked per-layer weights
        pl.BlockSpec((1, E), lambda b, l: (0, 0)),           # final norm w
        pl.BlockSpec((1, E), lambda b, l: (0, 0)),           # final norm b
        pl.BlockSpec((E, V), lambda b, l: (0, 0)),           # decoder weight
        pl.BlockSpec((1, V), lambda b, l: (0, 0)),           # decoder bias
    ]

    logits2d = pl.pallas_call(
        functools.partial(fused_model_kernel, num_heads=num_heads),
        out_shape=jax.ShapeDtypeStruct((BT, V), jnp.float32),
        grid=(B, L),
        in_specs=in_specs,
        out_specs=pl.BlockSpec((T, V), lambda b, l: (b, 0)),
        scratch_shapes=[pltpu.VMEM((T, E), jnp.float32)],
        compiler_params=pltpu.CompilerParams(
            dimension_semantics=("parallel", "arbitrary")),
    )(*args)

    return logits2d.reshape(B, T, V)


if __name__ == "__main__":
    vocab_size, embed_dim, num_layers, num_heads = 128, 32, 2, 4
    batch = 2

    key = jax.random.PRNGKey(0)
    pkey, ikey = jax.random.split(key)
    params = init_params(pkey, vocab_size, embed_dim, num_layers, num_heads)
    combined_ids = jax.random.randint(
        ikey, (batch, TOTAL_SEQ_LEN), 0, vocab_size, dtype=jnp.int32)

    fwd = jax.jit(lambda p, ids: masked_diffusion_lm_forward(p, ids, num_heads))
    logits = fwd(params, combined_ids)
    jax.block_until_ready(logits)
    assert logits.shape == (batch, TOTAL_SEQ_LEN, vocab_size)
    assert bool(jnp.all(jnp.isfinite(logits)))
    print("KERNEL_OK")
</pallas_src>

<mosaic_0001>
module attributes {stable_mosaic.version = 11 : i64} {
  func.func @fused_model_kernel(%arg0: i32, %arg1: i32, %arg2: memref<64x1xi32, #tpu.memory_space<vmem>>, %arg3: memref<128x32xbf16, #tpu.memory_space<vmem>>, %arg4: memref<64x32xf32, #tpu.memory_space<vmem>>, %arg5: memref<1x32x96xbf16, #tpu.memory_space<vmem>>, %arg6: memref<1x1x96xf32, #tpu.memory_space<vmem>>, %arg7: memref<1x32x32xbf16, #tpu.memory_space<vmem>>, %arg8: memref<1x1x32xf32, #tpu.memory_space<vmem>>, %arg9: memref<1x1x32xf32, #tpu.memory_space<vmem>>, %arg10: memref<1x1x32xf32, #tpu.memory_space<vmem>>, %arg11: memref<1x32x2048xbf16, #tpu.memory_space<vmem>>, %arg12: memref<1x1x2048xf32, #tpu.memory_space<vmem>>, %arg13: memref<1x2048x32xbf16, #tpu.memory_space<vmem>>, %arg14: memref<1x1x32xf32, #tpu.memory_space<vmem>>, %arg15: memref<1x1x32xf32, #tpu.memory_space<vmem>>, %arg16: memref<1x1x32xf32, #tpu.memory_space<vmem>>, %arg17: memref<1x32xf32, #tpu.memory_space<vmem>>, %arg18: memref<1x32xf32, #tpu.memory_space<vmem>>, %arg19: memref<32x128xbf16, #tpu.memory_space<vmem>>, %arg20: memref<1x128xf32, #tpu.memory_space<vmem>>, %arg21: memref<64x128xf32, #tpu.memory_space<vmem>>, %arg22: memref<64x32xf32, #tpu.memory_space<vmem>>) attributes {dimension_semantics = [#tpu.dimension_semantics<parallel>, #tpu.dimension_semantics<arbitrary>], iteration_bounds = array<i64: 2, 2>, scalar_prefetch = 0 : i64, scratch_operands = 1 : i64, tpu.core_type = #tpu.core_type<tc>, window_params = [{transform_indices = @transform_0, window_bounds = array<i64: 64, 1>}, {pipeline_mode = #tpu.pipeline_mode<synchronous>, transform_indices = @transform_1, window_bounds = array<i64: 128, 32>}, {pipeline_mode = #tpu.pipeline_mode<synchronous>, transform_indices = @transform_2, window_bounds = array<i64: 64, 32>}, {transform_indices = @transform_3, window_bounds = array<i64: 1, 32, 96>}, {transform_indices = @transform_4, window_bounds = array<i64: 1, 1, 96>}, {transform_indices = @transform_5, window_bounds = array<i64: 1, 32, 32>}, {transform_indices = @transform_6, window_bounds = array<i64: 1, 1, 32>}, {transform_indices = @transform_7, window_bounds = array<i64: 1, 1, 32>}, {transform_indices = @transform_8, window_bounds = array<i64: 1, 1, 32>}, {transform_indices = @transform_9, window_bounds = array<i64: 1, 32, 2048>}, {transform_indices = @transform_10, window_bounds = array<i64: 1, 1, 2048>}, {transform_indices = @transform_11, window_bounds = array<i64: 1, 2048, 32>}, {transform_indices = @transform_12, window_bounds = array<i64: 1, 1, 32>}, {transform_indices = @transform_13, window_bounds = array<i64: 1, 1, 32>}, {transform_indices = @transform_14, window_bounds = array<i64: 1, 1, 32>}, {pipeline_mode = #tpu.pipeline_mode<synchronous>, transform_indices = @transform_15, window_bounds = array<i64: 1, 32>}, {pipeline_mode = #tpu.pipeline_mode<synchronous>, transform_indices = @transform_16, window_bounds = array<i64: 1, 32>}, {pipeline_mode = #tpu.pipeline_mode<synchronous>, transform_indices = @transform_17, window_bounds = array<i64: 32, 128>}, {pipeline_mode = #tpu.pipeline_mode<synchronous>, transform_indices = @transform_18, window_bounds = array<i64: 1, 128>}, {transform_indices = @transform_19, window_bounds = array<i64: 64, 128>}]} {
    %c0_i32 = arith.constant 0 : i32
    %0 = arith.cmpi eq, %arg1, %c0_i32 : i32
    %1 = arith.extui %0 : i1 to i32
    %c0_i32_0 = arith.constant 0 : i32
    %2 = arith.cmpi ne, %1, %c0_i32_0 : i32
    scf.if %2 {
      %c0_59 = arith.constant 0 : index
      %c0_60 = arith.constant 0 : index
      %146 = vector.load %arg2[%c0_59, %c0_60] : memref<64x1xi32, #tpu.memory_space<vmem>>, vector<64x1xi32>
      %147 = tpu.iota {dimensions = array<i32: 1>} : vector<64x128xi32>
      %148 = vector.broadcast %146 : vector<64x1xi32> to vector<64x128xi32>
      %149 = arith.cmpi eq, %147, %148 : vector<64x128xi32>
      %150 = arith.extui %149 : vector<64x128xi1> to vector<64x128xi32>
      %151 = arith.sitofp %150 : vector<64x128xi32> to vector<64x128xf32>
      %152 = arith.truncf %151 : vector<64x128xf32> to vector<64x128xbf16>
      %c0_61 = arith.constant 0 : index
      %c0_62 = arith.constant 0 : index
      %153 = vector.load %arg3[%c0_61, %c0_62] : memref<128x32xbf16, #tpu.memory_space<vmem>>, vector<128x32xbf16>
      %cst_63 = arith.constant dense<0.000000e+00> : vector<64x32xf32>
      %154 = tpu.matmul %152, %153, %cst_63 {dimension_numbers = #tpu.dot_dimension_numbers<[1], [0], [0], [1], [0, 0, 1, 1], [], []>} : vector<64x128xbf16>, vector<128x32xbf16>, vector<64x32xf32> -> vector<64x32xf32>
      %c0_64 = arith.constant 0 : index
      %c0_65 = arith.constant 0 : index
      %155 = vector.load %arg4[%c0_64, %c0_65] : memref<64x32xf32, #tpu.memory_space<vmem>>, vector<64x32xf32>
      %156 = arith.addf %154, %155 : vector<64x32xf32>
      %c0_66 = arith.constant 0 : index
      %c0_67 = arith.constant 0 : index
      %157 = vector.load %arg22[%c0_66, %c0_67] : memref<64x32xf32, #tpu.memory_space<vmem>>, vector<64x32xf32>
      tpu.vector_store %arg22[%c0_66, %c0_67], %156 {strides = array<i32>} : memref<64x32xf32, #tpu.memory_space<vmem>>, vector<64x32xf32>,
    } else {
    }
    %c0 = arith.constant 0 : index
    %c0_1 = arith.constant 0 : index
    %3 = vector.load %arg22[%c0, %c0_1] : memref<64x32xf32, #tpu.memory_space<vmem>>, vector<64x32xf32>
    %4 = arith.truncf %3 : vector<64x32xf32> to vector<64x32xbf16>
    %c0_2 = arith.constant 0 : index
    %c0_3 = arith.constant 0 : index
    %c0_4 = arith.constant 0 : index
    %5 = vector.load %arg5[%c0_2, %c0_3, %c0_4] : memref<1x32x96xbf16, #tpu.memory_space<vmem>>, vector<1x32x96xbf16>
    %6 = vector.shape_cast %5 : vector<1x32x96xbf16> to vector<32x96xbf16>
    %cst = arith.constant dense<0.000000e+00> : vector<64x96xf32>
    %7 = tpu.matmul %4, %6, %cst {dimension_numbers = #tpu.dot_dimension_numbers<[1], [0], [0], [1], [0, 0, 1, 1], [], []>} : vector<64x32xbf16>, vector<32x96xbf16>, vector<64x96xf32> -> vector<64x96xf32>
    %c0_5 = arith.constant 0 : index
    %c0_6 = arith.constant 0 : index
    %c0_7 = arith.constant 0 : index
    %8 = vector.load %arg6[%c0_5, %c0_6, %c0_7] : memref<1x1x96xf32, #tpu.memory_space<vmem>>, vector<1x1x96xf32>
    %9 = vector.shape_cast %8 : vector<1x1x96xf32> to vector<1x96xf32>
    %10 = vector.broadcast %9 : vector<1x96xf32> to vector<64x96xf32>
    %11 = arith.addf %7, %10 : vector<64x96xf32>
    %12 = arith.truncf %11 : vector<64x96xf32> to vector<64x96xbf16>
    %13 = vector.extract_strided_slice %12 {offsets = [0, 0], sizes = [64, 8], strides = [1, 1]} : vector<64x96xbf16> to vector<64x8xbf16>
    %14 = vector.extract_strided_slice %12 {offsets = [0, 8], sizes = [64, 8], strides = [1, 1]} : vector<64x96xbf16> to vector<64x8xbf16>
    %15 = vector.extract_strided_slice %12 {offsets = [0, 16], sizes = [64, 8], strides = [1, 1]} : vector<64x96xbf16> to vector<64x8xbf16>
    %16 = vector.extract_strided_slice %12 {offsets = [0, 24], sizes = [64, 8], strides = [1, 1]} : vector<64x96xbf16> to vector<64x8xbf16>
    %17 = vector.shape_cast %13 : vector<64x8xbf16> to vector<1x64x8xbf16>
    %18 = vector.shape_cast %14 : vector<64x8xbf16> to vector<1x64x8xbf16>
    %19 = vector.shape_cast %15 : vector<64x8xbf16> to vector<1x64x8xbf16>
    %20 = vector.shape_cast %16 : vector<64x8xbf16> to vector<1x64x8xbf16>
    %21 = tpu.concatenate %17, %18, %19, %20 in 0 : vector<1x64x8xbf16>, vector<1x64x8xbf16>, vector<1x64x8xbf16>, vector<1x64x8xbf16> -> vector<4x64x8xbf16>
    %22 = vector.extract_strided_slice %12 {offsets = [0, 32], sizes = [64, 8], strides = [1, 1]} : vector<64x96xbf16> to vector<64x8xbf16>
    %23 = vector.extract_strided_slice %12 {offsets = [0, 40], sizes = [64, 8], strides = [1, 1]} : vector<64x96xbf16> to vector<64x8xbf16>
    %24 = vector.extract_strided_slice %12 {offsets = [0, 48], sizes = [64, 8], strides = [1, 1]} : vector<64x96xbf16> to vector<64x8xbf16>
    %25 = vector.extract_strided_slice %12 {offsets = [0, 56], sizes = [64, 8], strides = [1, 1]} : vector<64x96xbf16> to vector<64x8xbf16>
    %26 = vector.shape_cast %22 : vector<64x8xbf16> to vector<1x64x8xbf16>
    %27 = vector.shape_cast %23 : vector<64x8xbf16> to vector<1x64x8xbf16>
    %28 = vector.shape_cast %24 : vector<64x8xbf16> to vector<1x64x8xbf16>
    %29 = vector.shape_cast %25 : vector<64x8xbf16> to vector<1x64x8xbf16>
    %30 = tpu.concatenate %26, %27, %28, %29 in 0 : vector<1x64x8xbf16>, vector<1x64x8xbf16>, vector<1x64x8xbf16>, vector<1x64x8xbf16> -> vector<4x64x8xbf16>
    %31 = vector.extract_strided_slice %12 {offsets = [0, 64], sizes = [64, 8], strides = [1, 1]} : vector<64x96xbf16> to vector<64x8xbf16>
    %32 = vector.extract_strided_slice %12 {offsets = [0, 72], sizes = [64, 8], strides = [1, 1]} : vector<64x96xbf16> to vector<64x8xbf16>
    %33 = vector.extract_strided_slice %12 {offsets = [0, 80], sizes = [64, 8], strides = [1, 1]} : vector<64x96xbf16> to vector<64x8xbf16>
    %34 = vector.extract_strided_slice %12 {offsets = [0, 88], sizes = [64, 8], strides = [1, 1]} : vector<64x96xbf16> to vector<64x8xbf16>
    %35 = vector.shape_cast %31 : vector<64x8xbf16> to vector<1x64x8xbf16>
    %36 = vector.shape_cast %32 : vector<64x8xbf16> to vector<1x64x8xbf16>
    %37 = vector.shape_cast %33 : vector<64x8xbf16> to vector<1x64x8xbf16>
    %38 = vector.shape_cast %34 : vector<64x8xbf16> to vector<1x64x8xbf16>
    %39 = tpu.concatenate %35, %36, %37, %38 in 0 : vector<1x64x8xbf16>, vector<1x64x8xbf16>, vector<1x64x8xbf16>, vector<1x64x8xbf16> -> vector<4x64x8xbf16>
    "tpu.trace_start"() <{level = 10 : i32, message = "hqd,hkd->hqk"}> : () -> ()
    %cst_8 = arith.constant dense<0.000000e+00> : vector<4x64x64xf32>
    %40 = tpu.matmul %21, %30, %cst_8 {dimension_numbers = #tpu.dot_dimension_numbers<[2], [2], [1], [1], [0, 0, 0, 1, 1, 1], [0], [0]>} : vector<4x64x8xbf16>, vector<4x64x8xbf16>, vector<4x64x64xf32> -> vector<4x64x64xf32>
    "tpu.trace_stop"() : () -> ()
    %cst_9 = arith.constant dense<0xFF800000> : vector<4x64xf32>
    %41 = vector.multi_reduction <maximumf>, %40, %cst_9 [2] : vector<4x64x64xf32> to vector<4x64xf32>
    %42 = vector.shape_cast %41 : vector<4x64xf32> to vector<4x64x1xf32>
    %43 = vector.broadcast %42 : vector<4x64x1xf32> to vector<4x64x64xf32>
    %44 = arith.subf %40, %43 : vector<4x64x64xf32>
    %45 = math.exp %44 : vector<4x64x64xf32>
    %cst_10 = arith.constant dense<0.000000e+00> : vector<4x64xf32>
    %46 = vector.multi_reduction <add>, %45, %cst_10 [2] : vector<4x64x64xf32> to vector<4x64xf32>
    %47 = vector.shape_cast %46 : vector<4x64xf32> to vector<4x64x1xf32>
    %48 = tpu.reciprocal %47 {approx = true} : vector<4x64x1xf32> -> vector<4x64x1xf32>
    %49 = vector.broadcast %48 : vector<4x64x1xf32> to vector<4x64x64xf32>
    %50 = arith.mulf %45, %49 : vector<4x64x64xf32>
    %51 = arith.truncf %50 : vector<4x64x64xf32> to vector<4x64x64xbf16>
    "tpu.trace_start"() <{level = 10 : i32, message = "hqk,hkd->hqd"}> : () -> ()
    %cst_11 = arith.constant dense<0.000000e+00> : vector<4x64x8xf32>
    %52 = tpu.matmul %51, %39, %cst_11 {dimension_numbers = #tpu.dot_dimension_numbers<[2], [1], [1], [2], [0, 0, 0, 1, 1, 2], [0], [0]>} : vector<4x64x64xbf16>, vector<4x64x8xbf16>, vector<4x64x8xf32> -> vector<4x64x8xf32>
    "tpu.trace_stop"() : () -> ()
    %53 = vector.extract_strided_slice %52 {offsets = [0, 0, 0], sizes = [1, 64, 8], strides = [1, 1, 1]} : vector<4x64x8xf32> to vector<1x64x8xf32>
    %54 = vector.shape_cast %53 : vector<1x64x8xf32> to vector<64x8xf32>
    %55 = vector.extract_strided_slice %52 {offsets = [1, 0, 0], sizes = [1, 64, 8], strides = [1, 1, 1]} : vector<4x64x8xf32> to vector<1x64x8xf32>
    %56 = vector.shape_cast %55 : vector<1x64x8xf32> to vector<64x8xf32>
    %57 = vector.extract_strided_slice %52 {offsets = [2, 0, 0], sizes = [1, 64, 8], strides = [1, 1, 1]} : vector<4x64x8xf32> to vector<1x64x8xf32>
    %58 = vector.shape_cast %57 : vector<1x64x8xf32> to vector<64x8xf32>
    %59 = vector.extract_strided_slice %52 {offsets = [3, 0, 0], sizes = [1, 64, 8], strides = [1, 1, 1]} : vector<4x64x8xf32> to vector<1x64x8xf32>
    %60 = vector.shape_cast %59 : vector<1x64x8xf32> to vector<64x8xf32>
    %61 = tpu.concatenate %54, %56, %58, %60 in 1 : vector<64x8xf32>, vector<64x8xf32>, vector<64x8xf32>, vector<64x8xf32> -> vector<64x32xf32>
    %62 = arith.truncf %61 : vector<64x32xf32> to vector<64x32xbf16>
    %c0_12 = arith.constant 0 : index
    %c0_13 = arith.constant 0 : index
    %c0_14 = arith.constant 0 : index
    %63 = vector.load %arg7[%c0_12, %c0_13, %c0_14] : memref<1x32x32xbf16, #tpu.memory_space<vmem>>, vector<1x32x32xbf16>
    %64 = vector.shape_cast %63 : vector<1x32x32xbf16> to vector<32x32xbf16>
    %cst_15 = arith.constant dense<0.000000e+00> : vector<64x32xf32>
    %65 = tpu.matmul %62, %64, %cst_15 {dimension_numbers = #tpu.dot_dimension_numbers<[1], [0], [0], [1], [0, 0, 1, 1], [], []>} : vector<64x32xbf16>, vector<32x32xbf16>, vector<64x32xf32> -> vector<64x32xf32>
    %c0_16 = arith.constant 0 : index
    %c0_17 = arith.constant 0 : index
    %c0_18 = arith.constant 0 : index
    %66 = vector.load %arg8[%c0_16, %c0_17, %c0_18] : memref<1x1x32xf32, #tpu.memory_space<vmem>>, vector<1x1x32xf32>
    %67 = vector.shape_cast %66 : vector<1x1x32xf32> to vector<1x32xf32>
    %68 = vector.broadcast %67 : vector<1x32xf32> to vector<64x32xf32>
    %69 = arith.addf %65, %68 : vector<64x32xf32>
    %70 = arith.addf %3, %69 : vector<64x32xf32>
    %c0_19 = arith.constant 0 : index
    %c0_20 = arith.constant 0 : index
    %c0_21 = arith.constant 0 : index
    %71 = vector.load %arg9[%c0_19, %c0_20, %c0_21] : memref<1x1x32xf32, #tpu.memory_space<vmem>>, vector<1x1x32xf32>
    %72 = vector.shape_cast %71 : vector<1x1x32xf32> to vector<1x32xf32>
    %c0_22 = arith.constant 0 : index
    %c0_23 = arith.constant 0 : index
    %c0_24 = arith.constant 0 : index
    %73 = vector.load %arg10[%c0_22, %c0_23, %c0_24] : memref<1x1x32xf32, #tpu.memory_space<vmem>>, vector<1x1x32xf32>
    %74 = vector.shape_cast %73 : vector<1x1x32xf32> to vector<1x32xf32>
    %cst_25 = arith.constant dense<0.000000e+00> : vector<64xf32>
    %75 = vector.multi_reduction <add>, %70, %cst_25 [1] : vector<64x32xf32> to vector<64xf32>
    %76 = vector.shape_cast %75 : vector<64xf32> to vector<64x1xf32>
    %cst_26 = arith.constant 3.200000e+01 : f32
    %77 = vector.broadcast %cst_26 : f32 to vector<64x1xf32>
    %78 = arith.divf %76, %77 : vector<64x1xf32>
    %79 = vector.broadcast %78 : vector<64x1xf32> to vector<64x32xf32>
    %80 = arith.subf %70, %79 : vector<64x32xf32>
    %81 = arith.mulf %80, %80 : vector<64x32xf32>
    %cst_27 = arith.constant dense<0.000000e+00> : vector<64xf32>
    %82 = vector.multi_reduction <add>, %81, %cst_27 [1] : vector<64x32xf32> to vector<64xf32>
    %83 = vector.shape_cast %82 : vector<64xf32> to vector<64x1xf32>
    %cst_28 = arith.constant 3.200000e+01 : f32
    %84 = vector.broadcast %cst_28 : f32 to vector<64x1xf32>
    %85 = arith.divf %83, %84 : vector<64x1xf32>
    %86 = vector.broadcast %78 : vector<64x1xf32> to vector<64x32xf32>
    %87 = arith.subf %70, %86 : vector<64x32xf32>
    %cst_29 = arith.constant 9.99999974E-6 : f32
    %88 = vector.broadcast %cst_29 : f32 to vector<64x1xf32>
    %89 = arith.addf %85, %88 : vector<64x1xf32>
    %90 = math.rsqrt %89 : vector<64x1xf32>
    %91 = vector.broadcast %90 : vector<64x1xf32> to vector<64x32xf32>
    %92 = arith.mulf %87, %91 : vector<64x32xf32>
    %93 = vector.broadcast %72 : vector<1x32xf32> to vector<64x32xf32>
    %94 = arith.mulf %92, %93 : vector<64x32xf32>
    %95 = vector.broadcast %74 : vector<1x32xf32> to vector<64x32xf32>
    %96 = arith.addf %94, %95 : vector<64x32xf32>
    %97 = arith.truncf %96 : vector<64x32xf32> to vector<64x32xbf16>
    %c0_30 = arith.constant 0 : index
    %c0_31 = arith.constant 0 : index
    %c0_32 = arith.constant 0 : index
    %98 = vector.load %arg11[%c0_30, %c0_31, %c0_32] : memref<1x32x2048xbf16, #tpu.memory_space<vmem>>, vector<1x32x2048xbf16>
    %99 = vector.shape_cast %98 : vector<1x32x2048xbf16> to vector<32x2048xbf16>
    %cst_33 = arith.constant dense<0.000000e+00> : vector<64x2048xf32>
    %100 = tpu.matmul %97, %99, %cst_33 {dimension_numbers = #tpu.dot_dimension_numbers<[1], [0], [0], [1], [0, 0, 1, 1], [], []>} : vector<64x32xbf16>, vector<32x2048xbf16>, vector<64x2048xf32> -> vector<64x2048xf32>
    %c0_34 = arith.constant 0 : index
    %c0_35 = arith.constant 0 : index
    %c0_36 = arith.constant 0 : index
    %101 = vector.load %arg12[%c0_34, %c0_35, %c0_36] : memref<1x1x2048xf32, #tpu.memory_space<vmem>>, vector<1x1x2048xf32>
    %102 = vector.shape_cast %101 : vector<1x1x2048xf32> to vector<1x2048xf32>
    %103 = vector.broadcast %102 : vector<1x2048xf32> to vector<64x2048xf32>
    %104 = arith.addf %100, %103 : vector<64x2048xf32>
    %cst_37 = arith.constant 0.000000e+00 : f32
    %105 = vector.broadcast %cst_37 : f32 to vector<64x2048xf32>
    %106 = arith.maximumf %104, %105 : vector<64x2048xf32>
    %107 = arith.truncf %106 : vector<64x2048xf32> to vector<64x2048xbf16>
    %c0_38 = arith.constant 0 : index
    %c0_39 = arith.constant 0 : index
    %c0_40 = arith.constant 0 : index
    %108 = vector.load %arg13[%c0_38, %c0_39, %c0_40] : memref<1x2048x32xbf16, #tpu.memory_space<vmem>>, vector<1x2048x32xbf16>
    %109 = vector.shape_cast %108 : vector<1x2048x32xbf16> to vector<2048x32xbf16>
    %cst_41 = arith.constant dense<0.000000e+00> : vector<64x32xf32>
    %110 = tpu.matmul %107, %109, %cst_41 {dimension_numbers = #tpu.dot_dimension_numbers<[1], [0], [0], [1], [0, 0, 1, 1], [], []>} : vector<64x2048xbf16>, vector<2048x32xbf16>, vector<64x32xf32> -> vector<64x32xf32>
    %c0_42 = arith.constant 0 : index
    %c0_43 = arith.constant 0 : index
    %c0_44 = arith.constant 0 : index
    %111 = vector.load %arg14[%c0_42, %c0_43, %c0_44] : memref<1x1x32xf32, #tpu.memory_space<vmem>>, vector<1x1x32xf32>
    %112 = vector.shape_cast %111 : vector<1x1x32xf32> to vector<1x32xf32>
    %113 = vector.broadcast %112 : vector<1x32xf32> to vector<64x32xf32>
    %114 = arith.addf %110, %113 : vector<64x32xf32>
    %115 = arith.addf %96, %114 : vector<64x32xf32>
    %c0_45 = arith.constant 0 : index
    %c0_46 = arith.constant 0 : index
    %c0_47 = arith.constant 0 : index
    %116 = vector.load %arg15[%c0_45, %c0_46, %c0_47] : memref<1x1x32xf32, #tpu.memory_space<vmem>>, vector<1x1x32xf32>
    %117 = vector.shape_cast %116 : vector<1x1x32xf32> to vector<1x32xf32>
    %c0_48 = arith.constant 0 : index
    %c0_49 = arith.constant 0 : index
    %c0_50 = arith.constant 0 : index
    %118 = vector.load %arg16[%c0_48, %c0_49, %c0_50] : memref<1x1x32xf32, #tpu.memory_space<vmem>>, vector<1x1x32xf32>
    %119 = vector.shape_cast %118 : vector<1x1x32xf32> to vector<1x32xf32>
    %cst_51 = arith.constant dense<0.000000e+00> : vector<64xf32>
    %120 = vector.multi_reduction <add>, %115, %cst_51 [1] : vector<64x32xf32> to vector<64xf32>
    %121 = vector.shape_cast %120 : vector<64xf32> to vector<64x1xf32>
    %cst_52 = arith.constant 3.200000e+01 : f32
    %122 = vector.broadcast %cst_52 : f32 to vector<64x1xf32>
    %123 = arith.divf %121, %122 : vector<64x1xf32>
    %124 = vector.broadcast %123 : vector<64x1xf32> to vector<64x32xf32>
    %125 = arith.subf %115, %124 : vector<64x32xf32>
    %126 = arith.mulf %125, %125 : vector<64x32xf32>
    %cst_53 = arith.constant dense<0.000000e+00> : vector<64xf32>
    %127 = vector.multi_reduction <add>, %126, %cst_53 [1] : vector<64x32xf32> to vector<64xf32>
    %128 = vector.shape_cast %127 : vector<64xf32> to vector<64x1xf32>
    %cst_54 = arith.constant 3.200000e+01 : f32
    %129 = vector.broadcast %cst_54 : f32 to vector<64x1xf32>
    %130 = arith.divf %128, %129 : vector<64x1xf32>
    %131 = vector.broadcast %123 : vector<64x1xf32> to vector<64x32xf32>
    %132 = arith.subf %115, %131 : vector<64x32xf32>
    %cst_55 = arith.constant 9.99999974E-6 : f32
    %133 = vector.broadcast %cst_55 : f32 to vector<64x1xf32>
    %134 = arith.addf %130, %133 : vector<64x1xf32>
    %135 = math.rsqrt %134 : vector<64x1xf32>
    %136 = vector.broadcast %135 : vector<64x1xf32> to vector<64x32xf32>
    %137 = arith.mulf %132, %136 : vector<64x32xf32>
    %138 = vector.broadcast %117 : vector<1x32xf32> to vector<64x32xf32>
    %139 = arith.mulf %137, %138 : vector<64x32xf32>
    %140 = vector.broadcast %119 : vector<1x32xf32> to vector<64x32xf32>
    %141 = arith.addf %139, %140 : vector<64x32xf32>
    %c0_56 = arith.constant 0 : index
    %c0_57 = arith.constant 0 : index
    %142 = vector.load %arg22[%c0_56, %c0_57] : memref<64x32xf32, #tpu.memory_space<vmem>>, vector<64x32xf32>
    tpu.vector_store %arg22[%c0_56, %c0_57], %141 {strides = array<i32>} : memref<64x32xf32, #tpu.memory_space<vmem>>, vector<64x32xf32>,
    %c1_i32 = arith.constant 1 : i32
    %143 = arith.cmpi eq, %arg1, %c1_i32 : i32
    %144 = arith.extui %143 : i1 to i32
    %c0_i32_58 = arith.constant 0 : i32
    %145 = arith.cmpi ne, %144, %c0_i32_58 : i32
    scf.if %145 {
      %c0_59 = arith.constant 0 : index
      %c0_60 = arith.constant 0 : index
      %146 = vector.load %arg17[%c0_59, %c0_60] : memref<1x32xf32, #tpu.memory_space<vmem>>, vector<1x32xf32>
      %c0_61 = arith.constant 0 : index
      %c0_62 = arith.constant 0 : index
      %147 = vector.load %arg18[%c0_61, %c0_62] : memref<1x32xf32, #tpu.memory_space<vmem>>, vector<1x32xf32>
      %cst_63 = arith.constant dense<0.000000e+00> : vector<64xf32>
      %148 = vector.multi_reduction <add>, %141, %cst_63 [1] : vector<64x32xf32> to vector<64xf32>
      %149 = vector.shape_cast %148 : vector<64xf32> to vector<64x1xf32>
      %cst_64 = arith.constant 3.200000e+01 : f32
      %150 = vector.broadcast %cst_64 : f32 to vector<64x1xf32>
      %151 = arith.divf %149, %150 : vector<64x1xf32>
      %152 = vector.broadcast %151 : vector<64x1xf32> to vector<64x32xf32>
      %153 = arith.subf %141, %152 : vector<64x32xf32>
      %154 = arith.mulf %153, %153 : vector<64x32xf32>
      %cst_65 = arith.constant dense<0.000000e+00> : vector<64xf32>
      %155 = vector.multi_reduction <add>, %154, %cst_65 [1] : vector<64x32xf32> to vector<64xf32>
      %156 = vector.shape_cast %155 : vector<64xf32> to vector<64x1xf32>
      %cst_66 = arith.constant 3.200000e+01 : f32
      %157 = vector.broadcast %cst_66 : f32 to vector<64x1xf32>
      %158 = arith.divf %156, %157 : vector<64x1xf32>
      %159 = vector.broadcast %151 : vector<64x1xf32> to vector<64x32xf32>
      %160 = arith.subf %141, %159 : vector<64x32xf32>
      %cst_67 = arith.constant 9.99999974E-6 : f32
      %161 = vector.broadcast %cst_67 : f32 to vector<64x1xf32>
      %162 = arith.addf %158, %161 : vector<64x1xf32>
      %163 = math.rsqrt %162 : vector<64x1xf32>
      %164 = vector.broadcast %163 : vector<64x1xf32> to vector<64x32xf32>
      %165 = arith.mulf %160, %164 : vector<64x32xf32>
      %166 = vector.broadcast %146 : vector<1x32xf32> to vector<64x32xf32>
      %167 = arith.mulf %165, %166 : vector<64x32xf32>
      %168 = vector.broadcast %147 : vector<1x32xf32> to vector<64x32xf32>
      %169 = arith.addf %167, %168 : vector<64x32xf32>
      %170 = arith.truncf %169 : vector<64x32xf32> to vector<64x32xbf16>
      %c0_68 = arith.constant 0 : index
      %c0_69 = arith.constant 0 : index
      %171 = vector.load %arg19[%c0_68, %c0_69] : memref<32x128xbf16, #tpu.memory_space<vmem>>, vector<32x128xbf16>
      %cst_70 = arith.constant dense<0.000000e+00> : vector<64x128xf32>
      %172 = tpu.matmul %170, %171, %cst_70 {dimension_numbers = #tpu.dot_dimension_numbers<[1], [0], [0], [1], [0, 0, 1, 1], [], []>} : vector<64x32xbf16>, vector<32x128xbf16>, vector<64x128xf32> -> vector<64x128xf32>
      %c0_71 = arith.constant 0 : index
      %c0_72 = arith.constant 0 : index
      %173 = vector.load %arg20[%c0_71, %c0_72] : memref<1x128xf32, #tpu.memory_space<vmem>>, vector<1x128xf32>
      %174 = vector.broadcast %173 : vector<1x128xf32> to vector<64x128xf32>
      %175 = arith.addf %172, %174 : vector<64x128xf32>
      %c0_73 = arith.constant 0 : index
      %c0_74 = arith.constant 0 : index
      %176 = vector.load %arg21[%c0_73, %c0_74] : memref<64x128xf32, #tpu.memory_space<vmem>>, vector<64x128xf32>
      tpu.vector_store %arg21[%c0_73, %c0_74], %175 {strides = array<i32>} : memref<64x128xf32, #tpu.memory_space<vmem>>, vector<64x128xf32>,
    } else {
    }
    return
  }
  func.func @transform_0(%arg0: i32, %arg1: i32) -> (i32, i32) {
    %c0_i32 = arith.constant 0 : i32
    %c0_i32_0 = arith.constant 0 : i32
    return %arg0, %c0_i32 : i32, i32
  }
  func.func @transform_1(%arg0: i32, %arg1: i32) -> (i32, i32) {
    %c0_i32 = arith.constant 0 : i32
    %c0_i32_0 = arith.constant 0 : i32
    %c0_i32_1 = arith.constant 0 : i32
    return %c0_i32, %c0_i32_0 : i32, i32
  }
  func.func @transform_2(%arg0: i32, %arg1: i32) -> (i32, i32) {
    %c0_i32 = arith.constant 0 : i32
    %c0_i32_0 = arith.constant 0 : i32
    %c0_i32_1 = arith.constant 0 : i32
    return %c0_i32, %c0_i32_0 : i32, i32
  }
  func.func @transform_3(%arg0: i32, %arg1: i32) -> (i32, i32, i32) {
    %c0_i32 = arith.constant 0 : i32
    %c0_i32_0 = arith.constant 0 : i32
    %c0_i32_1 = arith.constant 0 : i32
    return %arg1, %c0_i32, %c0_i32_0 : i32, i32, i32
  }
  func.func @transform_4(%arg0: i32, %arg1: i32) -> (i32, i32, i32) {
    %c0_i32 = arith.constant 0 : i32
    %c0_i32_0 = arith.constant 0 : i32
    %c0_i32_1 = arith.constant 0 : i32
    return %arg1, %c0_i32, %c0_i32_0 : i32, i32, i32
  }
  func.func @transform_5(%arg0: i32, %arg1: i32) -> (i32, i32, i32) {
    %c0_i32 = arith.constant 0 : i32
    %c0_i32_0 = arith.constant 0 : i32
    %c0_i32_1 = arith.constant 0 : i32
    return %arg1, %c0_i32, %c0_i32_0 : i32, i32, i32
  }
  func.func @transform_6(%arg0: i32, %arg1: i32) -> (i32, i32, i32) {
    %c0_i32 = arith.constant 0 : i32
    %c0_i32_0 = arith.constant 0 : i32
    %c0_i32_1 = arith.constant 0 : i32
    return %arg1, %c0_i32, %c0_i32_0 : i32, i32, i32
  }
  func.func @transform_7(%arg0: i32, %arg1: i32) -> (i32, i32, i32) {
    %c0_i32 = arith.constant 0 : i32
    %c0_i32_0 = arith.constant 0 : i32
    %c0_i32_1 = arith.constant 0 : i32
    return %arg1, %c0_i32, %c0_i32_0 : i32, i32, i32
  }
  func.func @transform_8(%arg0: i32, %arg1: i32) -> (i32, i32, i32) {
    %c0_i32 = arith.constant 0 : i32
    %c0_i32_0 = arith.constant 0 : i32
    %c0_i32_1 = arith.constant 0 : i32
    return %arg1, %c0_i32, %c0_i32_0 : i32, i32, i32
  }
  func.func @transform_9(%arg0: i32, %arg1: i32) -> (i32, i32, i32) {
    %c0_i32 = arith.constant 0 : i32
    %c0_i32_0 = arith.constant 0 : i32
    %c0_i32_1 = arith.constant 0 : i32
    return %arg1, %c0_i32, %c0_i32_0 : i32, i32, i32
  }
  func.func @transform_10(%arg0: i32, %arg1: i32) -> (i32, i32, i32) {
    %c0_i32 = arith.constant 0 : i32
    %c0_i32_0 = arith.constant 0 : i32
    %c0_i32_1 = arith.constant 0 : i32
    return %arg1, %c0_i32, %c0_i32_0 : i32, i32, i32
  }
  func.func @transform_11(%arg0: i32, %arg1: i32) -> (i32, i32, i32) {
    %c0_i32 = arith.constant 0 : i32
    %c0_i32_0 = arith.constant 0 : i32
    %c0_i32_1 = arith.constant 0 : i32
    return %arg1, %c0_i32, %c0_i32_0 : i32, i32, i32
  }
  func.func @transform_12(%arg0: i32, %arg1: i32) -> (i32, i32, i32) {
    %c0_i32 = arith.constant 0 : i32
    %c0_i32_0 = arith.constant 0 : i32
    %c0_i32_1 = arith.constant 0 : i32
    return %arg1, %c0_i32, %c0_i32_0 : i32, i32, i32
  }
  func.func @transform_13(%arg0: i32, %arg1: i32) -> (i32, i32, i32) {
    %c0_i32 = arith.constant 0 : i32
    %c0_i32_0 = arith.constant 0 : i32
    %c0_i32_1 = arith.constant 0 : i32
    return %arg1, %c0_i32, %c0_i32_0 : i32, i32, i32
  }
  func.func @transform_14(%arg0: i32, %arg1: i32) -> (i32, i32, i32) {
    %c0_i32 = arith.constant 0 : i32
    %c0_i32_0 = arith.constant 0 : i32
    %c0_i32_1 = arith.constant 0 : i32
    return %arg1, %c0_i32, %c0_i32_0 : i32, i32, i32
  }
  func.func @transform_15(%arg0: i32, %arg1: i32) -> (i32, i32) {
    %c0_i32 = arith.constant 0 : i32
    %c0_i32_0 = arith.constant 0 : i32
    %c0_i32_1 = arith.constant 0 : i32
    return %c0_i32, %c0_i32_0 : i32, i32
  }
  func.func @transform_16(%arg0: i32, %arg1: i32) -> (i32, i32) {
    %c0_i32 = arith.constant 0 : i32
    %c0_i32_0 = arith.constant 0 : i32
    %c0_i32_1 = arith.constant 0 : i32
    return %c0_i32, %c0_i32_0 : i32, i32
  }
  func.func @transform_17(%arg0: i32, %arg1: i32) -> (i32, i32) {
    %c0_i32 = arith.constant 0 : i32
    %c0_i32_0 = arith.constant 0 : i32
    %c0_i32_1 = arith.constant 0 : i32
    return %c0_i32, %c0_i32_0 : i32, i32
  }
  func.func @transform_18(%arg0: i32, %arg1: i32) -> (i32, i32) {
    %c0_i32 = arith.constant 0 : i32
    %c0_i32_0 = arith.constant 0 : i32
    %c0_i32_1 = arith.constant 0 : i32
    return %c0_i32, %c0_i32_0 : i32, i32
  }
  func.func @transform_19(%arg0: i32, %arg1: i32) -> (i32, i32) {
    %c0_i32 = arith.constant 0 : i32
    %c0_i32_0 = arith.constant 0 : i32
    return %arg0, %c0_i32 : i32, i32
  }
}

</mosaic_0001>

<llo_original>
// kernel: _lambda_.1
$region0: #{_lambda_.1}
  #allocation0 [shape = 'u32[]', space=smem, size = 0x4, offset = 0x4, fixed_abs, tag = 'smem constant byte address 0x4 - core index']
  #allocation1 [shape = 'u32[72,128]{1,0:T(1,128)}', space=vmem, size = 0x9000, scoped, tag = 'internal scratch']
  #allocation2 [shape = 'f32[64,32]{1,0:T(8,128)}', space=vmem, size = 0x8000, scoped, tag = 'scratch operand']
  %s0 = inlined_call_operand.vmem [shape: s32[128,1], index: 0, kind: input, shape index: {}]
  %s1 = inlined_call_operand.vmem [shape: bf16[128,32], index: 1, kind: input, shape index: {}]
  %s2 = inlined_call_operand.vmem [shape: f32[64,32], index: 2, kind: input, shape index: {}]
  %s3 = inlined_call_operand.vmem [shape: bf16[2,32,96], index: 3, kind: input, shape index: {}]
  %s4 = inlined_call_operand.vmem [shape: f32[2,1,96], index: 4, kind: input, shape index: {}]
  %s5 = inlined_call_operand.vmem [shape: bf16[2,32,32], index: 5, kind: input, shape index: {}]
  %s6 = inlined_call_operand.vmem [shape: f32[2,1,32], index: 6, kind: input, shape index: {}]
  %s7 = inlined_call_operand.vmem [shape: f32[2,1,32], index: 7, kind: input, shape index: {}]
  %s8 = inlined_call_operand.vmem [shape: f32[2,1,32], index: 8, kind: input, shape index: {}]
  %s9 = inlined_call_operand.vmem [shape: bf16[2,32,2048], index: 9, kind: input, shape index: {}]
  %s10 = inlined_call_operand.vmem [shape: f32[2,1,2048], index: 10, kind: input, shape index: {}]
  %s11 = inlined_call_operand.vmem [shape: bf16[2,2048,32], index: 11, kind: input, shape index: {}]
  %s12 = inlined_call_operand.vmem [shape: f32[2,1,32], index: 12, kind: input, shape index: {}]
  %s13 = inlined_call_operand.vmem [shape: f32[2,1,32], index: 13, kind: input, shape index: {}]
  %s14 = inlined_call_operand.vmem [shape: f32[2,1,32], index: 14, kind: input, shape index: {}]
  %s15 = inlined_call_operand.vmem [shape: f32[1,32], index: 15, kind: input, shape index: {}]
  %s16 = inlined_call_operand.vmem [shape: f32[1,32], index: 16, kind: input, shape index: {}]
  %s17 = inlined_call_operand.vmem [shape: bf16[32,128], index: 17, kind: input, shape index: {}]
  %s18 = inlined_call_operand.vmem [shape: f32[1,128], index: 18, kind: input, shape index: {}]
  %s19 = inlined_call_operand.hbm [shape: f32[128,128], index: 19, kind: output, shape index: {}]
  %s20 = sld [smem:[#allocation0]]
  $region117: #{_lambda_.1} parent=0
    _
  %s22 = ssub.s32 1, %s20
  %s23 = scalar_select 0, %s22, %s20
  $region1: #{_lambda_.1} parent=0
    #allocation3 [shape = 'u8[65536]{0}', space=vmem, size = 0x10000, scoped, tag = 'output window, operand 0']
    #allocation4 [shape = 's32[2]{0}', space=sflag, size = 0x8, scoped, tag = 'scoped memory for _lambda_.1']
    %24 = vsyncpa [#allocation4], 0
    %s25 = scalar_lea.sflag [#allocation4], 1
    %26 = vsyncpa %s25, 0
    loop: start=0, step=1, limit=6
    $region2: #{_lambda_.1} parent=1 // loop_pre_header
      _
    $region3: #{_lambda_.1} parent=1 // loop_header
      %s28 = sphi 0, %s32
      %p29 = scmp.ge.s32.totalorder %s28, 6
      %s35 = sphi 0, %s47
      %s36 = sphi 0, %s43
      %s37 = sphi 0, %s35
      %s38 = sphi 0, %s36
      %s39 = sphi 0, %s37
      %s40 = sphi 0, %s38
      %s50 = sphi 0, %s52
      %s53 = sphi 0, %s50
      %s54 = sphi 0, %s53
      %s70 = sphi 0, %s54
      %s74 = sphi 0, %s74
      %s76 = sphi 0, %s74
      %s77 = sphi 0, %s76
      %s91 = sphi 0, %s77
      %s95 = sphi 0, %s95
      %s97 = sphi 0, %s95
      %s98 = sphi 0, %s97
      %s112 = sphi 0, %s98
      %s118 = sphi 0, %s120
      %s121 = sphi 0, %s118
      %s122 = sphi 0, %s121
      %s138 = sphi 0, %s122
      %s144 = sphi 0, %s146
      %s147 = sphi 0, %s144
      %s148 = sphi 0, %s147
      %s164 = sphi 0, %s148
      %s170 = sphi 0, %s172
      %s173 = sphi 0, %s170
      %s174 = sphi 0, %s173
      %s190 = sphi 0, %s174
      %s196 = sphi 0, %s198
      %s199 = sphi 0, %s196
      %s200 = sphi 0, %s199
      %s216 = sphi 0, %s200
      %s222 = sphi 0, %s224
      %s225 = sphi 0, %s222
      %s226 = sphi 0, %s225
      %s242 = sphi 0, %s226
      %s248 = sphi 0, %s250
      %s251 = sphi 0, %s248
      %s252 = sphi 0, %s251
      %s268 = sphi 0, %s252
      %s274 = sphi 0, %s276
      %s277 = sphi 0, %s274
      %s278 = sphi 0, %s277
      %s294 = sphi 0, %s278
      %s300 = sphi 0, %s302
      %s303 = sphi 0, %s300
      %s304 = sphi 0, %s303
      %s320 = sphi 0, %s304
      %s326 = sphi 0, %s328
      %s329 = sphi 0, %s326
      %s330 = sphi 0, %s329
      %s346 = sphi 0, %s330
      %s352 = sphi 0, %s354
      %s355 = sphi 0, %s352
      %s356 = sphi 0, %s355
      %s372 = sphi 0, %s356
      %s378 = sphi 0, %s380
      %s381 = sphi 0, %s378
      %s382 = sphi 0, %s381
      %s398 = sphi 0, %s382
      %s404 = sphi 0, %s406
      %s407 = sphi 0, %s404
      %s408 = sphi 0, %s407
      %s424 = sphi 0, %s408
      %s428 = sphi 0, %s428
      %s430 = sphi 0, %s428
      %s431 = sphi 0, %s430
      %s445 = sphi 0, %s431
      %s449 = sphi 0, %s449
      %s451 = sphi 0, %s449
      %s452 = sphi 0, %s451
      %s466 = sphi 0, %s452
      %s470 = sphi 0, %s470
      %s472 = sphi 0, %s470
      %s473 = sphi 0, %s472
      %s487 = sphi 0, %s473
      %s491 = sphi 0, %s491
      %s493 = sphi 0, %s491
      %s494 = sphi 0, %s493
      %s508 = sphi 0, %s494
      %s514 = sphi 0, %s516
      %s517 = sphi 0, %s514
      %s518 = sphi 0, %s517
      %s534 = sphi 0, %s518
    $region4: #{_lambda_.1} parent=1 // loop_header_branch
      %31 = sbr.rel (%p29) target = $region8
    $region5: #{_lambda_.1} parent=1 // loop_body
      %s33 = ssub.s32 %s28, 1
      %s34 = ssub.s32 %s28, 2
      %s41 = sadd.s32 1, %s36
      %p42 = scmp.ge.s32.totalorder %s41, 2
      %s43 = scalar_select %p42, 0, %s41
      %s44 = sadd.s32 1, %s35
      %s45 = scalar_select %p42, %s44, %s35
      %p46 = scmp.ge.s32.totalorder %s45, 2
      %s47 = scalar_select %p46, 0, %s45
      %s48 = ssub.s32 %s35, %s47
      %p49 = scmp.eq.s32.totalorder %s48, 0
      %s51 = sadd.s32 %s50, 1
      %s52 = scalar_select %p49, %s50, %s51
      %p55 = pneg %p49
      %p56 = scmp.eq.s32.totalorder %s28, 3
      %p57 = por %p55, %p56
      %p58 = scmp.ne.s32.totalorder %s50, %s53
      %p59 = scmp.eq.s32.totalorder %s28, 0
      %p60 = por %p58, %p59
      %p61 = scmp.ne.s32.totalorder %s50, %s53
      %p62 = scmp.eq.s32.totalorder %s33, 3
      %p63 = por %p61, %p62
      %p64 = scmp.ne.s32.totalorder %s53, %s54
      %p65 = scmp.eq.s32.totalorder %s33, 0
      %p66 = por %p64, %p65
      %p67 = scmp.ne.s32.totalorder %s53, %s54
      %p68 = scmp.eq.s32.totalorder %s34, 3
      %p69 = por %p67, %p68
      %p71 = scmp.ne.s32.totalorder %s54, %s70
      %p72 = scmp.eq.s32.totalorder %s34, 0
      %p73 = por %p71, %p72
      %s75 = sadd.s32 %s74, 1
      %p78 = scmp.eq.s32.totalorder %s28, 3
      %p79 = scmp.ne.s32.totalorder %s74, %s76
      %p80 = scmp.eq.s32.totalorder %s28, 0
      %p81 = por %p79, %p80
      %p82 = scmp.ne.s32.totalorder %s74, %s76
      %p83 = scmp.eq.s32.totalorder %s33, 3
      %p84 = por %p82, %p83
      %p85 = scmp.ne.s32.totalorder %s76, %s77
      %p86 = scmp.eq.s32.totalorder %s33, 0
      %p87 = por %p85, %p86
      %p88 = scmp.ne.s32.totalorder %s76, %s77
      %p89 = scmp.eq.s32.totalorder %s34, 3
      %p90 = por %p88, %p89
      %p92 = scmp.ne.s32.totalorder %s77, %s91
      %p93 = scmp.eq.s32.totalorder %s34, 0
      %p94 = por %p92, %p93
      %s96 = sadd.s32 %s95, 1
      %p99 = scmp.eq.s32.totalorder %s28, 3
      %p100 = scmp.ne.s32.totalorder %s95, %s97
      %p101 = scmp.eq.s32.totalorder %s28, 0
      %p102 = por %p100, %p101
      %p103 = scmp.ne.s32.totalorder %s95, %s97
      %p104 = scmp.eq.s32.totalorder %s33, 3
      %p105 = por %p103, %p104
      %p106 = scmp.ne.s32.totalorder %s97, %s98
      %p107 = scmp.eq.s32.totalorder %s33, 0
      %p108 = por %p106, %p107
      %p109 = scmp.ne.s32.totalorder %s97, %s98
      %p110 = scmp.eq.s32.totalorder %s34, 3
      %p111 = por %p109, %p110
      %p113 = scmp.ne.s32.totalorder %s98, %s112
      %p114 = scmp.eq.s32.totalorder %s34, 0
      %p115 = por %p113, %p114
      %s116 = ssub.s32 %s36, %s43
      %p117 = scmp.eq.s32.totalorder %s116, 0
      %s119 = sadd.s32 %s118, 1
      %s120 = scalar_select %p117, %s118, %s119
      %p123 = pneg %p117
      %p124 = scmp.eq.s32.totalorder %s28, 3
      %p125 = por %p123, %p124
      %p126 = scmp.ne.s32.totalorder %s118, %s121
      %p127 = scmp.eq.s32.totalorder %s28, 0
      %p128 = por %p126, %p127
      %p129 = scmp.ne.s32.totalorder %s118, %s121
      %p130 = scmp.eq.s32.totalorder %s33, 3
      %p131 = por %p129, %p130
      %p132 = scmp.ne.s32.totalorder %s121, %s122
      %p133 = scmp.eq.s32.totalorder %s33, 0
      %p134 = por %p132, %p133
      %p135 = scmp.ne.s32.totalorder %s121, %s122
      %p136 = scmp.eq.s32.totalorder %s34, 3
      %p137 = por %p135, %p136
      %p139 = scmp.ne.s32.totalorder %s122, %s138
      %p140 = scmp.eq.s32.totalorder %s34, 0
      %p141 = por %p139, %p140
      %s142 = ssub.s32 %s36, %s43
      %p143 = scmp.eq.s32.totalorder %s142, 0
      %s145 = sadd.s32 %s144, 1
      %s146 = scalar_select %p143, %s144, %s145
      %p149 = pneg %p143
      %p150 = scmp.eq.s32.totalorder %s28, 3
      %p151 = por %p149, %p150
      %p152 = scmp.ne.s32.totalorder %s144, %s147
      %p153 = scmp.eq.s32.totalorder %s28, 0
      %p154 = por %p152, %p153
      %p155 = scmp.ne.s32.totalorder %s144, %s147
      %p156 = scmp.eq.s32.totalorder %s33, 3
      %p157 = por %p155, %p156
      %p158 = scmp.ne.s32.totalorder %s147, %s148
      %p159 = scmp.eq.s32.totalorder %s33, 0
      %p160 = por %p158, %p159
      %p161 = scmp.ne.s32.totalorder %s147, %s148
      %p162 = scmp.eq.s32.totalorder %s34, 3
      %p163 = por %p161, %p162
      %p165 = scmp.ne.s32.totalorder %s148, %s164
      %p166 = scmp.eq.s32.totalorder %s34, 0
      %p167 = por %p165, %p166
      %s168 = ssub.s32 %s36, %s43
      %p169 = scmp.eq.s32.totalorder %s168, 0
      %s171 = sadd.s32 %s170, 1
      %s172 = scalar_select %p169, %s170, %s171
      %p175 = pneg %p169
      %p176 = scmp.eq.s32.totalorder %s28, 3
      %p177 = por %p175, %p176
      %p178 = scmp.ne.s32.totalorder %s170, %s173
      %p179 = scmp.eq.s32.totalorder %s28, 0
      %p180 = por %p178, %p179
      %p181 = scmp.ne.s32.totalorder %s170, %s173
      %p182 = scmp.eq.s32.totalorder %s33, 3
      %p183 = por %p181, %p182
      %p184 = scmp.ne.s32.totalorder %s173, %s174
      %p185 = scmp.eq.s32.totalorder %s33, 0
      %p186 = por %p184, %p185
      %p187 = scmp.ne.s32.totalorder %s173, %s174
      %p188 = scmp.eq.s32.totalorder %s34, 3
      %p189 = por %p187, %p188
      %p191 = scmp.ne.s32.totalorder %s174, %s190
      %p192 = scmp.eq.s32.totalorder %s34, 0
      %p193 = por %p191, %p192
      %s194 = ssub.s32 %s36, %s43
      %p195 = scmp.eq.s32.totalorder %s194, 0
      %s197 = sadd.s32 %s196, 1
      %s198 = scalar_select %p195, %s196, %s197
      %p201 = pneg %p195
      %p202 = scmp.eq.s32.totalorder %s28, 3
      %p203 = por %p201, %p202
      %p204 = scmp.ne.s32.totalorder %s196, %s199
      %p205 = scmp.eq.s32.totalorder %s28, 0
      %p206 = por %p204, %p205
      %p207 = scmp.ne.s32.totalorder %s196, %s199
      %p208 = scmp.eq.s32.totalorder %s33, 3
      %p209 = por %p207, %p208
      %p210 = scmp.ne.s32.totalorder %s199, %s200
      %p211 = scmp.eq.s32.totalorder %s33, 0
      %p212 = por %p210, %p211
      %p213 = scmp.ne.s32.totalorder %s199, %s200
      %p214 = scmp.eq.s32.totalorder %s34, 3
      %p215 = por %p213, %p214
      %p217 = scmp.ne.s32.totalorder %s200, %s216
      %p218 = scmp.eq.s32.totalorder %s34, 0
      %p219 = por %p217, %p218
      %s220 = ssub.s32 %s36, %s43
      %p221 = scmp.eq.s32.totalorder %s220, 0
      %s223 = sadd.s32 %s222, 1
      %s224 = scalar_select %p221, %s222, %s223
      %p227 = pneg %p221
      %p228 = scmp.eq.s32.totalorder %s28, 3
      %p229 = por %p227, %p228
      %p230 = scmp.ne.s32.totalorder %s222, %s225
      %p231 = scmp.eq.s32.totalorder %s28, 0
      %p232 = por %p230, %p231
      %p233 = scmp.ne.s32.totalorder %s222, %s225
      %p234 = scmp.eq.s32.totalorder %s33, 3
      %p235 = por %p233, %p234
      %p236 = scmp.ne.s32.totalorder %s225, %s226
      %p237 = scmp.eq.s32.totalorder %s33, 0
      %p238 = por %p236, %p237
      %p239 = scmp.ne.s32.totalorder %s225, %s226
      %p240 = scmp.eq.s32.totalorder %s34, 3
      %p241 = por %p239, %p240
      %p243 = scmp.ne.s32.totalorder %s226, %s242
      %p244 = scmp.eq.s32.totalorder %s34, 0
      %p245 = por %p243, %p244
      %s246 = ssub.s32 %s36, %s43
      %p247 = scmp.eq.s32.totalorder %s246, 0
      %s249 = sadd.s32 %s248, 1
      %s250 = scalar_select %p247, %s248, %s249
      %p253 = pneg %p247
      %p254 = scmp.eq.s32.totalorder %s28, 3
      %p255 = por %p253, %p254
      %p256 = scmp.ne.s32.totalorder %s248, %s251
      %p257 = scmp.eq.s32.totalorder %s28, 0
      %p258 = por %p256, %p257
      %p259 = scmp.ne.s32.totalorder %s248, %s251
      %p260 = scmp.eq.s32.totalorder %s33, 3
      %p261 = por %p259, %p260
      %p262 = scmp.ne.s32.totalorder %s251, %s252
      %p263 = scmp.eq.s32.totalorder %s33, 0
      %p264 = por %p262, %p263
      %p265 = scmp.ne.s32.totalorder %s251, %s252
      %p266 = scmp.eq.s32.totalorder %s34, 3
      %p267 = por %p265, %p266
      %p269 = scmp.ne.s32.totalorder %s252, %s268
      %p270 = scmp.eq.s32.totalorder %s34, 0
      %p271 = por %p269, %p270
      %s272 = ssub.s32 %s36, %s43
      %p273 = scmp.eq.s32.totalorder %s272, 0
      %s275 = sadd.s32 %s274, 1
      %s276 = scalar_select %p273, %s274, %s275
      %p279 = pneg %p273
      %p280 = scmp.eq.s32.totalorder %s28, 3
      %p281 = por %p279, %p280
      %p282 = scmp.ne.s32.totalorder %s274, %s277
      %p283 = scmp.eq.s32.totalorder %s28, 0
      %p284 = por %p282, %p283
      %p285 = scmp.ne.s32.totalorder %s274, %s277
      %p286 = scmp.eq.s32.totalorder %s33, 3
      %p287 = por %p285, %p286
      %p288 = scmp.ne.s32.totalorder %s277, %s278
      %p289 = scmp.eq.s32.totalorder %s33, 0
      %p290 = por %p288, %p289
      %p291 = scmp.ne.s32.totalorder %s277, %s278
      %p292 = scmp.eq.s32.totalorder %s34, 3
      %p293 = por %p291, %p292
      %p295 = scmp.ne.s32.totalorder %s278, %s294
      %p296 = scmp.eq.s32.totalorder %s34, 0
      %p297 = por %p295, %p296
      %s298 = ssub.s32 %s36, %s43
      %p299 = scmp.eq.s32.totalorder %s298, 0
      %s301 = sadd.s32 %s300, 1
      %s302 = scalar_select %p299, %s300, %s301
      %p305 = pneg %p299
      %p306 = scmp.eq.s32.totalorder %s28, 3
      %p307 = por %p305, %p306
      %p308 = scmp.ne.s32.totalorder %s300, %s303
      %p309 = scmp.eq.s32.totalorder %s28, 0
      %p310 = por %p308, %p309
      %p311 = scmp.ne.s32.totalorder %s300, %s303
      %p312 = scmp.eq.s32.totalorder %s33, 3
      %p313 = por %p311, %p312
      %p314 = scmp.ne.s32.totalorder %s303, %s304
      %p315 = scmp.eq.s32.totalorder %s33, 0
      %p316 = por %p314, %p315
      %p317 = scmp.ne.s32.totalorder %s303, %s304
      %p318 = scmp.eq.s32.totalorder %s34, 3
      %p319 = por %p317, %p318
      %p321 = scmp.ne.s32.totalorder %s304, %s320
      %p322 = scmp.eq.s32.totalorder %s34, 0
      %p323 = por %p321, %p322
      %s324 = ssub.s32 %s36, %s43
      %p325 = scmp.eq.s32.totalorder %s324, 0
      %s327 = sadd.s32 %s326, 1
      %s328 = scalar_select %p325, %s326, %s327
      %p331 = pneg %p325
      %p332 = scmp.eq.s32.totalorder %s28, 3
      %p333 = por %p331, %p332
      %p334 = scmp.ne.s32.totalorder %s326, %s329
      %p335 = scmp.eq.s32.totalorder %s28, 0
      %p336 = por %p334, %p335
      %p337 = scmp.ne.s32.totalorder %s326, %s329
      %p338 = scmp.eq.s32.totalorder %s33, 3
      %p339 = por %p337, %p338
      %p340 = scmp.ne.s32.totalorder %s329, %s330
      %p341 = scmp.eq.s32.totalorder %s33, 0
      %p342 = por %p340, %p341
      %p343 = scmp.ne.s32.totalorder %s329, %s330
      %p344 = scmp.eq.s32.totalorder %s34, 3
      %p345 = por %p343, %p344
      %p347 = scmp.ne.s32.totalorder %s330, %s346
      %p348 = scmp.eq.s32.totalorder %s34, 0
      %p349 = por %p347, %p348
      %s350 = ssub.s32 %s36, %s43
      %p351 = scmp.eq.s32.totalorder %s350, 0
      %s353 = sadd.s32 %s352, 1
      %s354 = scalar_select %p351, %s352, %s353
      %p357 = pneg %p351
      %p358 = scmp.eq.s32.totalorder %s28, 3
      %p359 = por %p357, %p358
      %p360 = scmp.ne.s32.totalorder %s352, %s355
      %p361 = scmp.eq.s32.totalorder %s28, 0
      %p362 = por %p360, %p361
      %p363 = scmp.ne.s32.totalorder %s352, %s355
      %p364 = scmp.eq.s32.totalorder %s33, 3
      %p365 = por %p363, %p364
      %p366 = scmp.ne.s32.totalorder %s355, %s356
      %p367 = scmp.eq.s32.totalorder %s33, 0
      %p368 = por %p366, %p367
      %p369 = scmp.ne.s32.totalorder %s355, %s356
      %p370 = scmp.eq.s32.totalorder %s34, 3
      %p371 = por %p369, %p370
      %p373 = scmp.ne.s32.totalorder %s356, %s372
      %p374 = scmp.eq.s32.totalorder %s34, 0
      %p375 = por %p373, %p374
      %s376 = ssub.s32 %s36, %s43
      %p377 = scmp.eq.s32.totalorder %s376, 0
      %s379 = sadd.s32 %s378, 1
      %s380 = scalar_select %p377, %s378, %s379
      %p383 = pneg %p377
      %p384 = scmp.eq.s32.totalorder %s28, 3
      %p385 = por %p383, %p384
      %p386 = scmp.ne.s32.totalorder %s378, %s381
      %p387 = scmp.eq.s32.totalorder %s28, 0
      %p388 = por %p386, %p387
      %p389 = scmp.ne.s32.totalorder %s378, %s381
      %p390 = scmp.eq.s32.totalorder %s33, 3
      %p391 = por %p389, %p390
      %p392 = scmp.ne.s32.totalorder %s381, %s382
      %p393 = scmp.eq.s32.totalorder %s33, 0
      %p394 = por %p392, %p393
      %p395 = scmp.ne.s32.totalorder %s381, %s382
      %p396 = scmp.eq.s32.totalorder %s34, 3
      %p397 = por %p395, %p396
      %p399 = scmp.ne.s32.totalorder %s382, %s398
      %p400 = scmp.eq.s32.totalorder %s34, 0
      %p401 = por %p399, %p400
      %s402 = ssub.s32 %s36, %s43
      %p403 = scmp.eq.s32.totalorder %s402, 0
      %s405 = sadd.s32 %s404, 1
      %s406 = scalar_select %p403, %s404, %s405
      %p409 = pneg %p403
      %p410 = scmp.eq.s32.totalorder %s28, 3
      %p411 = por %p409, %p410
      %p412 = scmp.ne.s32.totalorder %s404, %s407
      %p413 = scmp.eq.s32.totalorder %s28, 0
      %p414 = por %p412, %p413
      %p415 = scmp.ne.s32.totalorder %s404, %s407
      %p416 = scmp.eq.s32.totalorder %s33, 3
      %p417 = por %p415, %p416
      %p418 = scmp.ne.s32.totalorder %s407, %s408
      %p419 = scmp.eq.s32.totalorder %s33, 0
      %p420 = por %p418, %p419
      %p421 = scmp.ne.s32.totalorder %s407, %s408
      %p422 = scmp.eq.s32.totalorder %s34, 3
      %p423 = por %p421, %p422
      %p425 = scmp.ne.s32.totalorder %s408, %s424
      %p426 = scmp.eq.s32.totalorder %s34, 0
      %p427 = por %p425, %p426
      %s429 = sadd.s32 %s428, 1
      %p432 = scmp.eq.s32.totalorder %s28, 3
      %p433 = scmp.ne.s32.totalorder %s428, %s430
      %p434 = scmp.eq.s32.totalorder %s28, 0
      %p435 = por %p433, %p434
      %p436 = scmp.ne.s32.totalorder %s428, %s430
      %p437 = scmp.eq.s32.totalorder %s33, 3
      %p438 = por %p436, %p437
      %p439 = scmp.ne.s32.totalorder %s430, %s431
      %p440 = scmp.eq.s32.totalorder %s33, 0
      %p441 = por %p439, %p440
      %p442 = scmp.ne.s32.totalorder %s430, %s431
      %p443 = scmp.eq.s32.totalorder %s34, 3
      %p444 = por %p442, %p443
      %p446 = scmp.ne.s32.totalorder %s431, %s445
      %p447 = scmp.eq.s32.totalorder %s34, 0
      %p448 = por %p446, %p447
      %s450 = sadd.s32 %s449, 1
      %p453 = scmp.eq.s32.totalorder %s28, 3
      %p454 = scmp.ne.s32.totalorder %s449, %s451
      %p455 = scmp.eq.s32.totalorder %s28, 0
      %p456 = por %p454, %p455
      %p457 = scmp.ne.s32.totalorder %s449, %s451
      %p458 = scmp.eq.s32.totalorder %s33, 3
      %p459 = por %p457, %p458
      %p460 = scmp.ne.s32.totalorder %s451, %s452
      %p461 = scmp.eq.s32.totalorder %s33, 0
      %p462 = por %p460, %p461
      %p463 = scmp.ne.s32.totalorder %s451, %s452
      %p464 = scmp.eq.s32.totalorder %s34, 3
      %p465 = por %p463, %p464
      %p467 = scmp.ne.s32.totalorder %s452, %s466
      %p468 = scmp.eq.s32.totalorder %s34, 0
      %p469 = por %p467, %p468
      %s471 = sadd.s32 %s470, 1
      %p474 = scmp.eq.s32.totalorder %s28, 3
      %p475 = scmp.ne.s32.totalorder %s470, %s472
      %p476 = scmp.eq.s32.totalorder %s28, 0
      %p477 = por %p475, %p476
      %p478 = scmp.ne.s32.totalorder %s470, %s472
      %p479 = scmp.eq.s32.totalorder %s33, 3
      %p480 = por %p478, %p479
      %p481 = scmp.ne.s32.totalorder %s472, %s473
      %p482 = scmp.eq.s32.totalorder %s33, 0
      %p483 = por %p481, %p482
      %p484 = scmp.ne.s32.totalorder %s472, %s473
      %p485 = scmp.eq.s32.totalorder %s34, 3
      %p486 = por %p484, %p485
      %p488 = scmp.ne.s32.totalorder %s473, %s487
      %p489 = scmp.eq.s32.totalorder %s34, 0
      %p490 = por %p488, %p489
      %s492 = sadd.s32 %s491, 1
      %p495 = scmp.eq.s32.totalorder %s28, 3
      %p496 = scmp.ne.s32.totalorder %s491, %s493
      %p497 = scmp.eq.s32.totalorder %s28, 0
      %p498 = por %p496, %p497
      %p499 = scmp.ne.s32.totalorder %s491, %s493
      %p500 = scmp.eq.s32.totalorder %s33, 3
      %p501 = por %p499, %p500
      %p502 = scmp.ne.s32.totalorder %s493, %s494
      %p503 = scmp.eq.s32.totalorder %s33, 0
      %p504 = por %p502, %p503
      %p505 = scmp.ne.s32.totalorder %s493, %s494
      %p506 = scmp.eq.s32.totalorder %s34, 3
      %p507 = por %p505, %p506
      %p509 = scmp.ne.s32.totalorder %s494, %s508
      %p510 = scmp.eq.s32.totalorder %s34, 0
      %p511 = por %p509, %p510
      %s512 = ssub.s32 %s35, %s47
      %p513 = scmp.eq.s32.totalorder %s512, 0
      %s515 = sadd.s32 %s514, 1
      %s516 = scalar_select %p513, %s514, %s515
      %p519 = pneg %p513
      %p520 = scmp.eq.s32.totalorder %s28, 3
      %p521 = por %p519, %p520
      %p522 = scmp.ne.s32.totalorder %s514, %s517
      %p523 = scmp.eq.s32.totalorder %s28, 0
      %p524 = por %p522, %p523
      %p525 = scmp.ne.s32.totalorder %s514, %s517
      %p526 = scmp.eq.s32.totalorder %s33, 3
      %p527 = por %p525, %p526
      %p528 = scmp.ne.s32.totalorder %s517, %s518
      %p529 = scmp.eq.s32.totalorder %s33, 0
      %p530 = por %p528, %p529
      %p531 = scmp.ne.s32.totalorder %s517, %s518
      %p532 = scmp.eq.s32.totalorder %s34, 3
      %p533 = por %p531, %p532
      %p535 = scmp.ne.s32.totalorder %s518, %s534
      %p536 = scmp.eq.s32.totalorder %s34, 0
      %p537 = por %p535, %p536
      %p538 = scmp.le.s32.totalorder 1, %s28
      %p539 = scmp.lt.s32.totalorder %s28, 5
      %p540 = pnand %p538, %p539
      %p541 = pneg %p540
      // Predicated region
      $region9: #{_lambda_.1} parent=5 // pred_check
        _
      $region10: #{_lambda_.1} parent=5 // pred_check_branch
        %543 = sbr.rel (%p540) target = $region12
      $region11: #{_lambda_.1} parent=5 // pred_region
        %s544 = ssub.s32 %s28, 1
        // Predicated region
        $region13: #{_lambda_.1} parent=11 // pred_check
          %p545 = pneg %p87
        $region14: #{_lambda_.1} parent=11 // pred_check_branch
          %547 = sbr.rel (%p545) target = $region16
        $region15: #{_lambda_.1} parent=11 // pred_region
          _
        $region16: #{_lambda_.1} parent=11 // pred_fallthru
          _
        // Predicated region
        $region17: #{_lambda_.1} parent=11 // pred_check
          %p548 = pneg %p108
        $region18: #{_lambda_.1} parent=11 // pred_check_branch
          %550 = sbr.rel (%p548) target = $region20
        $region19: #{_lambda_.1} parent=11 // pred_region
          _
        $region20: #{_lambda_.1} parent=11 // pred_fallthru
          _
        // Predicated region
        $region21: #{_lambda_.1} parent=11 // pred_check
          %p551 = pneg %p441
        $region22: #{_lambda_.1} parent=11 // pred_check_branch
          %553 = sbr.rel (%p551) target = $region24
        $region23: #{_lambda_.1} parent=11 // pred_region
          _
        $region24: #{_lambda_.1} parent=11 // pred_fallthru
          _
        // Predicated region
        $region25: #{_lambda_.1} parent=11 // pred_check
          %p554 = pneg %p462
        $region26: #{_lambda_.1} parent=11 // pred_check_branch
          %556 = sbr.rel (%p554) target = $region28
        $region27: #{_lambda_.1} parent=11 // pred_region
          _
        $region28: #{_lambda_.1} parent=11 // pred_fallthru
          _
        // Predicated region
        $region29: #{_lambda_.1} parent=11 // pred_check
          %p557 = pneg %p483
        $region30: #{_lambda_.1} parent=11 // pred_check_branch
          %559 = sbr.rel (%p557) target = $region32
        $region31: #{_lambda_.1} parent=11 // pred_region
          _
        $region32: #{_lambda_.1} parent=11 // pred_fallthru
          _
        // Predicated region
        $region33: #{_lambda_.1} parent=11 // pred_check
          %p560 = pneg %p504
        $region34: #{_lambda_.1} parent=11 // pred_check_branch
          %562 = sbr.rel (%p560) target = $region36
        $region35: #{_lambda_.1} parent=11 // pred_region
          _
        $region36: #{_lambda_.1} parent=11 // pred_fallthru
          _
      $region12: #{_lambda_.1} parent=5 // pred_fallthru
        _
      %p563 = scmp.lt.s32.totalorder %s28, 4
      // Predicated region
      $region37: #{_lambda_.1} parent=5 // pred_check
        %p564 = pneg %p563
      $region38: #{_lambda_.1} parent=5 // pred_check_branch
        %566 = sbr.rel (%p564) target = $region40
      $region39: #{_lambda_.1} parent=5 // pred_region
        // Predicated region
        $region41: #{_lambda_.1} parent=39 // pred_check
          %p567 = pneg %p60
        $region42: #{_lambda_.1} parent=39 // pred_check_branch
          %569 = sbr.rel (%p567) target = $region44
        $region43: #{_lambda_.1} parent=39 // pred_region
          %s570 = smul.u32 8, %s35
          %p571 = scmp.lt.s32.totalorder %s570, 15
          %s572 = scalar_select %p571, %s570, 15
          %s573 = smul.addr %s572, 8
          %s574 = scalar_lea.vmem %s0, %s573
          %s575 = smul.u32 8, %s35
        $region44: #{_lambda_.1} parent=39 // pred_fallthru
          _
        // Predicated region
        $region45: #{_lambda_.1} parent=39 // pred_check
          %p576 = pneg %p128
        $region46: #{_lambda_.1} parent=39 // pred_check_branch
          %578 = sbr.rel (%p576) target = $region48
        $region47: #{_lambda_.1} parent=39 // pred_region
          %p579 = scmp.lt.s32.totalorder %s36, 1
          %s580 = scalar_select %p579, %s36, 1
          %s581 = smul.addr %s580, 4
          %s582 = smul.addr %s581, 4
          %s583 = scalar_lea.vmem %s3, %s582
        $region48: #{_lambda_.1} parent=39 // pred_fallthru
          _
        // Predicated region
        $region49: #{_lambda_.1} parent=39 // pred_check
          %p584 = pneg %p154
        $region50: #{_lambda_.1} parent=39 // pred_check_branch
          %586 = sbr.rel (%p584) target = $region52
        $region51: #{_lambda_.1} parent=39 // pred_region
          %p587 = scmp.lt.s32.totalorder %s36, 1
          %s588 = scalar_select %p587, %s36, 1
          %s589 = scalar_lea.vmem %s4, %s588
        $region52: #{_lambda_.1} parent=39 // pred_fallthru
          _
        // Predicated region
        $region53: #{_lambda_.1} parent=39 // pred_check
          %p590 = pneg %p180
        $region54: #{_lambda_.1} parent=39 // pred_check_branch
          %592 = sbr.rel (%p590) target = $region56
        $region55: #{_lambda_.1} parent=39 // pred_region
          %p593 = scmp.lt.s32.totalorder %s36, 1
          %s594 = scalar_select %p593, %s36, 1
          %s595 = smul.addr %s594, 4
          %s596 = smul.addr %s595, 4
          %s597 = scalar_lea.vmem %s5, %s596
        $region56: #{_lambda_.1} parent=39 // pred_fallthru
          _
        // Predicated region
        $region57: #{_lambda_.1} parent=39 // pred_check
          %p598 = pneg %p206
        $region58: #{_lambda_.1} parent=39 // pred_check_branch
          %600 = sbr.rel (%p598) target = $region60
        $region59: #{_lambda_.1} parent=39 // pred_region
          %p601 = scmp.lt.s32.totalorder %s36, 1
          %s602 = scalar_select %p601, %s36, 1
          %s603 = scalar_lea.vmem %s6, %s602
        $region60: #{_lambda_.1} parent=39 // pred_fallthru
          _
        // Predicated region
        $region61: #{_lambda_.1} parent=39 // pred_check
          %p604 = pneg %p232
        $region62: #{_lambda_.1} parent=39 // pred_check_branch
          %606 = sbr.rel (%p604) target = $region64
        $region63: #{_lambda_.1} parent=39 // pred_region
          %p607 = scmp.lt.s32.totalorder %s36, 1
          %s608 = scalar_select %p607, %s36, 1
          %s609 = scalar_lea.vmem %s7, %s608
        $region64: #{_lambda_.1} parent=39 // pred_fallthru
          _
        // Predicated region
        $region65: #{_lambda_.1} parent=39 // pred_check
          %p610 = pneg %p258
        $region66: #{_lambda_.1} parent=39 // pred_check_branch
          %612 = sbr.rel (%p610) target = $region68
        $region67: #{_lambda_.1} parent=39 // pred_region
          %p613 = scmp.lt.s32.totalorder %s36, 1
          %s614 = scalar_select %p613, %s36, 1
          %s615 = scalar_lea.vmem %s8, %s614
        $region68: #{_lambda_.1} parent=39 // pred_fallthru
          _
        // Predicated region
        $region69: #{_lambda_.1} parent=39 // pred_check
          %p616 = pneg %p284
        $region70: #{_lambda_.1} parent=39 // pred_check_branch
          %618 = sbr.rel (%p616) target = $region72
        $region71: #{_lambda_.1} parent=39 // pred_region
          %p619 = scmp.lt.s32.totalorder %s36, 1
          %s620 = scalar_select %p619, %s36, 1
          %s621 = smul.addr %s620, 64
          %s622 = smul.addr %s621, 4
          %s623 = scalar_lea.vmem %s9, %s622
        $region72: #{_lambda_.1} parent=39 // pred_fallthru
          _
        // Predicated region
        $region73: #{_lambda_.1} parent=39 // pred_check
          %p624 = pneg %p310
        $region74: #{_lambda_.1} parent=39 // pred_check_branch
          %626 = sbr.rel (%p624) target = $region76
        $region75: #{_lambda_.1} parent=39 // pred_region
          %p627 = scmp.lt.s32.totalorder %s36, 1
          %s628 = scalar_select %p627, %s36, 1
          %s629 = smul.addr %s628, 16
          %s630 = scalar_lea.vmem %s10, %s629
        $region76: #{_lambda_.1} parent=39 // pred_fallthru
          _
        // Predicated region
        $region77: #{_lambda_.1} parent=39 // pred_check
          %p631 = pneg %p336
        $region78: #{_lambda_.1} parent=39 // pred_check_branch
          %633 = sbr.rel (%p631) target = $region80
        $region79: #{_lambda_.1} parent=39 // pred_region
          %p634 = scmp.lt.s32.totalorder %s36, 1
          %s635 = scalar_select %p634, %s36, 1
          %s636 = smul.addr %s635, 256
          %s637 = smul.addr %s636, 4
          %s638 = scalar_lea.vmem %s11, %s637
        $region80: #{_lambda_.1} parent=39 // pred_fallthru
          _
        // Predicated region
        $region81: #{_lambda_.1} parent=39 // pred_check
          %p639 = pneg %p362
        $region82: #{_lambda_.1} parent=39 // pred_check_branch
          %641 = sbr.rel (%p639) target = $region84
        $region83: #{_lambda_.1} parent=39 // pred_region
          %p642 = scmp.lt.s32.totalorder %s36, 1
          %s643 = scalar_select %p642, %s36, 1
          %s644 = scalar_lea.vmem %s12, %s643
        $region84: #{_lambda_.1} parent=39 // pred_fallthru
          _
        // Predicated region
        $region85: #{_lambda_.1} parent=39 // pred_check
          %p645 = pneg %p388
        $region86: #{_lambda_.1} parent=39 // pred_check_branch
          %647 = sbr.rel (%p645) target = $region88
        $region87: #{_lambda_.1} parent=39 // pred_region
          %p648 = scmp.lt.s32.totalorder %s36, 1
          %s649 = scalar_select %p648, %s36, 1
          %s650 = scalar_lea.vmem %s13, %s649
        $region88: #{_lambda_.1} parent=39 // pred_fallthru
          _
        // Predicated region
        $region89: #{_lambda_.1} parent=39 // pred_check
          %p651 = pneg %p414
        $region90: #{_lambda_.1} parent=39 // pred_check_branch
          %653 = sbr.rel (%p651) target = $region92
        $region91: #{_lambda_.1} parent=39 // pred_region
          %p654 = scmp.lt.s32.totalorder %s36, 1
          %s655 = scalar_select %p654, %s36, 1
          %s656 = scalar_lea.vmem %s14, %s655
        $region92: #{_lambda_.1} parent=39 // pred_fallthru
          _
      $region40: #{_lambda_.1} parent=5 // pred_fallthru
        _
      %p657 = scmp.le.s32.totalorder 1, %s28
      %p658 = scmp.lt.s32.totalorder %s28, 5
      %p659 = pnand %p657, %p658
      %p660 = pneg %p659
      // Predicated region
      $region93: #{_lambda_.1} parent=5 // pred_check
        _
      $region94: #{_lambda_.1} parent=5 // pred_check_branch
        %662 = sbr.rel (%p659) target = $region96
      $region95: #{_lambda_.1} parent=5 // pred_region
        %s663 = ssub.s32 %s28, 1
        %s664 = smul.u32 8, %s37
        %p665 = scmp.lt.s32.totalorder %s664, 15
        %s666 = scalar_select %p665, %s664, 15
        %s667 = smul.addr %s666, 8
        %s668 = scalar_lea.vmem %s0, %s667
        %p669 = pneg %p66
        %p670 = pneg %p63
        %p671 = pneg %p87
        %p672 = pneg %p84
        %p673 = pneg %p108
        %p674 = pneg %p105
        %p675 = scmp.lt.s32.totalorder %s38, 1
        %s676 = scalar_select %p675, %s38, 1
        %s677 = smul.addr %s676, 4
        %s678 = smul.addr %s677, 4
        %s679 = scalar_lea.vmem %s3, %s678
        %p680 = pneg %p134
        %p681 = pneg %p131
        %p682 = scmp.lt.s32.totalorder %s38, 1
        %s683 = scalar_select %p682, %s38, 1
        %s684 = scalar_lea.vmem %s4, %s683
        %p685 = pneg %p160
        %p686 = pneg %p157
        %p687 = scmp.lt.s32.totalorder %s38, 1
        %s688 = scalar_select %p687, %s38, 1
        %s689 = smul.addr %s688, 4
        %s690 = smul.addr %s689, 4
        %s691 = scalar_lea.vmem %s5, %s690
        %p692 = pneg %p186
        %p693 = pneg %p183
        %p694 = scmp.lt.s32.totalorder %s38, 1
        %s695 = scalar_select %p694, %s38, 1
        %s696 = scalar_lea.vmem %s6, %s695
        %p697 = pneg %p212
        %p698 = pneg %p209
        %p699 = scmp.lt.s32.totalorder %s38, 1
        %s700 = scalar_select %p699, %s38, 1
        %s701 = scalar_lea.vmem %s7, %s700
        %p702 = pneg %p238
        %p703 = pneg %p235
        %p704 = scmp.lt.s32.totalorder %s38, 1
        %s705 = scalar_select %p704, %s38, 1
        %s706 = scalar_lea.vmem %s8, %s705
        %p707 = pneg %p264
        %p708 = pneg %p261
        %p709 = scmp.lt.s32.totalorder %s38, 1
        %s710 = scalar_select %p709, %s38, 1
        %s711 = smul.addr %s710, 64
        %s712 = smul.addr %s711, 4
        %s713 = scalar_lea.vmem %s9, %s712
        %p714 = pneg %p290
        %p715 = pneg %p287
        %p716 = scmp.lt.s32.totalorder %s38, 1
        %s717 = scalar_select %p716, %s38, 1
        %s718 = smul.addr %s717, 16
        %s719 = scalar_lea.vmem %s10, %s718
        %p720 = pneg %p316
        %p721 = pneg %p313
        %p722 = scmp.lt.s32.totalorder %s38, 1
        %s723 = scalar_select %p722, %s38, 1
        %s724 = smul.addr %s723, 256
        %s725 = smul.addr %s724, 4
        %s726 = scalar_lea.vmem %s11, %s725
        %p727 = pneg %p342
        %p728 = pneg %p339
        %p729 = scmp.lt.s32.totalorder %s38, 1
        %s730 = scalar_select %p729, %s38, 1
        %s731 = scalar_lea.vmem %s12, %s730
        %p732 = pneg %p368
        %p733 = pneg %p365
        %p734 = scmp.lt.s32.totalorder %s38, 1
        %s735 = scalar_select %p734, %s38, 1
        %s736 = scalar_lea.vmem %s13, %s735
        %p737 = pneg %p394
        %p738 = pneg %p391
        %p739 = scmp.lt.s32.totalorder %s38, 1
        %s740 = scalar_select %p739, %s38, 1
        %s741 = scalar_lea.vmem %s14, %s740
        %p742 = pneg %p420
        %p743 = pneg %p417
        %p744 = pneg %p441
        %p745 = pneg %p438
        %p746 = pneg %p462
        %p747 = pneg %p459
        %p748 = pneg %p483
        %p749 = pneg %p480
        %p750 = pneg %p504
        %p751 = pneg %p501
        %p752 = pneg %p530
        %p753 = pneg %p527
        %s754 = sand.u32 %s517, 1
        %s755 = scalar_lea.sflag [#allocation4], %s754
        %s756 = sand.u32 %s517, 1
        %s757 = smul.addr %s756, 64
        %s758 = scalar_lea.vmem [#allocation3], %s757
        %s759 = smul.u32 8, %s37
        %p760 = scmp.lt.s32.totalorder %s759, 15
        %s761 = scalar_select %p760, %s759, 15
        %s762 = smul.addr %s761, 8
        %s763 = scalar_lea.vmem %s0, %s762
        %s764 = smul.u32 8, %s37
        %p765 = scmp.lt.s32.totalorder %s38, 1
        %s766 = scalar_select %p765, %s38, 1
        %s767 = smul.addr %s766, 4
        %s768 = smul.addr %s767, 4
        %s769 = scalar_lea.vmem %s3, %s768
        %p770 = scmp.lt.s32.totalorder %s38, 1
        %s771 = scalar_select %p770, %s38, 1
        %s772 = scalar_lea.vmem %s4, %s771
        %p773 = scmp.lt.s32.totalorder %s38, 1
        %s774 = scalar_select %p773, %s38, 1
        %s775 = smul.addr %s774, 4
        %s776 = smul.addr %s775, 4
        %s777 = scalar_lea.vmem %s5, %s776
        %p778 = scmp.lt.s32.totalorder %s38, 1
        %s779 = scalar_select %p778, %s38, 1
        %s780 = scalar_lea.vmem %s6, %s779
        %p781 = scmp.lt.s32.totalorder %s38, 1
        %s782 = scalar_select %p781, %s38, 1
        %s783 = scalar_lea.vmem %s7, %s782
        %p784 = scmp.lt.s32.totalorder %s38, 1
        %s785 = scalar_select %p784, %s38, 1
        %s786 = scalar_lea.vmem %s8, %s785
        %p787 = scmp.lt.s32.totalorder %s38, 1
        %s788 = scalar_select %p787, %s38, 1
        %s789 = smul.addr %s788, 64
        %s790 = smul.addr %s789, 4
        %s791 = scalar_lea.vmem %s9, %s790
        %p792 = scmp.lt.s32.totalorder %s38, 1
        %s793 = scalar_select %p792, %s38, 1
        %s794 = smul.addr %s793, 16
        %s795 = scalar_lea.vmem %s10, %s794
        %p796 = scmp.lt.s32.totalorder %s38, 1
        %s797 = scalar_select %p796, %s38, 1
        %s798 = smul.addr %s797, 256
        %s799 = smul.addr %s798, 4
        %s800 = scalar_lea.vmem %s11, %s799
        %p801 = scmp.lt.s32.totalorder %s38, 1
        %s802 = scalar_select %p801, %s38, 1
        %s803 = scalar_lea.vmem %s12, %s802
        %p804 = scmp.lt.s32.totalorder %s38, 1
        %s805 = scalar_select %p804, %s38, 1
        %s806 = scalar_lea.vmem %s13, %s805
        %p807 = scmp.lt.s32.totalorder %s38, 1
        %s808 = scalar_select %p807, %s38, 1
        %s809 = scalar_lea.vmem %s14, %s808
        %s810 = smul.u32 8, %s37
        %p812 = scmp.eq.s32.totalorder %s38, 0
        // Predicated region
        $region97: #{_lambda_.1} parent=95 // pred_check
          %p813 = pneg %p812
        $region98: #{_lambda_.1} parent=95 // pred_check_branch
          %815 = sbr.rel (%p813) target = $region100
        $region99: #{_lambda_.1} parent=95 // pred_region
          %v816 = vld [vmem:[%s763] sm:$0xff]
          %v817 = vld [vmem:[%s763 + $0x8] sm:$0xff]
          %v818 = vld [vmem:[%s763 + $0x10] sm:$0xff]
          %v819 = vld [vmem:[%s763 + $0x18] sm:$0xff]
          %v820 = vld [vmem:[%s763 + $0x20] sm:$0xff]
          %v821 = vld [vmem:[%s763 + $0x28] sm:$0xff]
          %v822 = vld [vmem:[%s763 + $0x30] sm:$0xff]
          %v823 = vld [vmem:[%s763 + $0x38] sm:$0xff]
          %v824 = vlaneseq
          %v825 = vand.u32 %v824, 127
          %826 = vset.pattern.permute.xlu0 0
          %827 = vperm.xlu0 %826, %v816
          %v828 = vpop.permute.xlu0 %827
          %829 = vset.pattern.permute.xlu0 0
          %830 = vperm.xlu0 %829, %v817
          %v831 = vpop.permute.xlu0 %830
          %832 = vset.pattern.permute.xlu0 0
          %833 = vperm.xlu0 %832, %v818
          %v834 = vpop.permute.xlu0 %833
          %835 = vset.pattern.permute.xlu0 0
          %836 = vperm.xlu0 %835, %v819
          %v837 = vpop.permute.xlu0 %836
          %838 = vset.pattern.permute.xlu0 0
          %839 = vperm.xlu0 %838, %v820
          %v840 = vpop.permute.xlu0 %839
          %841 = vset.pattern.permute.xlu0 0
          %842 = vperm.xlu0 %841, %v821
          %v843 = vpop.permute.xlu0 %842
          %844 = vset.pattern.permute.xlu0 0
          %845 = vperm.xlu0 %844, %v822
          %v846 = vpop.permute.xlu0 %845
          %847 = vset.pattern.permute.xlu0 0
          %848 = vperm.xlu0 %847, %v823
          %v849 = vpop.permute.xlu0 %848
          %vm850 = vcmp.eq.s32.totalorder %v825, %v828
          %vm851 = vcmp.eq.s32.totalorder %v825, %v831
          %vm852 = vcmp.eq.s32.totalorder %v825, %v834
          %vm853 = vcmp.eq.s32.totalorder %v825, %v837
          %vm854 = vcmp.eq.s32.totalorder %v825, %v840
          %vm855 = vcmp.eq.s32.totalorder %v825, %v843
          %vm856 = vcmp.eq.s32.totalorder %v825, %v846
          %vm857 = vcmp.eq.s32.totalorder %v825, %v849
          %v858 = vsel %vm850, 1, 0
          %v859 = vsel %vm851, 1, 0
          %v860 = vsel %vm852, 1, 0
          %v861 = vsel %vm853, 1, 0
          %v862 = vsel %vm854, 1, 0
          %v863 = vsel %vm855, 1, 0
          %v864 = vsel %vm856, 1, 0
          %v865 = vsel %vm857, 1, 0
          %v866 = vcvt.s32.f32 %v858
          %v867 = vcvt.s32.f32 %v859
          %v868 = vcvt.s32.f32 %v860
          %v869 = vcvt.s32.f32 %v861
          %v870 = vcvt.s32.f32 %v862
          %v871 = vcvt.s32.f32 %v863
          %v872 = vcvt.s32.f32 %v864
          %v873 = vcvt.s32.f32 %v865
          %v874 = vpack.c.bf16 %v867, %v866
          %v875 = vpack.c.bf16 %v869, %v868
          %v876 = vpack.c.bf16 %v871, %v870
          %v877 = vpack.c.bf16 %v873, %v872
          %v878 = vld [vmem:[%s1] sm:$0xf]
          %v879 = vld [vmem:[%s1 + $0x4] sm:$0xf]
          %v880 = vld [vmem:[%s1 + $0x8] sm:$0xf]
          %v881 = vld [vmem:[%s1 + $0xc] sm:$0xf]
          %v882 = vld [vmem:[%s1 + $0x10] sm:$0xf]
          %v883 = vld [vmem:[%s1 + $0x14] sm:$0xf]
          %v884 = vld [vmem:[%s1 + $0x18] sm:$0xf]
          %v885 = vld [vmem:[%s1 + $0x1c] sm:$0xf]
          %v886 = vld [vmem:[%s1 + $0x20] sm:$0xf]
          %v887 = vld [vmem:[%s1 + $0x24] sm:$0xf]
          %v888 = vld [vmem:[%s1 + $0x28] sm:$0xf]
          %v889 = vld [vmem:[%s1 + $0x2c] sm:$0xf]
          %v890 = vld [vmem:[%s1 + $0x30] sm:$0xf]
          %v891 = vld [vmem:[%s1 + $0x34] sm:$0xf]
          %v892 = vld [vmem:[%s1 + $0x38] sm:$0xf]
          %v893 = vld [vmem:[%s1 + $0x3c] sm:$0xf]
          %v894 = vld [vmem:[%s2] sm:$0xff]
          %v895 = vld [vmem:[%s2 + $0x8] sm:$0xff]
          %v896 = vld [vmem:[%s2 + $0x10] sm:$0xff]
          %v897 = vld [vmem:[%s2 + $0x18] sm:$0xff]
          %v898 = vld [vmem:[%s2 + $0x20] sm:$0xff]
          %v899 = vld [vmem:[%s2 + $0x28] sm:$0xff]
          %v900 = vld [vmem:[%s2 + $0x30] sm:$0xff]
          %v901 = vld [vmem:[%s2 + $0x38] sm:$0xff]
          %v918 = vunpack.c.l.b16 %v878
          %v919 = vunpack.c.l.b16 %v879
          %v920 = vunpack.c.l.b16 %v880
          %v921 = vunpack.c.l.b16 %v881
          %v922 = vunpack.c.l.b16 %v882
          %v923 = vunpack.c.l.b16 %v883
          %v924 = vunpack.c.l.b16 %v884
          %v925 = vunpack.c.l.b16 %v885
          %v926 = vunpack.c.l.b16 %v886
          %v927 = vunpack.c.l.b16 %v887
          %v928 = vunpack.c.l.b16 %v888
          %v929 = vunpack.c.l.b16 %v889
          %v930 = vunpack.c.l.b16 %v890
          %v931 = vunpack.c.l.b16 %v891
          %v932 = vunpack.c.l.b16 %v892
          %v933 = vunpack.c.l.b16 %v893
          %v934 = vpack.c.b16 %v919, %v918
          %v935 = vpack.c.b16 %v921, %v920
          %v936 = vpack.c.b16 %v923, %v922
          %v937 = vpack.c.b16 %v925, %v924
          %v938 = vpack.c.b16 %v927, %v926
          %v939 = vpack.c.b16 %v929, %v928
          %v940 = vpack.c.b16 %v931, %v930
          %v941 = vpack.c.b16 %v933, %v932
          %950 = vmatpush.bf16.msra.mxu0 %v941
          %951 = vmatpush.bf16.msra.mxu0 %v940
          %952 = vmatpush.bf16.msra.mxu0 %v939
          %953 = vmatpush.bf16.msra.mxu0 %v938
          %954 = vmatpush.bf16.msra.mxu0 %v937
          %955 = vmatpush.bf16.msra.mxu0 %v936
          %956 = vmatpush.bf16.msra.mxu0 %v935
          %957 = vmatpush.bf16.msra.mxu0 %v934
          %958 = vmatmul.bf16.gmra.mxu0 %v874
          %v959 = vpop.f32.mrf.mxu0
          %v960 = vadd.f32 %v894, %v959
          %v961 = vpop.f32.mrf.mxu0
          %v962 = vadd.f32 %v895, %v961
          %963 = vmatmul.bf16.gmra.mxu0 %v875
          %v964 = vpop.f32.mrf.mxu0
          %v965 = vadd.f32 %v896, %v964
          %v966 = vpop.f32.mrf.mxu0
          %v967 = vadd.f32 %v897, %v966
          %968 = vmatmul.bf16.gmra.mxu0 %v876
          %v969 = vpop.f32.mrf.mxu0
          %v970 = vadd.f32 %v898, %v969
          %v971 = vpop.f32.mrf.mxu0
          %v972 = vadd.f32 %v899, %v971
          %973 = vmatmul.bf16.gmra.mxu0 %v877
          %v974 = vpop.f32.mrf.mxu0
          %v975 = vadd.f32 %v900, %v974
          %v976 = vpop.f32.mrf.mxu0
          %v977 = vadd.f32 %v901, %v976
          %978 = vdwg.mxu0
          %vm979 = vcmask 261120
          %980 = vst.msk [vmem:[#allocation2] sm:$0xff] %vm979, %v960
          %981 = vst.msk [vmem:[#allocation2 + $0x8] sm:$0xff] %vm979, %v962
          %982 = vst.msk [vmem:[#allocation2 + $0x10] sm:$0xff] %vm979, %v965
          %983 = vst.msk [vmem:[#allocation2 + $0x18] sm:$0xff] %vm979, %v967
          %984 = vst.msk [vmem:[#allocation2 + $0x20] sm:$0xff] %vm979, %v970
          %985 = vst.msk [vmem:[#allocation2 + $0x28] sm:$0xff] %vm979, %v972
          %986 = vst.msk [vmem:[#allocation2 + $0x30] sm:$0xff] %vm979, %v975
          %987 = vst.msk [vmem:[#allocation2 + $0x38] sm:$0xff] %vm979, %v977
        $region100: #{_lambda_.1} parent=95 // pred_fallthru
          _
        %v988 = vld [vmem:[#allocation2] sm:$0xff]
        %v989 = vld [vmem:[#allocation2 + $0x8] sm:$0xff]
        %v990 = vld [vmem:[#allocation2 + $0x10] sm:$0xff]
        %v991 = vld [vmem:[#allocation2 + $0x18] sm:$0xff]
        %v992 = vld [vmem:[#allocation2 + $0x20] sm:$0xff]
        %v993 = vld [vmem:[#allocation2 + $0x28] sm:$0xff]
        %v994 = vld [vmem:[#allocation2 + $0x30] sm:$0xff]
        %v995 = vld [vmem:[#allocation2 + $0x38] sm:$0xff]
        %v996 = vpack.c.bf16 %v989, %v988
        %v997 = vpack.c.bf16 %v991, %v990
        %v998 = vpack.c.bf16 %v993, %v992
        %v999 = vpack.c.bf16 %v995, %v994
        %v1000 = vld [vmem:[%s769] sm:$0xf]
        %v1001 = vld [vmem:[%s769 + $0x4] sm:$0xf]
        %v1002 = vld [vmem:[%s769 + $0x8] sm:$0xf]
        %v1003 = vld [vmem:[%s769 + $0xc] sm:$0xf]
        %v1004 = vld [vmem:[%s772] sm:$0x1]
        %v1006 = vperm.slane %v1004, 0
        %v1012 = vunpack.c.l.b16 %v1000
        %v1013 = vunpack.c.l.b16 %v1001
        %v1014 = vunpack.c.l.b16 %v1002
        %v1015 = vunpack.c.l.b16 %v1003
        %v1016 = vpack.c.b16 %v1013, %v1012
        %v1017 = vpack.c.b16 %v1015, %v1014
        %vm1020 = vcmask 261120
        %v1022 = vsel %vm1020, %v996, 0
        %v1025 = vsel %vm1020, %v997, 0
        %v1028 = vsel %vm1020, %v998, 0
        %v1031 = vsel %vm1020, %v999, 0
        %1033 = vmatpush.bf16.msra.mxu0 0
        %1034 = vmatpush.bf16.msra.mxu0 0
        %1035 = vmatpush.bf16.msra.mxu0 0
        %1036 = vmatpush.bf16.msra.mxu0 0
        %1037 = vmatpush.bf16.msra.mxu0 0
        %1038 = vmatpush.bf16.msra.mxu0 0
        %1039 = vmatpush.bf16.msra.mxu0 %v1017
        %1040 = vmatpush.bf16.msra.mxu0 %v1016
        %1041 = vmatmul.bf16.gmra.mxu0 %v1022
        %v1042 = vpop.f32.mrf.mxu0
        %v1043 = vadd.f32 %v1006, %v1042
        %v1044 = vpop.f32.mrf.mxu0
        %v1045 = vadd.f32 %v1006, %v1044
        %1046 = vmatmul.bf16.gmra.mxu0 %v1025
        %v1047 = vpop.f32.mrf.mxu0
        %v1048 = vadd.f32 %v1006, %v1047
        %v1049 = vpop.f32.mrf.mxu0
        %v1050 = vadd.f32 %v1006, %v1049
        %1051 = vmatmul.bf16.gmra.mxu0 %v1028
        %v1052 = vpop.f32.mrf.mxu0
        %v1053 = vadd.f32 %v1006, %v1052
        %v1054 = vpop.f32.mrf.mxu0
        %v1055 = vadd.f32 %v1006, %v1054
        %1056 = vmatmul.bf16.gmra.mxu0 %v1031
        %v1057 = vpop.f32.mrf.mxu0
        %v1058 = vadd.f32 %v1006, %v1057
        %v1059 = vpop.f32.mrf.mxu0
        %v1060 = vadd.f32 %v1006, %v1059
        %1061 = vdwg.mxu0
        %v1062 = vpack.c.bf16 %v1043, %v1043
        %v1063 = vpack.c.bf16 %v1045, %v1045
        %v1064 = vpack.c.bf16 %v1048, %v1048
        %v1065 = vpack.c.bf16 %v1050, %v1050
        %v1066 = vpack.c.bf16 %v1053, %v1053
        %v1067 = vpack.c.bf16 %v1055, %v1055
        %v1068 = vpack.c.bf16 %v1058, %v1058
        %v1069 = vpack.c.bf16 %v1060, %v1060
        %1078 = vrot.lane.b32.xlu0 %v1062, 120
        %v1079 = vpop.permute.xlu0 %1078
        %1080 = vrot.lane.b32.xlu0 %v1063, 120
        %v1081 = vpop.permute.xlu0 %1080
        %1082 = vrot.lane.b32.xlu0 %v1064, 120
        %v1083 = vpop.permute.xlu0 %1082
        %1084 = vrot.lane.b32.xlu0 %v1065, 120
        %v1085 = vpop.permute.xlu0 %1084
        %1086 = vrot.lane.b32.xlu0 %v1066, 120
        %v1087 = vpop.permute.xlu0 %1086
        %1088 = vrot.lane.b32.xlu0 %v1067, 120
        %v1089 = vpop.permute.xlu0 %1088
        %1090 = vrot.lane.b32.xlu0 %v1068, 120
        %v1091 = vpop.permute.xlu0 %1090
        %1092 = vrot.lane.b32.xlu0 %v1069, 120
        %v1093 = vpop.permute.xlu0 %1092
        %1094 = vrot.lane.b32.xlu0 %v1062, 112
        %v1095 = vpop.permute.xlu0 %1094
        %1096 = vrot.lane.b32.xlu0 %v1063, 112
        %v1097 = vpop.permute.xlu0 %1096
        %1098 = vrot.lane.b32.xlu0 %v1064, 112
        %v1099 = vpop.permute.xlu0 %1098
        %1100 = vrot.lane.b32.xlu0 %v1065, 112
        %v1101 = vpop.permute.xlu0 %1100
        %1102 = vrot.lane.b32.xlu0 %v1066, 112
        %v1103 = vpop.permute.xlu0 %1102
        %1104 = vrot.lane.b32.xlu0 %v1067, 112
        %v1105 = vpop.permute.xlu0 %1104
        %1106 = vrot.lane.b32.xlu0 %v1068, 112
        %v1107 = vpop.permute.xlu0 %1106
        %1108 = vrot.lane.b32.xlu0 %v1069, 112
        %v1109 = vpop.permute.xlu0 %1108
        %1110 = vrot.lane.b32.xlu0 %v1062, 104
        %v1111 = vpop.permute.xlu0 %1110
        %1112 = vrot.lane.b32.xlu0 %v1063, 104
        %v1113 = vpop.permute.xlu0 %1112
        %1114 = vrot.lane.b32.xlu0 %v1064, 104
        %v1115 = vpop.permute.xlu0 %1114
        %1116 = vrot.lane.b32.xlu0 %v1065, 104
        %v1117 = vpop.permute.xlu0 %1116
        %1118 = vrot.lane.b32.xlu0 %v1066, 104
        %v1119 = vpop.permute.xlu0 %1118
        %1120 = vrot.lane.b32.xlu0 %v1067, 104
        %v1121 = vpop.permute.xlu0 %1120
        %1122 = vrot.lane.b32.xlu0 %v1068, 104
        %v1123 = vpop.permute.xlu0 %1122
        %1124 = vrot.lane.b32.xlu0 %v1069, 104
        %v1125 = vpop.permute.xlu0 %1124
        %v1126 = vunpack.c.l.b16 %v1062
        %v1127 = vunpack.c.l.b16 %v1063
        %v1128 = vunpack.c.l.b16 %v1064
        %v1129 = vunpack.c.l.b16 %v1065
        %v1130 = vunpack.c.l.b16 %v1066
        %v1131 = vunpack.c.l.b16 %v1067
        %v1132 = vunpack.c.l.b16 %v1068
        %v1133 = vunpack.c.l.b16 %v1069
        %v1134 = vpack.c.b16 %v1127, %v1126
        %v1135 = vpack.c.b16 %v1129, %v1128
        %v1136 = vpack.c.b16 %v1131, %v1130
        %v1137 = vpack.c.b16 %v1133, %v1132
        %1138 = vrot.lane.b32.xlu0 %v1134, 96
        %v1139 = vpop.permute.xlu0 %1138
        %1140 = vrot.lane.b32.xlu0 %v1135, 96
        %v1141 = vpop.permute.xlu0 %1140
        %1142 = vrot.lane.b32.xlu0 %v1136, 96
        %v1143 = vpop.permute.xlu0 %1142
        %1144 = vrot.lane.b32.xlu0 %v1137, 96
        %v1145 = vpop.permute.xlu0 %1144
        %vm1146 = vcmask 64512
        %v1148 = vsel %vm1146, %v1134, 0
        %v1151 = vsel %vm1146, %v1135, 0
        %v1154 = vsel %vm1146, %v1136, 0
        %v1157 = vsel %vm1146, %v1137, 0
        %v1160 = vsel %vm1146, %v1139, 0
        %v1163 = vsel %vm1146, %v1141, 0
        %v1166 = vsel %vm1146, %v1143, 0
        %v1169 = vsel %vm1146, %v1145, 0
        %1171 = vmatpush.bf16.xpose.msra.mxu0 0
        %1172 = vmatpush.bf16.xpose.msra.mxu0 0
        %1173 = vmatpush.bf16.xpose.msra.mxu0 0
        %1174 = vmatpush.bf16.xpose.msra.mxu0 0
        %1175 = vmatpush.bf16.xpose.msra.mxu0 %v1169
        %1176 = vmatpush.bf16.xpose.msra.mxu0 %v1166
        %1177 = vmatpush.bf16.xpose.msra.mxu0 %v1163
        %1178 = vmatpush.bf16.xpose.msra.mxu0 %v1160
        %1179 = vmatmul.bf16.gmra.mxu0 %v1148
        %v1180 = vpop.f32.mrf.mxu0
        %v1181 = vadd.f32 0.0, %v1180
        %v1182 = vpop.f32.mrf.mxu0
        %v1183 = vadd.f32 0.0, %v1182
        %1184 = vmatmul.bf16.gmra.mxu0 %v1151
        %v1185 = vpop.f32.mrf.mxu0
        %v1186 = vadd.f32 0.0, %v1185
        %v1187 = vpop.f32.mrf.mxu0
        %v1188 = vadd.f32 0.0, %v1187
        %1189 = vmatmul.bf16.gmra.mxu0 %v1154
        %v1190 = vpop.f32.mrf.mxu0
        %v1191 = vadd.f32 0.0, %v1190
        %v1192 = vpop.f32.mrf.mxu0
        %v1193 = vadd.f32 0.0, %v1192
        %1194 = vmatmul.bf16.gmra.mxu0 %v1157
        %v1195 = vpop.f32.mrf.mxu0
        %v1196 = vadd.f32 0.0, %v1195
        %v1197 = vpop.f32.mrf.mxu0
        %v1198 = vadd.f32 0.0, %v1197
        %1199 = vdwg.mxu0
        %v1200 = vunpack.c.l.b16 %v1079
        %v1201 = vunpack.c.l.b16 %v1081
        %v1202 = vunpack.c.l.b16 %v1083
        %v1203 = vunpack.c.l.b16 %v1085
        %v1204 = vunpack.c.l.b16 %v1087
        %v1205 = vunpack.c.l.b16 %v1089
        %v1206 = vunpack.c.l.b16 %v1091
        %v1207 = vunpack.c.l.b16 %v1093
        %v1208 = vpack.c.b16 %v1201, %v1200
        %v1209 = vpack.c.b16 %v1203, %v1202
        %v1210 = vpack.c.b16 %v1205, %v1204
        %v1211 = vpack.c.b16 %v1207, %v1206
        %1212 = vrot.lane.b32.xlu0 %v1208, 96
        %v1213 = vpop.permute.xlu0 %1212
        %1214 = vrot.lane.b32.xlu0 %v1209, 96
        %v1215 = vpop.permute.xlu0 %1214
        %1216 = vrot.lane.b32.xlu0 %v1210, 96
        %v1217 = vpop.permute.xlu0 %1216
        %1218 = vrot.lane.b32.xlu0 %v1211, 96
        %v1219 = vpop.permute.xlu0 %1218
        %v1221 = vsel %vm1146, %v1208, 0
        %v1224 = vsel %vm1146, %v1209, 0
        %v1227 = vsel %vm1146, %v1210, 0
        %v1230 = vsel %vm1146, %v1211, 0
        %v1233 = vsel %vm1146, %v1213, 0
        %v1236 = vsel %vm1146, %v1215, 0
        %v1239 = vsel %vm1146, %v1217, 0
        %v1242 = vsel %vm1146, %v1219, 0
        %1244 = vmatpush.bf16.xpose.msra.mxu0 0
        %1245 = vmatpush.bf16.xpose.msra.mxu0 0
        %1246 = vmatpush.bf16.xpose.msra.mxu0 0
        %1247 = vmatpush.bf16.xpose.msra.mxu0 0
        %1248 = vmatpush.bf16.xpose.msra.mxu0 %v1242
        %1249 = vmatpush.bf16.xpose.msra.mxu0 %v1239
        %1250 = vmatpush.bf16.xpose.msra.mxu0 %v1236
        %1251 = vmatpush.bf16.xpose.msra.mxu0 %v1233
        %1252 = vmatmul.bf16.gmra.mxu0 %v1221
        %v1253 = vpop.f32.mrf.mxu0
        %v1254 = vadd.f32 0.0, %v1253
        %v1255 = vpop.f32.mrf.mxu0
        %v1256 = vadd.f32 0.0, %v1255
        %1257 = vmatmul.bf16.gmra.mxu0 %v1224
        %v1258 = vpop.f32.mrf.mxu0
        %v1259 = vadd.f32 0.0, %v1258
        %v1260 = vpop.f32.mrf.mxu0
        %v1261 = vadd.f32 0.0, %v1260
        %1262 = vmatmul.bf16.gmra.mxu0 %v1227
        %v1263 = vpop.f32.mrf.mxu0
        %v1264 = vadd.f32 0.0, %v1263
        %v1265 = vpop.f32.mrf.mxu0
        %v1266 = vadd.f32 0.0, %v1265
        %1267 = vmatmul.bf16.gmra.mxu0 %v1230
        %v1268 = vpop.f32.mrf.mxu0
        %v1269 = vadd.f32 0.0, %v1268
        %v1270 = vpop.f32.mrf.mxu0
        %v1271 = vadd.f32 0.0, %v1270
        %1272 = vdwg.mxu0
        %v1273 = vunpack.c.l.b16 %v1095
        %v1274 = vunpack.c.l.b16 %v1097
        %v1275 = vunpack.c.l.b16 %v1099
        %v1276 = vunpack.c.l.b16 %v1101
        %v1277 = vunpack.c.l.b16 %v1103
        %v1278 = vunpack.c.l.b16 %v1105
        %v1279 = vunpack.c.l.b16 %v1107
        %v1280 = vunpack.c.l.b16 %v1109
        %v1281 = vpack.c.b16 %v1274, %v1273
        %v1282 = vpack.c.b16 %v1276, %v1275
        %v1283 = vpack.c.b16 %v1278, %v1277
        %v1284 = vpack.c.b16 %v1280, %v1279
        %1285 = vrot.lane.b32.xlu0 %v1281, 96
        %v1286 = vpop.permute.xlu0 %1285
        %1287 = vrot.lane.b32.xlu0 %v1282, 96
        %v1288 = vpop.permute.xlu0 %1287
        %1289 = vrot.lane.b32.xlu0 %v1283, 96
        %v1290 = vpop.permute.xlu0 %1289
        %1291 = vrot.lane.b32.xlu0 %v1284, 96
        %v1292 = vpop.permute.xlu0 %1291
        %v1294 = vsel %vm1146, %v1281, 0
        %v1297 = vsel %vm1146, %v1282, 0
        %v1300 = vsel %vm1146, %v1283, 0
        %v1303 = vsel %vm1146, %v1284, 0
        %v1306 = vsel %vm1146, %v1286, 0
        %v1309 = vsel %vm1146, %v1288, 0
        %v1312 = vsel %vm1146, %v1290, 0
        %v1315 = vsel %vm1146, %v1292, 0
        %1317 = vmatpush.bf16.xpose.msra.mxu0 0
        %1318 = vmatpush.bf16.xpose.msra.mxu0 0
        %1319 = vmatpush.bf16.xpose.msra.mxu0 0
        %1320 = vmatpush.bf16.xpose.msra.mxu0 0
        %1321 = vmatpush.bf16.xpose.msra.mxu0 %v1315
        %1322 = vmatpush.bf16.xpose.msra.mxu0 %v1312
        %1323 = vmatpush.bf16.xpose.msra.mxu0 %v1309
        %1324 = vmatpush.bf16.xpose.msra.mxu0 %v1306
        %1325 = vmatmul.bf16.gmra.mxu0 %v1294
        %v1326 = vpop.f32.mrf.mxu0
        %v1327 = vadd.f32 0.0, %v1326
        %v1328 = vpop.f32.mrf.mxu0
        %v1329 = vadd.f32 0.0, %v1328
        %1330 = vmatmul.bf16.gmra.mxu0 %v1297
        %v1331 = vpop.f32.mrf.mxu0
        %v1332 = vadd.f32 0.0, %v1331
        %v1333 = vpop.f32.mrf.mxu0
        %v1334 = vadd.f32 0.0, %v1333
        %1335 = vmatmul.bf16.gmra.mxu0 %v1300
        %v1336 = vpop.f32.mrf.mxu0
        %v1337 = vadd.f32 0.0, %v1336
        %v1338 = vpop.f32.mrf.mxu0
        %v1339 = vadd.f32 0.0, %v1338
        %1340 = vmatmul.bf16.gmra.mxu0 %v1303
        %v1341 = vpop.f32.mrf.mxu0
        %v1342 = vadd.f32 0.0, %v1341
        %v1343 = vpop.f32.mrf.mxu0
        %v1344 = vadd.f32 0.0, %v1343
        %1345 = vdwg.mxu0
        %v1346 = vunpack.c.l.b16 %v1111
        %v1347 = vunpack.c.l.b16 %v1113
        %v1348 = vunpack.c.l.b16 %v1115
        %v1349 = vunpack.c.l.b16 %v1117
        %v1350 = vunpack.c.l.b16 %v1119
        %v1351 = vunpack.c.l.b16 %v1121
        %v1352 = vunpack.c.l.b16 %v1123
        %v1353 = vunpack.c.l.b16 %v1125
        %v1354 = vpack.c.b16 %v1347, %v1346
        %v1355 = vpack.c.b16 %v1349, %v1348
        %v1356 = vpack.c.b16 %v1351, %v1350
        %v1357 = vpack.c.b16 %v1353, %v1352
        %1358 = vrot.lane.b32.xlu0 %v1354, 96
        %v1359 = vpop.permute.xlu0 %1358
        %1360 = vrot.lane.b32.xlu0 %v1355, 96
        %v1361 = vpop.permute.xlu0 %1360
        %1362 = vrot.lane.b32.xlu0 %v1356, 96
        %v1363 = vpop.permute.xlu0 %1362
        %1364 = vrot.lane.b32.xlu0 %v1357, 96
        %v1365 = vpop.permute.xlu0 %1364
        %v1367 = vsel %vm1146, %v1354, 0
        %v1370 = vsel %vm1146, %v1355, 0
        %v1373 = vsel %vm1146, %v1356, 0
        %v1376 = vsel %vm1146, %v1357, 0
        %v1379 = vsel %vm1146, %v1359, 0
        %v1382 = vsel %vm1146, %v1361, 0
        %v1385 = vsel %vm1146, %v1363, 0
        %v1388 = vsel %vm1146, %v1365, 0
        %1390 = vmatpush.bf16.xpose.msra.mxu0 0
        %1391 = vmatpush.bf16.xpose.msra.mxu0 0
        %1392 = vmatpush.bf16.xpose.msra.mxu0 0
        %1393 = vmatpush.bf16.xpose.msra.mxu0 0
        %1394 = vmatpush.bf16.xpose.msra.mxu0 %v1388
        %1395 = vmatpush.bf16.xpose.msra.mxu0 %v1385
        %1396 = vmatpush.bf16.xpose.msra.mxu0 %v1382
        %1397 = vmatpush.bf16.xpose.msra.mxu0 %v1379
        %1398 = vmatmul.bf16.gmra.mxu0 %v1367
        %v1399 = vpop.f32.mrf.mxu0
        %v1400 = vadd.f32 0.0, %v1399
        %v1401 = vpop.f32.mrf.mxu0
        %v1402 = vadd.f32 0.0, %v1401
        %1403 = vmatmul.bf16.gmra.mxu0 %v1370
        %v1404 = vpop.f32.mrf.mxu0
        %v1405 = vadd.f32 0.0, %v1404
        %v1406 = vpop.f32.mrf.mxu0
        %v1407 = vadd.f32 0.0, %v1406
        %1408 = vmatmul.bf16.gmra.mxu0 %v1373
        %v1409 = vpop.f32.mrf.mxu0
        %v1410 = vadd.f32 0.0, %v1409
        %v1411 = vpop.f32.mrf.mxu0
        %v1412 = vadd.f32 0.0, %v1411
        %1413 = vmatmul.bf16.gmra.mxu0 %v1376
        %v1414 = vpop.f32.mrf.mxu0
        %v1415 = vadd.f32 0.0, %v1414
        %v1416 = vpop.f32.mrf.mxu0
        %v1417 = vadd.f32 0.0, %v1416
        %1418 = vdwg.mxu0
        %vm1419 = vcmask 523264
        %v1420 = vsel %vm1419, %v1181, -inf
        %1421 = vmax.xlane.f32.xlu0 %v1420
        %v1422 = vpop.xlane.xlu0 %1421
        %v1423 = vsel %vm1419, %v1183, -inf
        %1424 = vmax.xlane.f32.xlu0 %v1423
        %v1425 = vpop.xlane.xlu0 %1424
        %v1426 = vsel %vm1419, %v1186, -inf
        %1427 = vmax.xlane.f32.xlu0 %v1426
        %v1428 = vpop.xlane.xlu0 %1427
        %v1429 = vsel %vm1419, %v1188, -inf
        %1430 = vmax.xlane.f32.xlu0 %v1429
        %v1431 = vpop.xlane.xlu0 %1430
        %v1432 = vsel %vm1419, %v1191, -inf
        %1433 = vmax.xlane.f32.xlu0 %v1432
        %v1434 = vpop.xlane.xlu0 %1433
        %v1435 = vsel %vm1419, %v1193, -inf
        %1436 = vmax.xlane.f32.xlu0 %v1435
        %v1437 = vpop.xlane.xlu0 %1436
        %v1438 = vsel %vm1419, %v1196, -inf
        %1439 = vmax.xlane.f32.xlu0 %v1438
        %v1440 = vpop.xlane.xlu0 %1439
        %v1441 = vsel %vm1419, %v1198, -inf
        %1442 = vmax.xlane.f32.xlu0 %v1441
        %v1443 = vpop.xlane.xlu0 %1442
        %v1444 = vsel %vm1419, %v1254, -inf
        %1445 = vmax.xlane.f32.xlu0 %v1444
        %v1446 = vpop.xlane.xlu0 %1445
        %v1447 = vsel %vm1419, %v1256, -inf
        %1448 = vmax.xlane.f32.xlu0 %v1447
        %v1449 = vpop.xlane.xlu0 %1448
        %v1450 = vsel %vm1419, %v1259, -inf
        %1451 = vmax.xlane.f32.xlu0 %v1450
        %v1452 = vpop.xlane.xlu0 %1451
        %v1453 = vsel %vm1419, %v1261, -inf
        %1454 = vmax.xlane.f32.xlu0 %v1453
        %v1455 = vpop.xlane.xlu0 %1454
        %v1456 = vsel %vm1419, %v1264, -inf
        %1457 = vmax.xlane.f32.xlu0 %v1456
        %v1458 = vpop.xlane.xlu0 %1457
        %v1459 = vsel %vm1419, %v1266, -inf
        %1460 = vmax.xlane.f32.xlu0 %v1459
        %v1461 = vpop.xlane.xlu0 %1460
        %v1462 = vsel %vm1419, %v1269, -inf
        %1463 = vmax.xlane.f32.xlu0 %v1462
        %v1464 = vpop.xlane.xlu0 %1463
        %v1465 = vsel %vm1419, %v1271, -inf
        %1466 = vmax.xlane.f32.xlu0 %v1465
        %v1467 = vpop.xlane.xlu0 %1466
        %v1468 = vsel %vm1419, %v1327, -inf
        %1469 = vmax.xlane.f32.xlu0 %v1468
        %v1470 = vpop.xlane.xlu0 %1469
        %v1471 = vsel %vm1419, %v1329, -inf
        %1472 = vmax.xlane.f32.xlu0 %v1471
        %v1473 = vpop.xlane.xlu0 %1472
        %v1474 = vsel %vm1419, %v1332, -inf
        %1475 = vmax.xlane.f32.xlu0 %v1474
        %v1476 = vpop.xlane.xlu0 %1475
        %v1477 = vsel %vm1419, %v1334, -inf
        %1478 = vmax.xlane.f32.xlu0 %v1477
        %v1479 = vpop.xlane.xlu0 %1478
        %v1480 = vsel %vm1419, %v1337, -inf
        %1481 = vmax.xlane.f32.xlu0 %v1480
        %v1482 = vpop.xlane.xlu0 %1481
        %v1483 = vsel %vm1419, %v1339, -inf
        %1484 = vmax.xlane.f32.xlu0 %v1483
        %v1485 = vpop.xlane.xlu0 %1484
        %v1486 = vsel %vm1419, %v1342, -inf
        %1487 = vmax.xlane.f32.xlu0 %v1486
        %v1488 = vpop.xlane.xlu0 %1487
        %v1489 = vsel %vm1419, %v1344, -inf
        %1490 = vmax.xlane.f32.xlu0 %v1489
        %v1491 = vpop.xlane.xlu0 %1490
        %v1492 = vsel %vm1419, %v1400, -inf
        %1493 = vmax.xlane.f32.xlu0 %v1492
        %v1494 = vpop.xlane.xlu0 %1493
        %v1495 = vsel %vm1419, %v1402, -inf
        %1496 = vmax.xlane.f32.xlu0 %v1495
        %v1497 = vpop.xlane.xlu0 %1496
        %v1498 = vsel %vm1419, %v1405, -inf
        %1499 = vmax.xlane.f32.xlu0 %v1498
        %v1500 = vpop.xlane.xlu0 %1499
        %v1501 = vsel %vm1419, %v1407, -inf
        %1502 = vmax.xlane.f32.xlu0 %v1501
        %v1503 = vpop.xlane.xlu0 %1502
        %v1504 = vsel %vm1419, %v1410, -inf
        %1505 = vmax.xlane.f32.xlu0 %v1504
        %v1506 = vpop.xlane.xlu0 %1505
        %v1507 = vsel %vm1419, %v1412, -inf
        %1508 = vmax.xlane.f32.xlu0 %v1507
        %v1509 = vpop.xlane.xlu0 %1508
        %v1510 = vsel %vm1419, %v1415, -inf
        %1511 = vmax.xlane.f32.xlu0 %v1510
        %v1512 = vpop.xlane.xlu0 %1511
        %v1513 = vsel %vm1419, %v1417, -inf
        %1514 = vmax.xlane.f32.xlu0 %v1513
        %v1515 = vpop.xlane.xlu0 %1514
        %v1516 = vsub.f32 %v1181, %v1422
        %v1517 = vsub.f32 %v1183, %v1425
        %v1518 = vsub.f32 %v1186, %v1428
        %v1519 = vsub.f32 %v1188, %v1431
        %v1520 = vsub.f32 %v1191, %v1434
        %v1521 = vsub.f32 %v1193, %v1437
        %v1522 = vsub.f32 %v1196, %v1440
        %v1523 = vsub.f32 %v1198, %v1443
        %v1524 = vsub.f32 %v1254, %v1446
        %v1525 = vsub.f32 %v1256, %v1449
        %v1526 = vsub.f32 %v1259, %v1452
        %v1527 = vsub.f32 %v1261, %v1455
        %v1528 = vsub.f32 %v1264, %v1458
        %v1529 = vsub.f32 %v1266, %v1461
        %v1530 = vsub.f32 %v1269, %v1464
        %v1531 = vsub.f32 %v1271, %v1467
        %v1532 = vsub.f32 %v1327, %v1470
        %v1533 = vsub.f32 %v1329, %v1473
        %v1534 = vsub.f32 %v1332, %v1476
        %v1535 = vsub.f32 %v1334, %v1479
        %v1536 = vsub.f32 %v1337, %v1482
        %v1537 = vsub.f32 %v1339, %v1485
        %v1538 = vsub.f32 %v1342, %v1488
        %v1539 = vsub.f32 %v1344, %v1491
        %v1540 = vsub.f32 %v1400, %v1494
        %v1541 = vsub.f32 %v1402, %v1497
        %v1542 = vsub.f32 %v1405, %v1500
        %v1543 = vsub.f32 %v1407, %v1503
        %v1544 = vsub.f32 %v1410, %v1506
        %v1545 = vsub.f32 %v1412, %v1509
        %v1546 = vsub.f32 %v1415, %v1512
        %v1547 = vsub.f32 %v1417, %v1515
        %v1548 = vmul.f32 %v1516, 1.442695
        %v1549 = vpow.pop %v1548
        %v1550 = vmul.f32 %v1517, 1.442695
        %v1551 = vpow.pop %v1550
        %v1552 = vmul.f32 %v1518, 1.442695
        %v1553 = vpow.pop %v1552
        %v1554 = vmul.f32 %v1519, 1.442695
        %v1555 = vpow.pop %v1554
        %v1556 = vmul.f32 %v1520, 1.442695
        %v1557 = vpow.pop %v1556
        %v1558 = vmul.f32 %v1521, 1.442695
        %v1559 = vpow.pop %v1558
        %v1560 = vmul.f32 %v1522, 1.442695
        %v1561 = vpow.pop %v1560
        %v1562 = vmul.f32 %v1523, 1.442695
        %v1563 = vpow.pop %v1562
        %v1564 = vmul.f32 %v1524, 1.442695
        %v1565 = vpow.pop %v1564
        %v1566 = vmul.f32 %v1525, 1.442695
        %v1567 = vpow.pop %v1566
        %v1568 = vmul.f32 %v1526, 1.442695
        %v1569 = vpow.pop %v1568
        %v1570 = vmul.f32 %v1527, 1.442695
        %v1571 = vpow.pop %v1570
        %v1572 = vmul.f32 %v1528, 1.442695
        %v1573 = vpow.pop %v1572
        %v1574 = vmul.f32 %v1529, 1.442695
        %v1575 = vpow.pop %v1574
        %v1576 = vmul.f32 %v1530, 1.442695
        %v1577 = vpow.pop %v1576
        %v1578 = vmul.f32 %v1531, 1.442695
        %v1579 = vpow.pop %v1578
        %v1580 = vmul.f32 %v1532, 1.442695
        %v1581 = vpow.pop %v1580
        %v1582 = vmul.f32 %v1533, 1.442695
        %v1583 = vpow.pop %v1582
        %v1584 = vmul.f32 %v1534, 1.442695
        %v1585 = vpow.pop %v1584
        %v1586 = vmul.f32 %v1535, 1.442695
        %v1587 = vpow.pop %v1586
        %v1588 = vmul.f32 %v1536, 1.442695
        %v1589 = vpow.pop %v1588
        %v1590 = vmul.f32 %v1537, 1.442695
        %v1591 = vpow.pop %v1590
        %v1592 = vmul.f32 %v1538, 1.442695
        %v1593 = vpow.pop %v1592
        %v1594 = vmul.f32 %v1539, 1.442695
        %v1595 = vpow.pop %v1594
        %v1596 = vmul.f32 %v1540, 1.442695
        %v1597 = vpow.pop %v1596
        %v1598 = vmul.f32 %v1541, 1.442695
        %v1599 = vpow.pop %v1598
        %v1600 = vmul.f32 %v1542, 1.442695
        %v1601 = vpow.pop %v1600
        %v1602 = vmul.f32 %v1543, 1.442695
        %v1603 = vpow.pop %v1602
        %v1604 = vmul.f32 %v1544, 1.442695
        %v1605 = vpow.pop %v1604
        %v1606 = vmul.f32 %v1545, 1.442695
        %v1607 = vpow.pop %v1606
        %v1608 = vmul.f32 %v1546, 1.442695
        %v1609 = vpow.pop %v1608
        %v1610 = vmul.f32 %v1547, 1.442695
        %v1611 = vpow.pop %v1610
        %v1612 = vsel %vm1419, %v1549, 0.0
        %1613 = vadd.xlane.f32.xlu0 %v1612
        %v1614 = vpop.xlane.xlu0 %1613
        %v1615 = vsel %vm1419, %v1551, 0.0
        %1616 = vadd.xlane.f32.xlu0 %v1615
        %v1617 = vpop.xlane.xlu0 %1616
        %v1618 = vsel %vm1419, %v1553, 0.0
        %1619 = vadd.xlane.f32.xlu0 %v1618
        %v1620 = vpop.xlane.xlu0 %1619
        %v1621 = vsel %vm1419, %v1555, 0.0
        %1622 = vadd.xlane.f32.xlu0 %v1621
        %v1623 = vpop.xlane.xlu0 %1622
        %v1624 = vsel %vm1419, %v1557, 0.0
        %1625 = vadd.xlane.f32.xlu0 %v1624
        %v1626 = vpop.xlane.xlu0 %1625
        %v1627 = vsel %vm1419, %v1559, 0.0
        %1628 = vadd.xlane.f32.xlu0 %v1627
        %v1629 = vpop.xlane.xlu0 %1628
        %v1630 = vsel %vm1419, %v1561, 0.0
        %1631 = vadd.xlane.f32.xlu0 %v1630
        %v1632 = vpop.xlane.xlu0 %1631
        %v1633 = vsel %vm1419, %v1563, 0.0
        %1634 = vadd.xlane.f32.xlu0 %v1633
        %v1635 = vpop.xlane.xlu0 %1634
        %v1636 = vsel %vm1419, %v1565, 0.0
        %1637 = vadd.xlane.f32.xlu0 %v1636
        %v1638 = vpop.xlane.xlu0 %1637
        %v1639 = vsel %vm1419, %v1567, 0.0
        %1640 = vadd.xlane.f32.xlu0 %v1639
        %v1641 = vpop.xlane.xlu0 %1640
        %v1642 = vsel %vm1419, %v1569, 0.0
        %1643 = vadd.xlane.f32.xlu0 %v1642
        %v1644 = vpop.xlane.xlu0 %1643
        %v1645 = vsel %vm1419, %v1571, 0.0
        %1646 = vadd.xlane.f32.xlu0 %v1645
        %v1647 = vpop.xlane.xlu0 %1646
        %v1648 = vsel %vm1419, %v1573, 0.0
        %1649 = vadd.xlane.f32.xlu0 %v1648
        %v1650 = vpop.xlane.xlu0 %1649
        %v1651 = vsel %vm1419, %v1575, 0.0
        %1652 = vadd.xlane.f32.xlu0 %v1651
        %v1653 = vpop.xlane.xlu0 %1652
        %v1654 = vsel %vm1419, %v1577, 0.0
        %1655 = vadd.xlane.f32.xlu0 %v1654
        %v1656 = vpop.xlane.xlu0 %1655
        %v1657 = vsel %vm1419, %v1579, 0.0
        %1658 = vadd.xlane.f32.xlu0 %v1657
        %v1659 = vpop.xlane.xlu0 %1658
        %v1660 = vsel %vm1419, %v1581, 0.0
        %1661 = vadd.xlane.f32.xlu0 %v1660
        %v1662 = vpop.xlane.xlu0 %1661
        %v1663 = vsel %vm1419, %v1583, 0.0
        %1664 = vadd.xlane.f32.xlu0 %v1663
        %v1665 = vpop.xlane.xlu0 %1664
        %v1666 = vsel %vm1419, %v1585, 0.0
        %1667 = vadd.xlane.f32.xlu0 %v1666
        %v1668 = vpop.xlane.xlu0 %1667
        %v1669 = vsel %vm1419, %v1587, 0.0
        %1670 = vadd.xlane.f32.xlu0 %v1669
        %v1671 = vpop.xlane.xlu0 %1670
        %v1672 = vsel %vm1419, %v1589, 0.0
        %1673 = vadd.xlane.f32.xlu0 %v1672
        %v1674 = vpop.xlane.xlu0 %1673
        %v1675 = vsel %vm1419, %v1591, 0.0
        %1676 = vadd.xlane.f32.xlu0 %v1675
        %v1677 = vpop.xlane.xlu0 %1676
        %v1678 = vsel %vm1419, %v1593, 0.0
        %1679 = vadd.xlane.f32.xlu0 %v1678
        %v1680 = vpop.xlane.xlu0 %1679
        %v1681 = vsel %vm1419, %v1595, 0.0
        %1682 = vadd.xlane.f32.xlu0 %v1681
        %v1683 = vpop.xlane.xlu0 %1682
        %v1684 = vsel %vm1419, %v1597, 0.0
        %1685 = vadd.xlane.f32.xlu0 %v1684
        %v1686 = vpop.xlane.xlu0 %1685
        %v1687 = vsel %vm1419, %v1599, 0.0
        %1688 = vadd.xlane.f32.xlu0 %v1687
        %v1689 = vpop.xlane.xlu0 %1688
        %v1690 = vsel %vm1419, %v1601, 0.0
        %1691 = vadd.xlane.f32.xlu0 %v1690
        %v1692 = vpop.xlane.xlu0 %1691
        %v1693 = vsel %vm1419, %v1603, 0.0
        %1694 = vadd.xlane.f32.xlu0 %v1693
        %v1695 = vpop.xlane.xlu0 %1694
        %v1696 = vsel %vm1419, %v1605, 0.0
        %1697 = vadd.xlane.f32.xlu0 %v1696
        %v1698 = vpop.xlane.xlu0 %1697
        %v1699 = vsel %vm1419, %v1607, 0.0
        %1700 = vadd.xlane.f32.xlu0 %v1699
        %v1701 = vpop.xlane.xlu0 %1700
        %v1702 = vsel %vm1419, %v1609, 0.0
        %1703 = vadd.xlane.f32.xlu0 %v1702
        %v1704 = vpop.xlane.xlu0 %1703
        %v1705 = vsel %vm1419, %v1611, 0.0
        %1706 = vadd.xlane.f32.xlu0 %v1705
        %v1707 = vpop.xlane.xlu0 %1706
        %v1708 = vrcp.pop %v1614
        %v1709 = vrcp.pop %v1617
        %v1710 = vrcp.pop %v1620
        %v1711 = vrcp.pop %v1623
        %v1712 = vrcp.pop %v1626
        %v1713 = vrcp.pop %v1629
        %v1714 = vrcp.pop %v1632
        %v1715 = vrcp.pop %v1635
        %v1716 = vrcp.pop %v1638
        %v1717 = vrcp.pop %v1641
        %v1718 = vrcp.pop %v1644
        %v1719 = vrcp.pop %v1647
        %v1720 = vrcp.pop %v1650
        %v1721 = vrcp.pop %v1653
        %v1722 = vrcp.pop %v1656
        %v1723 = vrcp.pop %v1659
        %v1724 = vrcp.pop %v1662
        %v1725 = vrcp.pop %v1665
        %v1726 = vrcp.pop %v1668
        %v1727 = vrcp.pop %v1671
        %v1728 = vrcp.pop %v1674
        %v1729 = vrcp.pop %v1677
        %v1730 = vrcp.pop %v1680
        %v1731 = vrcp.pop %v1683
        %v1732 = vrcp.pop %v1686
        %v1733 = vrcp.pop %v1689
        %v1734 = vrcp.pop %v1692
        %v1735 = vrcp.pop %v1695
        %v1736 = vrcp.pop %v1698
        %v1737 = vrcp.pop %v1701
        %v1738 = vrcp.pop %v1704
        %v1739 = vrcp.pop %v1707
        %v1740 = vmul.f32 %v1549, %v1708
        %v1741 = vmul.f32 %v1551, %v1709
        %v1742 = vmul.f32 %v1553, %v1710
        %v1743 = vmul.f32 %v1555, %v1711
        %v1744 = vmul.f32 %v1557, %v1712
        %v1745 = vmul.f32 %v1559, %v1713
        %v1746 = vmul.f32 %v1561, %v1714
        %v1747 = vmul.f32 %v1563, %v1715
        %v1748 = vmul.f32 %v1565, %v1716
        %v1749 = vmul.f32 %v1567, %v1717
        %v1750 = vmul.f32 %v1569, %v1718
        %v1751 = vmul.f32 %v1571, %v1719
        %v1752 = vmul.f32 %v1573, %v1720
        %v1753 = vmul.f32 %v1575, %v1721
        %v1754 = vmul.f32 %v1577, %v1722
        %v1755 = vmul.f32 %v1579, %v1723
        %v1756 = vmul.f32 %v1581, %v1724
        %v1757 = vmul.f32 %v1583, %v1725
        %v1758 = vmul.f32 %v1585, %v1726
        %v1759 = vmul.f32 %v1587, %v1727
        %v1760 = vmul.f32 %v1589, %v1728
        %v1761 = vmul.f32 %v1591, %v1729
        %v1762 = vmul.f32 %v1593, %v1730
        %v1763 = vmul.f32 %v1595, %v1731
        %v1764 = vmul.f32 %v1597, %v1732
        %v1765 = vmul.f32 %v1599, %v1733
        %v1766 = vmul.f32 %v1601, %v1734
        %v1767 = vmul.f32 %v1603, %v1735
        %v1768 = vmul.f32 %v1605, %v1736
        %v1769 = vmul.f32 %v1607, %v1737
        %v1770 = vmul.f32 %v1609, %v1738
        %v1771 = vmul.f32 %v1611, %v1739
        %v1772 = vpack.c.bf16 %v1740, %v1740
        %v1773 = vpack.c.bf16 %v1741, %v1741
        %v1774 = vpack.c.bf16 %v1742, %v1742
        %v1775 = vpack.c.bf16 %v1743, %v1743
        %v1776 = vpack.c.bf16 %v1744, %v1744
        %v1777 = vpack.c.bf16 %v1745, %v1745
        %v1778 = vpack.c.bf16 %v1746, %v1746
        %v1779 = vpack.c.bf16 %v1747, %v1747
        %v1780 = vpack.c.bf16 %v1748, %v1748
        %v1781 = vpack.c.bf16 %v1749, %v1749
        %v1782 = vpack.c.bf16 %v1750, %v1750
        %v1783 = vpack.c.bf16 %v1751, %v1751
        %v1784 = vpack.c.bf16 %v1752, %v1752
        %v1785 = vpack.c.bf16 %v1753, %v1753
        %v1786 = vpack.c.bf16 %v1754, %v1754
        %v1787 = vpack.c.bf16 %v1755, %v1755
        %v1788 = vpack.c.bf16 %v1756, %v1756
        %v1789 = vpack.c.bf16 %v1757, %v1757
        %v1790 = vpack.c.bf16 %v1758, %v1758
        %v1791 = vpack.c.bf16 %v1759, %v1759
        %v1792 = vpack.c.bf16 %v1760, %v1760
        %v1793 = vpack.c.bf16 %v1761, %v1761
        %v1794 = vpack.c.bf16 %v1762, %v1762
        %v1795 = vpack.c.bf16 %v1763, %v1763
        %v1796 = vpack.c.bf16 %v1764, %v1764
        %v1797 = vpack.c.bf16 %v1765, %v1765
        %v1798 = vpack.c.bf16 %v1766, %v1766
        %v1799 = vpack.c.bf16 %v1767, %v1767
        %v1800 = vpack.c.bf16 %v1768, %v1768
        %v1801 = vpack.c.bf16 %v1769, %v1769
        %v1802 = vpack.c.bf16 %v1770, %v1770
        %v1803 = vpack.c.bf16 %v1771, %v1771
        %v1812 = vunpack.c.l.b16 %v1772
        %v1813 = vunpack.c.l.b16 %v1773
        %v1814 = vunpack.c.l.b16 %v1774
        %v1815 = vunpack.c.l.b16 %v1775
        %v1816 = vunpack.c.l.b16 %v1776
        %v1817 = vunpack.c.l.b16 %v1777
        %v1818 = vunpack.c.l.b16 %v1778
        %v1819 = vunpack.c.l.b16 %v1779
        %v1820 = vpack.c.b16 %v1813, %v1812
        %v1821 = vpack.c.b16 %v1815, %v1814
        %v1822 = vpack.c.b16 %v1817, %v1816
        %v1823 = vpack.c.b16 %v1819, %v1818
        %1824 = vrot.lane.b32.xlu0 %v1134, 64
        %v1825 = vpop.permute.xlu0 %1824
        %1826 = vrot.lane.b32.xlu0 %v1135, 64
        %v1827 = vpop.permute.xlu0 %1826
        %1828 = vrot.lane.b32.xlu0 %v1136, 64
        %v1829 = vpop.permute.xlu0 %1828
        %1830 = vrot.lane.b32.xlu0 %v1137, 64
        %v1831 = vpop.permute.xlu0 %1830
        %v1837 = vsel %vm1419, %v1820, 0
        %v1840 = vsel %vm1419, %v1821, 0
        %v1843 = vsel %vm1419, %v1822, 0
        %v1846 = vsel %vm1419, %v1823, 0
        %1848 = vmatpush.bf16.msra.mxu0 0
        %1849 = vmatpush.bf16.msra.mxu0 0
        %1850 = vmatpush.bf16.msra.mxu0 0
        %1851 = vmatpush.bf16.msra.mxu0 0
        %1852 = vmatpush.bf16.msra.mxu0 %v1831
        %1853 = vmatpush.bf16.msra.mxu0 %v1829
        %1854 = vmatpush.bf16.msra.mxu0 %v1827
        %1855 = vmatpush.bf16.msra.mxu0 %v1825
        %1856 = vmatmul.bf16.gmra.mxu0 %v1837
        %v1857 = vpop.f32.mrf.mxu0
        %v1858 = vadd.f32 0.0, %v1857
        %v1859 = vpop.f32.mrf.mxu0
        %v1860 = vadd.f32 0.0, %v1859
        %1861 = vmatmul.bf16.gmra.mxu0 %v1840
        %v1862 = vpop.f32.mrf.mxu0
        %v1863 = vadd.f32 0.0, %v1862
        %v1864 = vpop.f32.mrf.mxu0
        %v1865 = vadd.f32 0.0, %v1864
        %1866 = vmatmul.bf16.gmra.mxu0 %v1843
        %v1867 = vpop.f32.mrf.mxu0
        %v1868 = vadd.f32 0.0, %v1867
        %v1869 = vpop.f32.mrf.mxu0
        %v1870 = vadd.f32 0.0, %v1869
        %1871 = vmatmul.bf16.gmra.mxu0 %v1846
        %v1872 = vpop.f32.mrf.mxu0
        %v1873 = vadd.f32 0.0, %v1872
        %v1874 = vpop.f32.mrf.mxu0
        %v1875 = vadd.f32 0.0, %v1874
        %1876 = vdwg.mxu0
        %v1885 = vunpack.c.l.b16 %v1780
        %v1886 = vunpack.c.l.b16 %v1781
        %v1887 = vunpack.c.l.b16 %v1782
        %v1888 = vunpack.c.l.b16 %v1783
        %v1889 = vunpack.c.l.b16 %v1784
        %v1890 = vunpack.c.l.b16 %v1785
        %v1891 = vunpack.c.l.b16 %v1786
        %v1892 = vunpack.c.l.b16 %v1787
        %v1893 = vpack.c.b16 %v1886, %v1885
        %v1894 = vpack.c.b16 %v1888, %v1887
        %v1895 = vpack.c.b16 %v1890, %v1889
        %v1896 = vpack.c.b16 %v1892, %v1891
        %1897 = vrot.lane.b32.xlu0 %v1208, 64
        %v1898 = vpop.permute.xlu0 %1897
        %1899 = vrot.lane.b32.xlu0 %v1209, 64
        %v1900 = vpop.permute.xlu0 %1899
        %1901 = vrot.lane.b32.xlu0 %v1210, 64
        %v1902 = vpop.permute.xlu0 %1901
        %1903 = vrot.lane.b32.xlu0 %v1211, 64
        %v1904 = vpop.permute.xlu0 %1903
        %v1910 = vsel %vm1419, %v1893, 0
        %v1913 = vsel %vm1419, %v1894, 0
        %v1916 = vsel %vm1419, %v1895, 0
        %v1919 = vsel %vm1419, %v1896, 0
        %1921 = vmatpush.bf16.msra.mxu0 0
        %1922 = vmatpush.bf16.msra.mxu0 0
        %1923 = vmatpush.bf16.msra.mxu0 0
        %1924 = vmatpush.bf16.msra.mxu0 0
        %1925 = vmatpush.bf16.msra.mxu0 %v1904
        %1926 = vmatpush.bf16.msra.mxu0 %v1902
        %1927 = vmatpush.bf16.msra.mxu0 %v1900
        %1928 = vmatpush.bf16.msra.mxu0 %v1898
        %1929 = vmatmul.bf16.gmra.mxu0 %v1910
        %v1930 = vpop.f32.mrf.mxu0
        %v1931 = vadd.f32 0.0, %v1930
        %v1932 = vpop.f32.mrf.mxu0
        %v1933 = vadd.f32 0.0, %v1932
        %1934 = vmatmul.bf16.gmra.mxu0 %v1913
        %v1935 = vpop.f32.mrf.mxu0
        %v1936 = vadd.f32 0.0, %v1935
        %v1937 = vpop.f32.mrf.mxu0
        %v1938 = vadd.f32 0.0, %v1937
        %1939 = vmatmul.bf16.gmra.mxu0 %v1916
        %v1940 = vpop.f32.mrf.mxu0
        %v1941 = vadd.f32 0.0, %v1940
        %v1942 = vpop.f32.mrf.mxu0
        %v1943 = vadd.f32 0.0, %v1942
        %1944 = vmatmul.bf16.gmra.mxu0 %v1919
        %v1945 = vpop.f32.mrf.mxu0
        %v1946 = vadd.f32 0.0, %v1945
        %v1947 = vpop.f32.mrf.mxu0
        %v1948 = vadd.f32 0.0, %v1947
        %1949 = vdwg.mxu0
        %v1958 = vunpack.c.l.b16 %v1788
        %v1959 = vunpack.c.l.b16 %v1789
        %v1960 = vunpack.c.l.b16 %v1790
        %v1961 = vunpack.c.l.b16 %v1791
        %v1962 = vunpack.c.l.b16 %v1792
        %v1963 = vunpack.c.l.b16 %v1793
        %v1964 = vunpack.c.l.b16 %v1794
        %v1965 = vunpack.c.l.b16 %v1795
        %v1966 = vpack.c.b16 %v1959, %v1958
        %v1967 = vpack.c.b16 %v1961, %v1960
        %v1968 = vpack.c.b16 %v1963, %v1962
        %v1969 = vpack.c.b16 %v1965, %v1964
        %1970 = vrot.lane.b32.xlu0 %v1281, 64
        %v1971 = vpop.permute.xlu0 %1970
        %1972 = vrot.lane.b32.xlu0 %v1282, 64
        %v1973 = vpop.permute.xlu0 %1972
        %1974 = vrot.lane.b32.xlu0 %v1283, 64
        %v1975 = vpop.permute.xlu0 %1974
        %1976 = vrot.lane.b32.xlu0 %v1284, 64
        %v1977 = vpop.permute.xlu0 %1976
        %v1983 = vsel %vm1419, %v1966, 0
        %v1986 = vsel %vm1419, %v1967, 0
        %v1989 = vsel %vm1419, %v1968, 0
        %v1992 = vsel %vm1419, %v1969, 0
        %1994 = vmatpush.bf16.msra.mxu0 0
        %1995 = vmatpush.bf16.msra.mxu0 0
        %1996 = vmatpush.bf16.msra.mxu0 0
        %1997 = vmatpush.bf16.msra.mxu0 0
        %1998 = vmatpush.bf16.msra.mxu0 %v1977
        %1999 = vmatpush.bf16.msra.mxu0 %v1975
        %2000 = vmatpush.bf16.msra.mxu0 %v1973
        %2001 = vmatpush.bf16.msra.mxu0 %v1971
        %2002 = vmatmul.bf16.gmra.mxu0 %v1983
        %v2003 = vpop.f32.mrf.mxu0
        %v2004 = vadd.f32 0.0, %v2003
        %v2005 = vpop.f32.mrf.mxu0
        %v2006 = vadd.f32 0.0, %v2005
        %2007 = vmatmul.bf16.gmra.mxu0 %v1986
        %v2008 = vpop.f32.mrf.mxu0
        %v2009 = vadd.f32 0.0, %v2008
        %v2010 = vpop.f32.mrf.mxu0
        %v2011 = vadd.f32 0.0, %v2010
        %2012 = vmatmul.bf16.gmra.mxu0 %v1989
        %v2013 = vpop.f32.mrf.mxu0
        %v2014 = vadd.f32 0.0, %v2013
        %v2015 = vpop.f32.mrf.mxu0
        %v2016 = vadd.f32 0.0, %v2015
        %2017 = vmatmul.bf16.gmra.mxu0 %v1992
        %v2018 = vpop.f32.mrf.mxu0
        %v2019 = vadd.f32 0.0, %v2018
        %v2020 = vpop.f32.mrf.mxu0
        %v2021 = vadd.f32 0.0, %v2020
        %2022 = vdwg.mxu0
        %v2031 = vunpack.c.l.b16 %v1796
        %v2032 = vunpack.c.l.b16 %v1797
        %v2033 = vunpack.c.l.b16 %v1798
        %v2034 = vunpack.c.l.b16 %v1799
        %v2035 = vunpack.c.l.b16 %v1800
        %v2036 = vunpack.c.l.b16 %v1801
        %v2037 = vunpack.c.l.b16 %v1802
        %v2038 = vunpack.c.l.b16 %v1803
        %v2039 = vpack.c.b16 %v2032, %v2031
        %v2040 = vpack.c.b16 %v2034, %v2033
        %v2041 = vpack.c.b16 %v2036, %v2035
        %v2042 = vpack.c.b16 %v2038, %v2037
        %2043 = vrot.lane.b32.xlu0 %v1354, 64
        %v2044 = vpop.permute.xlu0 %2043
        %2045 = vrot.lane.b32.xlu0 %v1355, 64
        %v2046 = vpop.permute.xlu0 %2045
        %2047 = vrot.lane.b32.xlu0 %v1356, 64
        %v2048 = vpop.permute.xlu0 %2047
        %2049 = vrot.lane.b32.xlu0 %v1357, 64
        %v2050 = vpop.permute.xlu0 %2049
        %v2056 = vsel %vm1419, %v2039, 0
        %v2059 = vsel %vm1419, %v2040, 0
        %v2062 = vsel %vm1419, %v2041, 0
        %v2065 = vsel %vm1419, %v2042, 0
        %2067 = vmatpush.bf16.msra.mxu0 0
        %2068 = vmatpush.bf16.msra.mxu0 0
        %2069 = vmatpush.bf16.msra.mxu0 0
        %2070 = vmatpush.bf16.msra.mxu0 0
        %2071 = vmatpush.bf16.msra.mxu0 %v2050
        %2072 = vmatpush.bf16.msra.mxu0 %v2048
        %2073 = vmatpush.bf16.msra.mxu0 %v2046
        %2074 = vmatpush.bf16.msra.mxu0 %v2044
        %2075 = vmatmul.bf16.gmra.mxu0 %v2056
        %v2076 = vpop.f32.mrf.mxu0
        %v2077 = vadd.f32 0.0, %v2076
        %v2078 = vpop.f32.mrf.mxu0
        %v2079 = vadd.f32 0.0, %v2078
        %2080 = vmatmul.bf16.gmra.mxu0 %v2059
        %v2081 = vpop.f32.mrf.mxu0
        %v2082 = vadd.f32 0.0, %v2081
        %v2083 = vpop.f32.mrf.mxu0
        %v2084 = vadd.f32 0.0, %v2083
        %2085 = vmatmul.bf16.gmra.mxu0 %v2062
        %v2086 = vpop.f32.mrf.mxu0
        %v2087 = vadd.f32 0.0, %v2086
        %v2088 = vpop.f32.mrf.mxu0
        %v2089 = vadd.f32 0.0, %v2088
        %2090 = vmatmul.bf16.gmra.mxu0 %v2065
        %v2091 = vpop.f32.mrf.mxu0
        %v2092 = vadd.f32 0.0, %v2091
        %v2093 = vpop.f32.mrf.mxu0
        %v2094 = vadd.f32 0.0, %v2093
        %2095 = vdwg.mxu0
        %2104 = vrot.lane.b32.xlu0 %v1931, 8
        %v2105 = vpop.permute.xlu0 %2104
        %2106 = vrot.lane.b32.xlu0 %v1933, 8
        %v2107 = vpop.permute.xlu0 %2106
        %2108 = vrot.lane.b32.xlu0 %v1936, 8
        %v2109 = vpop.permute.xlu0 %2108
        %2110 = vrot.lane.b32.xlu0 %v1938, 8
        %v2111 = vpop.permute.xlu0 %2110
        %2112 = vrot.lane.b32.xlu0 %v1941, 8
        %v2113 = vpop.permute.xlu0 %2112
        %2114 = vrot.lane.b32.xlu0 %v1943, 8
        %v2115 = vpop.permute.xlu0 %2114
        %2116 = vrot.lane.b32.xlu0 %v1946, 8
        %v2117 = vpop.permute.xlu0 %2116
        %2118 = vrot.lane.b32.xlu0 %v1948, 8
        %v2119 = vpop.permute.xlu0 %2118
        %2136 = vrot.lane.b32.xlu0 %v2004, 16
        %v2137 = vpop.permute.xlu0 %2136
        %2138 = vrot.lane.b32.xlu0 %v2006, 16
        %v2139 = vpop.permute.xlu0 %2138
        %2140 = vrot.lane.b32.xlu0 %v2009, 16
        %v2141 = vpop.permute.xlu0 %2140
        %2142 = vrot.lane.b32.xlu0 %v2011, 16
        %v2143 = vpop.permute.xlu0 %2142
        %2144 = vrot.lane.b32.xlu0 %v2014, 16
        %v2145 = vpop.permute.xlu0 %2144
        %2146 = vrot.lane.b32.xlu0 %v2016, 16
        %v2147 = vpop.permute.xlu0 %2146
        %2148 = vrot.lane.b32.xlu0 %v2019, 16
        %v2149 = vpop.permute.xlu0 %2148
        %2150 = vrot.lane.b32.xlu0 %v2021, 16
        %v2151 = vpop.permute.xlu0 %2150
        %2168 = vrot.lane.b32.xlu0 %v2077, 24
        %v2169 = vpop.permute.xlu0 %2168
        %2170 = vrot.lane.b32.xlu0 %v2079, 24
        %v2171 = vpop.permute.xlu0 %2170
        %2172 = vrot.lane.b32.xlu0 %v2082, 24
        %v2173 = vpop.permute.xlu0 %2172
        %2174 = vrot.lane.b32.xlu0 %v2084, 24
        %v2175 = vpop.permute.xlu0 %2174
        %2176 = vrot.lane.b32.xlu0 %v2087, 24
        %v2177 = vpop.permute.xlu0 %2176
        %2178 = vrot.lane.b32.xlu0 %v2089, 24
        %v2179 = vpop.permute.xlu0 %2178
        %2180 = vrot.lane.b32.xlu0 %v2092, 24
        %v2181 = vpop.permute.xlu0 %2180
        %2182 = vrot.lane.b32.xlu0 %v2094, 24
        %v2183 = vpop.permute.xlu0 %2182
        %v2192 = vsel %vm1146, %v1858, %v2105
        %v2193 = vsel %vm1146, %v1860, %v2107
        %v2194 = vsel %vm1146, %v1863, %v2109
        %v2195 = vsel %vm1146, %v1865, %v2111
        %v2196 = vsel %vm1146, %v1868, %v2113
        %v2197 = vsel %vm1146, %v1870, %v2115
        %v2198 = vsel %vm1146, %v1873, %v2117
        %v2199 = vsel %vm1146, %v1875, %v2119
        %vm2200 = vcmask 130048
        %v2201 = vsel %vm2200, %v2192, %v2137
        %v2202 = vsel %vm2200, %v2193, %v2139
        %v2203 = vsel %vm2200, %v2194, %v2141
        %v2204 = vsel %vm2200, %v2195, %v2143
        %v2205 = vsel %vm2200, %v2196, %v2145
        %v2206 = vsel %vm2200, %v2197, %v2147
        %v2207 = vsel %vm2200, %v2198, %v2149
        %v2208 = vsel %vm2200, %v2199, %v2151
        %vm2209 = vcmask 195584
        %v2210 = vsel %vm2209, %v2201, %v2169
        %v2211 = vsel %vm2209, %v2202, %v2171
        %v2212 = vsel %vm2209, %v2203, %v2173
        %v2213 = vsel %vm2209, %v2204, %v2175
        %v2214 = vsel %vm2209, %v2205, %v2177
        %v2215 = vsel %vm2209, %v2206, %v2179
        %v2216 = vsel %vm2209, %v2207, %v2181
        %v2217 = vsel %vm2209, %v2208, %v2183
        %v2218 = vpack.c.bf16 %v2211, %v2210
        %v2219 = vpack.c.bf16 %v2213, %v2212
        %v2220 = vpack.c.bf16 %v2215, %v2214
        %v2221 = vpack.c.bf16 %v2217, %v2216
        %v2222 = vld [vmem:[%s777] sm:$0xf]
        %v2223 = vld [vmem:[%s777 + $0x4] sm:$0xf]
        %v2224 = vld [vmem:[%s777 + $0x8] sm:$0xf]
        %v2225 = vld [vmem:[%s777 + $0xc] sm:$0xf]
        %v2226 = vld [vmem:[%s780] sm:$0x1]
        %v2228 = vperm.slane %v2226, 0
        %v2234 = vunpack.c.l.b16 %v2222
        %v2235 = vunpack.c.l.b16 %v2223
        %v2236 = vunpack.c.l.b16 %v2224
        %v2237 = vunpack.c.l.b16 %v2225
        %v2238 = vpack.c.b16 %v2235, %v2234
        %v2239 = vpack.c.b16 %v2237, %v2236
        %v2243 = vsel %vm1020, %v2218, 0
        %v2246 = vsel %vm1020, %v2219, 0
        %v2249 = vsel %vm1020, %v2220, 0
        %v2252 = vsel %vm1020, %v2221, 0
        %2254 = vmatpush.bf16.msra.mxu0 0
        %2255 = vmatpush.bf16.msra.mxu0 0
        %2256 = vmatpush.bf16.msra.mxu0 0
        %2257 = vmatpush.bf16.msra.mxu0 0
        %2258 = vmatpush.bf16.msra.mxu0 0
        %2259 = vmatpush.bf16.msra.mxu0 0
        %2260 = vmatpush.bf16.msra.mxu0 %v2239
        %2261 = vmatpush.bf16.msra.mxu0 %v2238
        %2262 = vmatmul.bf16.gmra.mxu0 %v2243
        %v2263 = vpop.f32.mrf.mxu0
        %v2264 = vadd.f32 %v2228, %v2263
        %v2265 = vpop.f32.mrf.mxu0
        %v2266 = vadd.f32 %v2228, %v2265
        %2267 = vmatmul.bf16.gmra.mxu0 %v2246
        %v2268 = vpop.f32.mrf.mxu0
        %v2269 = vadd.f32 %v2228, %v2268
        %v2270 = vpop.f32.mrf.mxu0
        %v2271 = vadd.f32 %v2228, %v2270
        %2272 = vmatmul.bf16.gmra.mxu0 %v2249
        %v2273 = vpop.f32.mrf.mxu0
        %v2274 = vadd.f32 %v2228, %v2273
        %v2275 = vpop.f32.mrf.mxu0
        %v2276 = vadd.f32 %v2228, %v2275
        %2277 = vmatmul.bf16.gmra.mxu0 %v2252
        %v2278 = vpop.f32.mrf.mxu0
        %v2279 = vadd.f32 %v2228, %v2278
        %v2280 = vpop.f32.mrf.mxu0
        %v2281 = vadd.f32 %v2228, %v2280
        %2282 = vdwg.mxu0
        %v2283 = vadd.f32 %v988, %v2264
        %v2284 = vadd.f32 %v989, %v2266
        %v2285 = vadd.f32 %v990, %v2269
        %v2286 = vadd.f32 %v991, %v2271
        %v2287 = vadd.f32 %v992, %v2274
        %v2288 = vadd.f32 %v993, %v2276
        %v2289 = vadd.f32 %v994, %v2279
        %v2290 = vadd.f32 %v995, %v2281
        %v2291 = vld [vmem:[%s783] sm:$0x1]
        %v2292 = vld [vmem:[%s786] sm:$0x1]
        %v2293 = vsel %vm1020, %v2283, 0.0
        %2294 = vadd.xlane.f32.xlu0 %v2293
        %v2295 = vpop.xlane.xlu0 %2294
        %v2296 = vsel %vm1020, %v2284, 0.0
        %2297 = vadd.xlane.f32.xlu0 %v2296
        %v2298 = vpop.xlane.xlu0 %2297
        %v2299 = vsel %vm1020, %v2285, 0.0
        %2300 = vadd.xlane.f32.xlu0 %v2299
        %v2301 = vpop.xlane.xlu0 %2300
        %v2302 = vsel %vm1020, %v2286, 0.0
        %2303 = vadd.xlane.f32.xlu0 %v2302
        %v2304 = vpop.xlane.xlu0 %2303
        %v2305 = vsel %vm1020, %v2287, 0.0
        %2306 = vadd.xlane.f32.xlu0 %v2305
        %v2307 = vpop.xlane.xlu0 %2306
        %v2308 = vsel %vm1020, %v2288, 0.0
        %2309 = vadd.xlane.f32.xlu0 %v2308
        %v2310 = vpop.xlane.xlu0 %2309
        %v2311 = vsel %vm1020, %v2289, 0.0
        %2312 = vadd.xlane.f32.xlu0 %v2311
        %v2313 = vpop.xlane.xlu0 %2312
        %v2314 = vsel %vm1020, %v2290, 0.0
        %2315 = vadd.xlane.f32.xlu0 %v2314
        %v2316 = vpop.xlane.xlu0 %2315
        %v2317 = vrcp.pop 32.0
        %v2318 = vmul.f32 32.0, %v2317
        %v2319 = vsub.f32 1.0, %v2318
        %v2320 = vmul.f32 %v2317, %v2319
        %v2321 = vadd.f32 %v2317, %v2320
        %vm2322 = vweird.f32 %v2317
        %v2323 = vsel %vm2322, %v2317, %v2321
        %v2324 = vmul.f32 %v2295, %v2323
        %v2325 = vmul.f32 %v2298, %v2323
        %v2326 = vmul.f32 %v2301, %v2323
        %v2327 = vmul.f32 %v2304, %v2323
        %v2328 = vmul.f32 %v2307, %v2323
        %v2329 = vmul.f32 %v2310, %v2323
        %v2330 = vmul.f32 %v2313, %v2323
        %v2331 = vmul.f32 %v2316, %v2323
        %v2332 = vsub.f32 %v2283, %v2324
        %v2333 = vsub.f32 %v2284, %v2325
        %v2334 = vsub.f32 %v2285, %v2326
        %v2335 = vsub.f32 %v2286, %v2327
        %v2336 = vsub.f32 %v2287, %v2328
        %v2337 = vsub.f32 %v2288, %v2329
        %v2338 = vsub.f32 %v2289, %v2330
        %v2339 = vsub.f32 %v2290, %v2331
        %v2340 = vmul.f32 %v2332, %v2332
        %v2341 = vmul.f32 %v2333, %v2333
        %v2342 = vmul.f32 %v2334, %v2334
        %v2343 = vmul.f32 %v2335, %v2335
        %v2344 = vmul.f32 %v2336, %v2336
        %v2345 = vmul.f32 %v2337, %v2337
        %v2346 = vmul.f32 %v2338, %v2338
        %v2347 = vmul.f32 %v2339, %v2339
        %v2348 = vsel %vm1020, %v2340, 0.0
        %2349 = vadd.xlane.f32.xlu0 %v2348
        %v2350 = vpop.xlane.xlu0 %2349
        %v2351 = vsel %vm1020, %v2341, 0.0
        %2352 = vadd.xlane.f32.xlu0 %v2351
        %v2353 = vpop.xlane.xlu0 %2352
        %v2354 = vsel %vm1020, %v2342, 0.0
        %2355 = vadd.xlane.f32.xlu0 %v2354
        %v2356 = vpop.xlane.xlu0 %2355
        %v2357 = vsel %vm1020, %v2343, 0.0
        %2358 = vadd.xlane.f32.xlu0 %v2357
        %v2359 = vpop.xlane.xlu0 %2358
        %v2360 = vsel %vm1020, %v2344, 0.0
        %2361 = vadd.xlane.f32.xlu0 %v2360
        %v2362 = vpop.xlane.xlu0 %2361
        %v2363 = vsel %vm1020, %v2345, 0.0
        %2364 = vadd.xlane.f32.xlu0 %v2363
        %v2365 = vpop.xlane.xlu0 %2364
        %v2366 = vsel %vm1020, %v2346, 0.0
        %2367 = vadd.xlane.f32.xlu0 %v2366
        %v2368 = vpop.xlane.xlu0 %2367
        %v2369 = vsel %vm1020, %v2347, 0.0
        %2370 = vadd.xlane.f32.xlu0 %v2369
        %v2371 = vpop.xlane.xlu0 %2370
        %v2372 = vmul.f32 %v2350, %v2323
        %v2373 = vmul.f32 %v2353, %v2323
        %v2374 = vmul.f32 %v2356, %v2323
        %v2375 = vmul.f32 %v2359, %v2323
        %v2376 = vmul.f32 %v2362, %v2323
        %v2377 = vmul.f32 %v2365, %v2323
        %v2378 = vmul.f32 %v2368, %v2323
        %v2379 = vmul.f32 %v2371, %v2323
        %v2380 = vadd.f32 %v2372, 1e-05
        %v2381 = vadd.f32 %v2373, 1e-05
        %v2382 = vadd.f32 %v2374, 1e-05
        %v2383 = vadd.f32 %v2375, 1e-05
        %v2384 = vadd.f32 %v2376, 1e-05
        %v2385 = vadd.f32 %v2377, 1e-05
        %v2386 = vadd.f32 %v2378, 1e-05
        %v2387 = vadd.f32 %v2379, 1e-05
        %v2388 = vrsqrt.pop %v2380
        %v2389 = vmul.f32 %v2388, %v2380
        %v2390 = vmul.f32 %v2389, %v2388
        %v2391 = vmul.f32 0.5, %v2390
        %v2392 = vsub.f32 1.5, %v2391
        %v2393 = vmul.f32 %v2388, %v2392
        %vm2394 = vweird.f32 %v2380
        %vm2395 = vweird.f32 %v2388
        %vm2396 = vmor %vm2394, %vm2395
        %v2397 = vsel %vm2396, %v2388, %v2393
        %v2398 = vrsqrt.pop %v2381
        %v2399 = vmul.f32 %v2398, %v2381
        %v2400 = vmul.f32 %v2399, %v2398
        %v2401 = vmul.f32 0.5, %v2400
        %v2402 = vsub.f32 1.5, %v2401
        %v2403 = vmul.f32 %v2398, %v2402
        %vm2404 = vweird.f32 %v2381
        %vm2405 = vweird.f32 %v2398
        %vm2406 = vmor %vm2404, %vm2405
        %v2407 = vsel %vm2406, %v2398, %v2403
        %v2408 = vrsqrt.pop %v2382
        %v2409 = vmul.f32 %v2408, %v2382
        %v2410 = vmul.f32 %v2409, %v2408
        %v2411 = vmul.f32 0.5, %v2410
        %v2412 = vsub.f32 1.5, %v2411
        %v2413 = vmul.f32 %v2408, %v2412
        %vm2414 = vweird.f32 %v2382
        %vm2415 = vweird.f32 %v2408
        %vm2416 = vmor %vm2414, %vm2415
        %v2417 = vsel %vm2416, %v2408, %v2413
        %v2418 = vrsqrt.pop %v2383
        %v2419 = vmul.f32 %v2418, %v2383
        %v2420 = vmul.f32 %v2419, %v2418
        %v2421 = vmul.f32 0.5, %v2420
        %v2422 = vsub.f32 1.5, %v2421
        %v2423 = vmul.f32 %v2418, %v2422
        %vm2424 = vweird.f32 %v2383
        %vm2425 = vweird.f32 %v2418
        %vm2426 = vmor %vm2424, %vm2425
        %v2427 = vsel %vm2426, %v2418, %v2423
        %v2428 = vrsqrt.pop %v2384
        %v2429 = vmul.f32 %v2428, %v2384
        %v2430 = vmul.f32 %v2429, %v2428
        %v2431 = vmul.f32 0.5, %v2430
        %v2432 = vsub.f32 1.5, %v2431
        %v2433 = vmul.f32 %v2428, %v2432
        %vm2434 = vweird.f32 %v2384
        %vm2435 = vweird.f32 %v2428
        %vm2436 = vmor %vm2434, %vm2435
        %v2437 = vsel %vm2436, %v2428, %v2433
        %v2438 = vrsqrt.pop %v2385
        %v2439 = vmul.f32 %v2438, %v2385
        %v2440 = vmul.f32 %v2439, %v2438
        %v2441 = vmul.f32 0.5, %v2440
        %v2442 = vsub.f32 1.5, %v2441
        %v2443 = vmul.f32 %v2438, %v2442
        %vm2444 = vweird.f32 %v2385
        %vm2445 = vweird.f32 %v2438
        %vm2446 = vmor %vm2444, %vm2445
        %v2447 = vsel %vm2446, %v2438, %v2443
        %v2448 = vrsqrt.pop %v2386
        %v2449 = vmul.f32 %v2448, %v2386
        %v2450 = vmul.f32 %v2449, %v2448
        %v2451 = vmul.f32 0.5, %v2450
        %v2452 = vsub.f32 1.5, %v2451
        %v2453 = vmul.f32 %v2448, %v2452
        %vm2454 = vweird.f32 %v2386
        %vm2455 = vweird.f32 %v2448
        %vm2456 = vmor %vm2454, %vm2455
        %v2457 = vsel %vm2456, %v2448, %v2453
        %v2458 = vrsqrt.pop %v2387
        %v2459 = vmul.f32 %v2458, %v2387
        %v2460 = vmul.f32 %v2459, %v2458
        %v2461 = vmul.f32 0.5, %v2460
        %v2462 = vsub.f32 1.5, %v2461
        %v2463 = vmul.f32 %v2458, %v2462
        %vm2464 = vweird.f32 %v2387
        %vm2465 = vweird.f32 %v2458
        %vm2466 = vmor %vm2464, %vm2465
        %v2467 = vsel %vm2466, %v2458, %v2463
        %v2468 = vmul.f32 %v2332, %v2397
        %v2469 = vmul.f32 %v2333, %v2407
        %v2470 = vmul.f32 %v2334, %v2417
        %v2471 = vmul.f32 %v2335, %v2427
        %v2472 = vmul.f32 %v2336, %v2437
        %v2473 = vmul.f32 %v2337, %v2447
        %v2474 = vmul.f32 %v2338, %v2457
        %v2475 = vmul.f32 %v2339, %v2467
        %v2477 = vperm.slane %v2291, 0
        %v2479 = vmul.f32 %v2468, %v2477
        %v2480 = vmul.f32 %v2469, %v2477
        %v2481 = vmul.f32 %v2470, %v2477
        %v2482 = vmul.f32 %v2471, %v2477
        %v2483 = vmul.f32 %v2472, %v2477
        %v2484 = vmul.f32 %v2473, %v2477
        %v2485 = vmul.f32 %v2474, %v2477
        %v2486 = vmul.f32 %v2475, %v2477
        %v2488 = vperm.slane %v2292, 0
        %v2490 = vadd.f32 %v2479, %v2488
        %v2491 = vadd.f32 %v2480, %v2488
        %v2492 = vadd.f32 %v2481, %v2488
        %v2493 = vadd.f32 %v2482, %v2488
        %v2494 = vadd.f32 %v2483, %v2488
        %v2495 = vadd.f32 %v2484, %v2488
        %v2496 = vadd.f32 %v2485, %v2488
        %v2497 = vadd.f32 %v2486, %v2488
        %v2498 = vpack.c.bf16 %v2491, %v2490
        %v2499 = vpack.c.bf16 %v2493, %v2492
        %v2500 = vpack.c.bf16 %v2495, %v2494
        %v2501 = vpack.c.bf16 %v2497, %v2496
        %v2502 = vld [vmem:[%s791] sm:$0xff]
        %v2503 = vld [vmem:[%s791 + $0x8] sm:$0xff]
        %v2504 = vld [vmem:[%s791 + $0x10] sm:$0xff]
        %v2505 = vld [vmem:[%s791 + $0x18] sm:$0xff]
        %v2506 = vld [vmem:[%s791 + $0x20] sm:$0xff]
        %v2507 = vld [vmem:[%s791 + $0x28] sm:$0xff]
        %v2508 = vld [vmem:[%s791 + $0x30] sm:$0xff]
        %v2509 = vld [vmem:[%s791 + $0x38] sm:$0xff]
        %v2510 = vld [vmem:[%s791 + $0x40] sm:$0xff]
        %v2511 = vld [vmem:[%s791 + $0x48] sm:$0xff]
        %v2512 = vld [vmem:[%s791 + $0x50] sm:$0xff]
        %v2513 = vld [vmem:[%s791 + $0x58] sm:$0xff]
        %v2514 = vld [vmem:[%s791 + $0x60] sm:$0xff]
        %v2515 = vld [vmem:[%s791 + $0x68] sm:$0xff]
        %v2516 = vld [vmem:[%s791 + $0x70] sm:$0xff]
        %v2517 = vld [vmem:[%s791 + $0x78] sm:$0xff]
        %v2518 = vld [vmem:[%s791 + $0x80] sm:$0xff]
        %v2519 = vld [vmem:[%s791 + $0x88] sm:$0xff]
        %v2520 = vld [vmem:[%s791 + $0x90] sm:$0xff]
        %v2521 = vld [vmem:[%s791 + $0x98] sm:$0xff]
        %v2522 = vld [vmem:[%s791 + $0xa0] sm:$0xff]
        %v2523 = vld [vmem:[%s791 + $0xa8] sm:$0xff]
        %v2524 = vld [vmem:[%s791 + $0xb0] sm:$0xff]
        %v2525 = vld [vmem:[%s791 + $0xb8] sm:$0xff]
        %v2526 = vld [vmem:[%s791 + $0xc0] sm:$0xff]
        %v2527 = vld [vmem:[%s791 + $0xc8] sm:$0xff]
        %v2528 = vld [vmem:[%s791 + $0xd0] sm:$0xff]
        %v2529 = vld [vmem:[%s791 + $0xd8] sm:$0xff]
        %v2530 = vld [vmem:[%s791 + $0xe0] sm:$0xff]
        %v2531 = vld [vmem:[%s791 + $0xe8] sm:$0xff]
        %v2532 = vld [vmem:[%s791 + $0xf0] sm:$0xff]
        %v2533 = vld [vmem:[%s791 + $0xf8] sm:$0xff]
        %v2534 = vld [vmem:[%s795] sm:$0xff]
        %v2535 = vld [vmem:[%s795 + $0x8] sm:$0xff]
        %v2538 = vperm.slane %v2534, 0
        %v2539 = vperm.slane %v2534, 1
        %v2540 = vperm.slane %v2534, 2
        %v2541 = vperm.slane %v2534, 3
        %v2542 = vperm.slane %v2534, 4
        %v2543 = vperm.slane %v2534, 5
        %v2544 = vperm.slane %v2534, 6
        %v2545 = vperm.slane %v2534, 7
        %v2546 = vperm.slane %v2535, 0
        %v2547 = vperm.slane %v2535, 1
        %v2548 = vperm.slane %v2535, 2
        %v2549 = vperm.slane %v2535, 3
        %v2550 = vperm.slane %v2535, 4
        %v2551 = vperm.slane %v2535, 5
        %v2552 = vperm.slane %v2535, 6
        %v2553 = vperm.slane %v2535, 7
        %v2602 = vunpack.c.l.b16 %v2502
        %v2603 = vunpack.c.h.b16 %v2502
        %v2604 = vunpack.c.l.b16 %v2503
        %v2605 = vunpack.c.h.b16 %v2503
        %v2606 = vunpack.c.l.b16 %v2504
        %v2607 = vunpack.c.h.b16 %v2504
        %v2608 = vunpack.c.l.b16 %v2505
        %v2609 = vunpack.c.h.b16 %v2505
        %v2610 = vunpack.c.l.b16 %v2506
        %v2611 = vunpack.c.h.b16 %v2506
        %v2612 = vunpack.c.l.b16 %v2507
        %v2613 = vunpack.c.h.b16 %v2507
        %v2614 = vunpack.c.l.b16 %v2508
        %v2615 = vunpack.c.h.b16 %v2508
        %v2616 = vunpack.c.l.b16 %v2509
        %v2617 = vunpack.c.h.b16 %v2509
        %v2618 = vunpack.c.l.b16 %v2510
        %v2619 = vunpack.c.h.b16 %v2510
        %v2620 = vunpack.c.l.b16 %v2511
        %v2621 = vunpack.c.h.b16 %v2511
        %v2622 = vunpack.c.l.b16 %v2512
        %v2623 = vunpack.c.h.b16 %v2512
        %v2624 = vunpack.c.l.b16 %v2513
        %v2625 = vunpack.c.h.b16 %v2513
        %v2626 = vunpack.c.l.b16 %v2514
        %v2627 = vunpack.c.h.b16 %v2514
        %v2628 = vunpack.c.l.b16 %v2515
        %v2629 = vunpack.c.h.b16 %v2515
        %v2630 = vunpack.c.l.b16 %v2516
        %v2631 = vunpack.c.h.b16 %v2516
        %v2632 = vunpack.c.l.b16 %v2517
        %v2633 = vunpack.c.h.b16 %v2517
        %v2634 = vunpack.c.l.b16 %v2518
        %v2635 = vunpack.c.h.b16 %v2518
        %v2636 = vunpack.c.l.b16 %v2519
        %v2637 = vunpack.c.h.b16 %v2519
        %v2638 = vunpack.c.l.b16 %v2520
        %v2639 = vunpack.c.h.b16 %v2520
        %v2640 = vunpack.c.l.b16 %v2521
        %v2641 = vunpack.c.h.b16 %v2521
        %v2642 = vunpack.c.l.b16 %v2522
        %v2643 = vunpack.c.h.b16 %v2522
        %v2644 = vunpack.c.l.b16 %v2523
        %v2645 = vunpack.c.h.b16 %v2523
        %v2646 = vunpack.c.l.b16 %v2524
        %v2647 = vunpack.c.h.b16 %v2524
        %v2648 = vunpack.c.l.b16 %v2525
        %v2649 = vunpack.c.h.b16 %v2525
        %v2650 = vunpack.c.l.b16 %v2526
        %v2651 = vunpack.c.h.b16 %v2526
        %v2652 = vunpack.c.l.b16 %v2527
        %v2653 = vunpack.c.h.b16 %v2527
        %v2654 = vunpack.c.l.b16 %v2528
        %v2655 = vunpack.c.h.b16 %v2528
        %v2656 = vunpack.c.l.b16 %v2529
        %v2657 = vunpack.c.h.b16 %v2529
        %v2658 = vunpack.c.l.b16 %v2530
        %v2659 = vunpack.c.h.b16 %v2530
        %v2660 = vunpack.c.l.b16 %v2531
        %v2661 = vunpack.c.h.b16 %v2531
        %v2662 = vunpack.c.l.b16 %v2532
        %v2663 = vunpack.c.h.b16 %v2532
        %v2664 = vunpack.c.l.b16 %v2533
        %v2665 = vunpack.c.h.b16 %v2533
        %v2666 = vpack.c.b16 %v2618, %v2602
        %v2667 = vpack.c.b16 %v2619, %v2603
        %v2668 = vpack.c.b16 %v2620, %v2604
        %v2669 = vpack.c.b16 %v2621, %v2605
        %v2670 = vpack.c.b16 %v2622, %v2606
        %v2671 = vpack.c.b16 %v2623, %v2607
        %v2672 = vpack.c.b16 %v2624, %v2608
        %v2673 = vpack.c.b16 %v2625, %v2609
        %v2674 = vpack.c.b16 %v2626, %v2610
        %v2675 = vpack.c.b16 %v2627, %v2611
        %v2676 = vpack.c.b16 %v2628, %v2612
        %v2677 = vpack.c.b16 %v2629, %v2613
        %v2678 = vpack.c.b16 %v2630, %v2614
        %v2679 = vpack.c.b16 %v2631, %v2615
        %v2680 = vpack.c.b16 %v2632, %v2616
        %v2681 = vpack.c.b16 %v2633, %v2617
        %v2682 = vpack.c.b16 %v2650, %v2634
        %v2683 = vpack.c.b16 %v2651, %v2635
        %v2684 = vpack.c.b16 %v2652, %v2636
        %v2685 = vpack.c.b16 %v2653, %v2637
        %v2686 = vpack.c.b16 %v2654, %v2638
        %v2687 = vpack.c.b16 %v2655, %v2639
        %v2688 = vpack.c.b16 %v2656, %v2640
        %v2689 = vpack.c.b16 %v2657, %v2641
        %v2690 = vpack.c.b16 %v2658, %v2642
        %v2691 = vpack.c.b16 %v2659, %v2643
        %v2692 = vpack.c.b16 %v2660, %v2644
        %v2693 = vpack.c.b16 %v2661, %v2645
        %v2694 = vpack.c.b16 %v2662, %v2646
        %v2695 = vpack.c.b16 %v2663, %v2647
        %v2696 = vpack.c.b16 %v2664, %v2648
        %v2697 = vpack.c.b16 %v2665, %v2649
        %v2731 = vsel %vm1020, %v2498, 0
        %v2734 = vsel %vm1020, %v2499, 0
        %v2737 = vsel %vm1020, %v2500, 0
        %v2740 = vsel %vm1020, %v2501, 0
        %2742 = vmatpush.bf16.msra.mxu0 0
        %2743 = vmatpush.bf16.msra.mxu0 0
        %2744 = vmatpush.bf16.msra.mxu0 0
        %2745 = vmatpush.bf16.msra.mxu0 0
        %2746 = vmatpush.bf16.msra.mxu0 0
        %2747 = vmatpush.bf16.msra.mxu0 0
        %2748 = vmatpush.bf16.msra.mxu0 %v2682
        %2749 = vmatpush.bf16.msra.mxu0 %v2666
        %2750 = vmatmul.bf16.gmra.mxu0 %v2731
        %v2751 = vpop.f32.mrf.mxu0
        %v2752 = vadd.f32 %v2538, %v2751
        %v2753 = vpop.f32.mrf.mxu0
        %v2754 = vadd.f32 %v2538, %v2753
        %2755 = vmatmul.bf16.gmra.mxu0 %v2734
        %v2756 = vpop.f32.mrf.mxu0
        %v2757 = vadd.f32 %v2538, %v2756
        %v2758 = vpop.f32.mrf.mxu0
        %v2759 = vadd.f32 %v2538, %v2758
        %2760 = vmatmul.bf16.gmra.mxu0 %v2737
        %v2761 = vpop.f32.mrf.mxu0
        %v2762 = vadd.f32 %v2538, %v2761
        %v2763 = vpop.f32.mrf.mxu0
        %v2764 = vadd.f32 %v2538, %v2763
        %2765 = vmatmul.bf16.gmra.mxu0 %v2740
        %v2766 = vpop.f32.mrf.mxu0
        %v2767 = vadd.f32 %v2538, %v2766
        %v2768 = vpop.f32.mrf.mxu0
        %v2769 = vadd.f32 %v2538, %v2768
        %2770 = vdwg.mxu0
        %2771 = vmatpush.bf16.msra.mxu0 0
        %2772 = vmatpush.bf16.msra.mxu0 0
        %2773 = vmatpush.bf16.msra.mxu0 0
        %2774 = vmatpush.bf16.msra.mxu0 0
        %2775 = vmatpush.bf16.msra.mxu0 0
        %2776 = vmatpush.bf16.msra.mxu0 0
        %2777 = vmatpush.bf16.msra.mxu0 %v2683
        %2778 = vmatpush.bf16.msra.mxu0 %v2667
        %2779 = vmatmul.bf16.gmra.mxu0 %v2731
        %v2780 = vpop.f32.mrf.mxu0
        %v2781 = vadd.f32 %v2539, %v2780
        %v2782 = vpop.f32.mrf.mxu0
        %v2783 = vadd.f32 %v2539, %v2782
        %2784 = vmatmul.bf16.gmra.mxu0 %v2734
        %v2785 = vpop.f32.mrf.mxu0
        %v2786 = vadd.f32 %v2539, %v2785
        %v2787 = vpop.f32.mrf.mxu0
        %v2788 = vadd.f32 %v2539, %v2787
        %2789 = vmatmul.bf16.gmra.mxu0 %v2737
        %v2790 = vpop.f32.mrf.mxu0
        %v2791 = vadd.f32 %v2539, %v2790
        %v2792 = vpop.f32.mrf.mxu0
        %v2793 = vadd.f32 %v2539, %v2792
        %2794 = vmatmul.bf16.gmra.mxu0 %v2740
        %v2795 = vpop.f32.mrf.mxu0
        %v2796 = vadd.f32 %v2539, %v2795
        %v2797 = vpop.f32.mrf.mxu0
        %v2798 = vadd.f32 %v2539, %v2797
        %2799 = vdwg.mxu0
        %2800 = vmatpush.bf16.msra.mxu0 0
        %2801 = vmatpush.bf16.msra.mxu0 0
        %2802 = vmatpush.bf16.msra.mxu0 0
        %2803 = vmatpush.bf16.msra.mxu0 0
        %2804 = vmatpush.bf16.msra.mxu0 0
        %2805 = vmatpush.bf16.msra.mxu0 0
        %2806 = vmatpush.bf16.msra.mxu0 %v2684
        %2807 = vmatpush.bf16.msra.mxu0 %v2668
        %2808 = vmatmul.bf16.gmra.mxu0 %v2731
        %v2809 = vpop.f32.mrf.mxu0
        %v2810 = vadd.f32 %v2540, %v2809
        %v2811 = vpop.f32.mrf.mxu0
        %v2812 = vadd.f32 %v2540, %v2811
        %2813 = vmatmul.bf16.gmra.mxu0 %v2734
        %v2814 = vpop.f32.mrf.mxu0
        %v2815 = vadd.f32 %v2540, %v2814
        %v2816 = vpop.f32.mrf.mxu0
        %v2817 = vadd.f32 %v2540, %v2816
        %2818 = vmatmul.bf16.gmra.mxu0 %v2737
        %v2819 = vpop.f32.mrf.mxu0
        %v2820 = vadd.f32 %v2540, %v2819
        %v2821 = vpop.f32.mrf.mxu0
        %v2822 = vadd.f32 %v2540, %v2821
        %2823 = vmatmul.bf16.gmra.mxu0 %v2740
        %v2824 = vpop.f32.mrf.mxu0
        %v2825 = vadd.f32 %v2540, %v2824
        %v2826 = vpop.f32.mrf.mxu0
        %v2827 = vadd.f32 %v2540, %v2826
        %2828 = vdwg.mxu0
        %2829 = vmatpush.bf16.msra.mxu0 0
        %2830 = vmatpush.bf16.msra.mxu0 0
        %2831 = vmatpush.bf16.msra.mxu0 0
        %2832 = vmatpush.bf16.msra.mxu0 0
        %2833 = vmatpush.bf16.msra.mxu0 0
        %2834 = vmatpush.bf16.msra.mxu0 0
        %2835 = vmatpush.bf16.msra.mxu0 %v2685
        %2836 = vmatpush.bf16.msra.mxu0 %v2669
        %2837 = vmatmul.bf16.gmra.mxu0 %v2731
        %v2838 = vpop.f32.mrf.mxu0
        %v2839 = vadd.f32 %v2541, %v2838
        %v2840 = vpop.f32.mrf.mxu0
        %v2841 = vadd.f32 %v2541, %v2840
        %2842 = vmatmul.bf16.gmra.mxu0 %v2734
        %v2843 = vpop.f32.mrf.mxu0
        %v2844 = vadd.f32 %v2541, %v2843
        %v2845 = vpop.f32.mrf.mxu0
        %v2846 = vadd.f32 %v2541, %v2845
        %2847 = vmatmul.bf16.gmra.mxu0 %v2737
        %v2848 = vpop.f32.mrf.mxu0
        %v2849 = vadd.f32 %v2541, %v2848
        %v2850 = vpop.f32.mrf.mxu0
        %v2851 = vadd.f32 %v2541, %v2850
        %2852 = vmatmul.bf16.gmra.mxu0 %v2740
        %v2853 = vpop.f32.mrf.mxu0
        %v2854 = vadd.f32 %v2541, %v2853
        %v2855 = vpop.f32.mrf.mxu0
        %v2856 = vadd.f32 %v2541, %v2855
        %2857 = vdwg.mxu0
        %2858 = vmatpush.bf16.msra.mxu0 0
        %2859 = vmatpush.bf16.msra.mxu0 0
        %2860 = vmatpush.bf16.msra.mxu0 0
        %2861 = vmatpush.bf16.msra.mxu0 0
        %2862 = vmatpush.bf16.msra.mxu0 0
        %2863 = vmatpush.bf16.msra.mxu0 0
        %2864 = vmatpush.bf16.msra.mxu0 %v2686
        %2865 = vmatpush.bf16.msra.mxu0 %v2670
        %2866 = vmatmul.bf16.gmra.mxu0 %v2731
        %v2867 = vpop.f32.mrf.mxu0
        %v2868 = vadd.f32 %v2542, %v2867
        %v2869 = vpop.f32.mrf.mxu0
        %v2870 = vadd.f32 %v2542, %v2869
        %2871 = vmatmul.bf16.gmra.mxu0 %v2734
        %v2872 = vpop.f32.mrf.mxu0
        %v2873 = vadd.f32 %v2542, %v2872
        %v2874 = vpop.f32.mrf.mxu0
        %v2875 = vadd.f32 %v2542, %v2874
        %2876 = vmatmul.bf16.gmra.mxu0 %v2737
        %v2877 = vpop.f32.mrf.mxu0
        %v2878 = vadd.f32 %v2542, %v2877
        %v2879 = vpop.f32.mrf.mxu0
        %v2880 = vadd.f32 %v2542, %v2879
        %2881 = vmatmul.bf16.gmra.mxu0 %v2740
        %v2882 = vpop.f32.mrf.mxu0
        %v2883 = vadd.f32 %v2542, %v2882
        %v2884 = vpop.f32.mrf.mxu0
        %v2885 = vadd.f32 %v2542, %v2884
        %2886 = vdwg.mxu0
        %2887 = vmatpush.bf16.msra.mxu0 0
        %2888 = vmatpush.bf16.msra.mxu0 0
        %2889 = vmatpush.bf16.msra.mxu0 0
        %2890 = vmatpush.bf16.msra.mxu0 0
        %2891 = vmatpush.bf16.msra.mxu0 0
        %2892 = vmatpush.bf16.msra.mxu0 0
        %2893 = vmatpush.bf16.msra.mxu0 %v2687
        %2894 = vmatpush.bf16.msra.mxu0 %v2671
        %2895 = vmatmul.bf16.gmra.mxu0 %v2731
        %v2896 = vpop.f32.mrf.mxu0
        %v2897 = vadd.f32 %v2543, %v2896
        %v2898 = vpop.f32.mrf.mxu0
        %v2899 = vadd.f32 %v2543, %v2898
        %2900 = vmatmul.bf16.gmra.mxu0 %v2734
        %v2901 = vpop.f32.mrf.mxu0
        %v2902 = vadd.f32 %v2543, %v2901
        %v2903 = vpop.f32.mrf.mxu0
        %v2904 = vadd.f32 %v2543, %v2903
        %2905 = vmatmul.bf16.gmra.mxu0 %v2737
        %v2906 = vpop.f32.mrf.mxu0
        %v2907 = vadd.f32 %v2543, %v2906
        %v2908 = vpop.f32.mrf.mxu0
        %v2909 = vadd.f32 %v2543, %v2908
        %2910 = vmatmul.bf16.gmra.mxu0 %v2740
        %v2911 = vpop.f32.mrf.mxu0
        %v2912 = vadd.f32 %v2543, %v2911
        %v2913 = vpop.f32.mrf.mxu0
        %v2914 = vadd.f32 %v2543, %v2913
        %2915 = vdwg.mxu0
        %2916 = vmatpush.bf16.msra.mxu0 0
        %2917 = vmatpush.bf16.msra.mxu0 0
        %2918 = vmatpush.bf16.msra.mxu0 0
        %2919 = vmatpush.bf16.msra.mxu0 0
        %2920 = vmatpush.bf16.msra.mxu0 0
        %2921 = vmatpush.bf16.msra.mxu0 0
        %2922 = vmatpush.bf16.msra.mxu0 %v2688
        %2923 = vmatpush.bf16.msra.mxu0 %v2672
        %2924 = vmatmul.bf16.gmra.mxu0 %v2731
        %v2925 = vpop.f32.mrf.mxu0
        %v2926 = vadd.f32 %v2544, %v2925
        %v2927 = vpop.f32.mrf.mxu0
        %v2928 = vadd.f32 %v2544, %v2927
        %2929 = vmatmul.bf16.gmra.mxu0 %v2734
        %v2930 = vpop.f32.mrf.mxu0
        %v2931 = vadd.f32 %v2544, %v2930
        %v2932 = vpop.f32.mrf.mxu0
        %v2933 = vadd.f32 %v2544, %v2932
        %2934 = vmatmul.bf16.gmra.mxu0 %v2737
        %v2935 = vpop.f32.mrf.mxu0
        %v2936 = vadd.f32 %v2544, %v2935
        %v2937 = vpop.f32.mrf.mxu0
        %v2938 = vadd.f32 %v2544, %v2937
        %2939 = vmatmul.bf16.gmra.mxu0 %v2740
        %v2940 = vpop.f32.mrf.mxu0
        %v2941 = vadd.f32 %v2544, %v2940
        %v2942 = vpop.f32.mrf.mxu0
        %v2943 = vadd.f32 %v2544, %v2942
        %2944 = vdwg.mxu0
        %2945 = vmatpush.bf16.msra.mxu0 0
        %2946 = vmatpush.bf16.msra.mxu0 0
        %2947 = vmatpush.bf16.msra.mxu0 0
        %2948 = vmatpush.bf16.msra.mxu0 0
        %2949 = vmatpush.bf16.msra.mxu0 0
        %2950 = vmatpush.bf16.msra.mxu0 0
        %2951 = vmatpush.bf16.msra.mxu0 %v2689
        %2952 = vmatpush.bf16.msra.mxu0 %v2673
        %2953 = vmatmul.bf16.gmra.mxu0 %v2731
        %v2954 = vpop.f32.mrf.mxu0
        %v2955 = vadd.f32 %v2545, %v2954
        %v2956 = vpop.f32.mrf.mxu0
        %v2957 = vadd.f32 %v2545, %v2956
        %2958 = vmatmul.bf16.gmra.mxu0 %v2734
        %v2959 = vpop.f32.mrf.mxu0
        %v2960 = vadd.f32 %v2545, %v2959
        %v2961 = vpop.f32.mrf.mxu0
        %v2962 = vadd.f32 %v2545, %v2961
        %2963 = vmatmul.bf16.gmra.mxu0 %v2737
        %v2964 = vpop.f32.mrf.mxu0
        %v2965 = vadd.f32 %v2545, %v2964
        %v2966 = vpop.f32.mrf.mxu0
        %v2967 = vadd.f32 %v2545, %v2966
        %2968 = vmatmul.bf16.gmra.mxu0 %v2740
        %v2969 = vpop.f32.mrf.mxu0
        %v2970 = vadd.f32 %v2545, %v2969
        %v2971 = vpop.f32.mrf.mxu0
        %v2972 = vadd.f32 %v2545, %v2971
        %2973 = vdwg.mxu0
        %2974 = vmatpush.bf16.msra.mxu0 0
        %2975 = vmatpush.bf16.msra.mxu0 0
        %2976 = vmatpush.bf16.msra.mxu0 0
        %2977 = vmatpush.bf16.msra.mxu0 0
        %2978 = vmatpush.bf16.msra.mxu0 0
        %2979 = vmatpush.bf16.msra.mxu0 0
        %2980 = vmatpush.bf16.msra.mxu0 %v2690
        %2981 = vmatpush.bf16.msra.mxu0 %v2674
        %2982 = vmatmul.bf16.gmra.mxu0 %v2731
        %v2983 = vpop.f32.mrf.mxu0
        %v2984 = vadd.f32 %v2546, %v2983
        %v2985 = vpop.f32.mrf.mxu0
        %v2986 = vadd.f32 %v2546, %v2985
        %2987 = vmatmul.bf16.gmra.mxu0 %v2734
        %v2988 = vpop.f32.mrf.mxu0
        %v2989 = vadd.f32 %v2546, %v2988
        %v2990 = vpop.f32.mrf.mxu0
        %v2991 = vadd.f32 %v2546, %v2990
        %2992 = vmatmul.bf16.gmra.mxu0 %v2737
        %v2993 = vpop.f32.mrf.mxu0
        %v2994 = vadd.f32 %v2546, %v2993
        %v2995 = vpop.f32.mrf.mxu0
        %v2996 = vadd.f32 %v2546, %v2995
        %2997 = vmatmul.bf16.gmra.mxu0 %v2740
        %v2998 = vpop.f32.mrf.mxu0
        %v2999 = vadd.f32 %v2546, %v2998
        %v3000 = vpop.f32.mrf.mxu0
        %v3001 = vadd.f32 %v2546, %v3000
        %3002 = vdwg.mxu0
        %3003 = vmatpush.bf16.msra.mxu0 0
        %3004 = vmatpush.bf16.msra.mxu0 0
        %3005 = vmatpush.bf16.msra.mxu0 0
        %3006 = vmatpush.bf16.msra.mxu0 0
        %3007 = vmatpush.bf16.msra.mxu0 0
        %3008 = vmatpush.bf16.msra.mxu0 0
        %3009 = vmatpush.bf16.msra.mxu0 %v2691
        %3010 = vmatpush.bf16.msra.mxu0 %v2675
        %3011 = vmatmul.bf16.gmra.mxu0 %v2731
        %v3012 = vpop.f32.mrf.mxu0
        %v3013 = vadd.f32 %v2547, %v3012
        %v3014 = vpop.f32.mrf.mxu0
        %v3015 = vadd.f32 %v2547, %v3014
        %3016 = vmatmul.bf16.gmra.mxu0 %v2734
        %v3017 = vpop.f32.mrf.mxu0
        %v3018 = vadd.f32 %v2547, %v3017
        %v3019 = vpop.f32.mrf.mxu0
        %v3020 = vadd.f32 %v2547, %v3019
        %3021 = vmatmul.bf16.gmra.mxu0 %v2737
        %v3022 = vpop.f32.mrf.mxu0
        %v3023 = vadd.f32 %v2547, %v3022
        %v3024 = vpop.f32.mrf.mxu0
        %v3025 = vadd.f32 %v2547, %v3024
        %3026 = vmatmul.bf16.gmra.mxu0 %v2740
        %v3027 = vpop.f32.mrf.mxu0
        %v3028 = vadd.f32 %v2547, %v3027
        %v3029 = vpop.f32.mrf.mxu0
        %v3030 = vadd.f32 %v2547, %v3029
        %3031 = vdwg.mxu0
        %3032 = vmatpush.bf16.msra.mxu0 0
        %3033 = vmatpush.bf16.msra.mxu0 0
        %3034 = vmatpush.bf16.msra.mxu0 0
        %3035 = vmatpush.bf16.msra.mxu0 0
        %3036 = vmatpush.bf16.msra.mxu0 0
        %3037 = vmatpush.bf16.msra.mxu0 0
        %3038 = vmatpush.bf16.msra.mxu0 %v2692
        %3039 = vmatpush.bf16.msra.mxu0 %v2676
        %3040 = vmatmul.bf16.gmra.mxu0 %v2731
        %v3041 = vpop.f32.mrf.mxu0
        %v3042 = vadd.f32 %v2548, %v3041
        %v3043 = vpop.f32.mrf.mxu0
        %v3044 = vadd.f32 %v2548, %v3043
        %3045 = vmatmul.bf16.gmra.mxu0 %v2734
        %v3046 = vpop.f32.mrf.mxu0
        %v3047 = vadd.f32 %v2548, %v3046
        %v3048 = vpop.f32.mrf.mxu0
        %v3049 = vadd.f32 %v2548, %v3048
        %3050 = vmatmul.bf16.gmra.mxu0 %v2737
        %v3051 = vpop.f32.mrf.mxu0
        %v3052 = vadd.f32 %v2548, %v3051
        %v3053 = vpop.f32.mrf.mxu0
        %v3054 = vadd.f32 %v2548, %v3053
        %3055 = vmatmul.bf16.gmra.mxu0 %v2740
        %v3056 = vpop.f32.mrf.mxu0
        %v3057 = vadd.f32 %v2548, %v3056
        %v3058 = vpop.f32.mrf.mxu0
        %v3059 = vadd.f32 %v2548, %v3058
        %3060 = vdwg.mxu0
        %3061 = vmatpush.bf16.msra.mxu0 0
        %3062 = vmatpush.bf16.msra.mxu0 0
        %3063 = vmatpush.bf16.msra.mxu0 0
        %3064 = vmatpush.bf16.msra.mxu0 0
        %3065 = vmatpush.bf16.msra.mxu0 0
        %3066 = vmatpush.bf16.msra.mxu0 0
        %3067 = vmatpush.bf16.msra.mxu0 %v2693
        %3068 = vmatpush.bf16.msra.mxu0 %v2677
        %3069 = vmatmul.bf16.gmra.mxu0 %v2731
        %v3070 = vpop.f32.mrf.mxu0
        %v3071 = vadd.f32 %v2549, %v3070
        %v3072 = vpop.f32.mrf.mxu0
        %v3073 = vadd.f32 %v2549, %v3072
        %3074 = vmatmul.bf16.gmra.mxu0 %v2734
        %v3075 = vpop.f32.mrf.mxu0
        %v3076 = vadd.f32 %v2549, %v3075
        %v3077 = vpop.f32.mrf.mxu0
        %v3078 = vadd.f32 %v2549, %v3077
        %3079 = vmatmul.bf16.gmra.mxu0 %v2737
        %v3080 = vpop.f32.mrf.mxu0
        %v3081 = vadd.f32 %v2549, %v3080
        %v3082 = vpop.f32.mrf.mxu0
        %v3083 = vadd.f32 %v2549, %v3082
        %3084 = vmatmul.bf16.gmra.mxu0 %v2740
        %v3085 = vpop.f32.mrf.mxu0
        %v3086 = vadd.f32 %v2549, %v3085
        %v3087 = vpop.f32.mrf.mxu0
        %v3088 = vadd.f32 %v2549, %v3087
        %3089 = vdwg.mxu0
        %3090 = vmatpush.bf16.msra.mxu0 0
        %3091 = vmatpush.bf16.msra.mxu0 0
        %3092 = vmatpush.bf16.msra.mxu0 0
        %3093 = vmatpush.bf16.msra.mxu0 0
        %3094 = vmatpush.bf16.msra.mxu0 0
        %3095 = vmatpush.bf16.msra.mxu0 0
        %3096 = vmatpush.bf16.msra.mxu0 %v2694
        %3097 = vmatpush.bf16.msra.mxu0 %v2678
        %3098 = vmatmul.bf16.gmra.mxu0 %v2731
        %v3099 = vpop.f32.mrf.mxu0
        %v3100 = vadd.f32 %v2550, %v3099
        %v3101 = vpop.f32.mrf.mxu0
        %v3102 = vadd.f32 %v2550, %v3101
        %3103 = vmatmul.bf16.gmra.mxu0 %v2734
        %v3104 = vpop.f32.mrf.mxu0
        %v3105 = vadd.f32 %v2550, %v3104
        %v3106 = vpop.f32.mrf.mxu0
        %v3107 = vadd.f32 %v2550, %v3106
        %3108 = vmatmul.bf16.gmra.mxu0 %v2737
        %v3109 = vpop.f32.mrf.mxu0
        %v3110 = vadd.f32 %v2550, %v3109
        %v3111 = vpop.f32.mrf.mxu0
        %v3112 = vadd.f32 %v2550, %v3111
        %3113 = vmatmul.bf16.gmra.mxu0 %v2740
        %v3114 = vpop.f32.mrf.mxu0
        %v3115 = vadd.f32 %v2550, %v3114
        %v3116 = vpop.f32.mrf.mxu0
        %v3117 = vadd.f32 %v2550, %v3116
        %3118 = vdwg.mxu0
        %3119 = vmatpush.bf16.msra.mxu0 0
        %3120 = vmatpush.bf16.msra.mxu0 0
        %3121 = vmatpush.bf16.msra.mxu0 0
        %3122 = vmatpush.bf16.msra.mxu0 0
        %3123 = vmatpush.bf16.msra.mxu0 0
        %3124 = vmatpush.bf16.msra.mxu0 0
        %3125 = vmatpush.bf16.msra.mxu0 %v2695
        %3126 = vmatpush.bf16.msra.mxu0 %v2679
        %3127 = vmatmul.bf16.gmra.mxu0 %v2731
        %v3128 = vpop.f32.mrf.mxu0
        %v3129 = vadd.f32 %v2551, %v3128
        %v3130 = vpop.f32.mrf.mxu0
        %v3131 = vadd.f32 %v2551, %v3130
        %3132 = vmatmul.bf16.gmra.mxu0 %v2734
        %v3133 = vpop.f32.mrf.mxu0
        %v3134 = vadd.f32 %v2551, %v3133
        %v3135 = vpop.f32.mrf.mxu0
        %v3136 = vadd.f32 %v2551, %v3135
        %3137 = vmatmul.bf16.gmra.mxu0 %v2737
        %v3138 = vpop.f32.mrf.mxu0
        %v3139 = vadd.f32 %v2551, %v3138
        %v3140 = vpop.f32.mrf.mxu0
        %v3141 = vadd.f32 %v2551, %v3140
        %3142 = vmatmul.bf16.gmra.mxu0 %v2740
        %v3143 = vpop.f32.mrf.mxu0
        %v3144 = vadd.f32 %v2551, %v3143
        %v3145 = vpop.f32.mrf.mxu0
        %v3146 = vadd.f32 %v2551, %v3145
        %3147 = vdwg.mxu0
        %3148 = vmatpush.bf16.msra.mxu0 0
        %3149 = vmatpush.bf16.msra.mxu0 0
        %3150 = vmatpush.bf16.msra.mxu0 0
        %3151 = vmatpush.bf16.msra.mxu0 0
        %3152 = vmatpush.bf16.msra.mxu0 0
        %3153 = vmatpush.bf16.msra.mxu0 0
        %3154 = vmatpush.bf16.msra.mxu0 %v2696
        %3155 = vmatpush.bf16.msra.mxu0 %v2680
        %3156 = vmatmul.bf16.gmra.mxu0 %v2731
        %v3157 = vpop.f32.mrf.mxu0
        %v3158 = vadd.f32 %v2552, %v3157
        %v3159 = vpop.f32.mrf.mxu0
        %v3160 = vadd.f32 %v2552, %v3159
        %3161 = vmatmul.bf16.gmra.mxu0 %v2734
        %v3162 = vpop.f32.mrf.mxu0
        %v3163 = vadd.f32 %v2552, %v3162
        %v3164 = vpop.f32.mrf.mxu0
        %v3165 = vadd.f32 %v2552, %v3164
        %3166 = vmatmul.bf16.gmra.mxu0 %v2737
        %v3167 = vpop.f32.mrf.mxu0
        %v3168 = vadd.f32 %v2552, %v3167
        %v3169 = vpop.f32.mrf.mxu0
        %v3170 = vadd.f32 %v2552, %v3169
        %3171 = vmatmul.bf16.gmra.mxu0 %v2740
        %v3172 = vpop.f32.mrf.mxu0
        %v3173 = vadd.f32 %v2552, %v3172
        %v3174 = vpop.f32.mrf.mxu0
        %v3175 = vadd.f32 %v2552, %v3174
        %3176 = vdwg.mxu0
        %3177 = vmatpush.bf16.msra.mxu0 0
        %3178 = vmatpush.bf16.msra.mxu0 0
        %3179 = vmatpush.bf16.msra.mxu0 0
        %3180 = vmatpush.bf16.msra.mxu0 0
        %3181 = vmatpush.bf16.msra.mxu0 0
        %3182 = vmatpush.bf16.msra.mxu0 0
        %3183 = vmatpush.bf16.msra.mxu0 %v2697
        %3184 = vmatpush.bf16.msra.mxu0 %v2681
        %3185 = vmatmul.bf16.gmra.mxu0 %v2731
        %v3186 = vpop.f32.mrf.mxu0
        %v3187 = vadd.f32 %v2553, %v3186
        %v3188 = vpop.f32.mrf.mxu0
        %v3189 = vadd.f32 %v2553, %v3188
        %3190 = vmatmul.bf16.gmra.mxu0 %v2734
        %v3191 = vpop.f32.mrf.mxu0
        %v3192 = vadd.f32 %v2553, %v3191
        %v3193 = vpop.f32.mrf.mxu0
        %v3194 = vadd.f32 %v2553, %v3193
        %3195 = vmatmul.bf16.gmra.mxu0 %v2737
        %v3196 = vpop.f32.mrf.mxu0
        %v3197 = vadd.f32 %v2553, %v3196
        %v3198 = vpop.f32.mrf.mxu0
        %v3199 = vadd.f32 %v2553, %v3198
        %3200 = vmatmul.bf16.gmra.mxu0 %v2740
        %v3201 = vpop.f32.mrf.mxu0
        %v3202 = vadd.f32 %v2553, %v3201
        %v3203 = vpop.f32.mrf.mxu0
        %v3204 = vadd.f32 %v2553, %v3203
        %3205 = vdwg.mxu0
        %v3206 = vmax.f32 %v2752, 0.0
        %v3207 = vmax.f32 %v2781, 0.0
        %v3208 = vmax.f32 %v2810, 0.0
        %v3209 = vmax.f32 %v2839, 0.0
        %v3210 = vmax.f32 %v2868, 0.0
        %v3211 = vmax.f32 %v2897, 0.0
        %v3212 = vmax.f32 %v2926, 0.0
        %v3213 = vmax.f32 %v2955, 0.0
        %v3214 = vmax.f32 %v2984, 0.0
        %v3215 = vmax.f32 %v3013, 0.0
        %v3216 = vmax.f32 %v3042, 0.0
        %v3217 = vmax.f32 %v3071, 0.0
        %v3218 = vmax.f32 %v3100, 0.0
        %v3219 = vmax.f32 %v3129, 0.0
        %v3220 = vmax.f32 %v3158, 0.0
        %v3221 = vmax.f32 %v3187, 0.0
        %v3222 = vmax.f32 %v2754, 0.0
        %v3223 = vmax.f32 %v2783, 0.0
        %v3224 = vmax.f32 %v2812, 0.0
        %v3225 = vmax.f32 %v2841, 0.0
        %v3226 = vmax.f32 %v2870, 0.0
        %v3227 = vmax.f32 %v2899, 0.0
        %v3228 = vmax.f32 %v2928, 0.0
        %v3229 = vmax.f32 %v2957, 0.0
        %v3230 = vmax.f32 %v2986, 0.0
        %v3231 = vmax.f32 %v3015, 0.0
        %v3232 = vmax.f32 %v3044, 0.0
        %v3233 = vmax.f32 %v3073, 0.0
        %v3234 = vmax.f32 %v3102, 0.0
        %v3235 = vmax.f32 %v3131, 0.0
        %v3236 = vmax.f32 %v3160, 0.0
        %v3237 = vmax.f32 %v3189, 0.0
        %v3238 = vmax.f32 %v2757, 0.0
        %v3239 = vmax.f32 %v2786, 0.0
        %v3240 = vmax.f32 %v2815, 0.0
        %v3241 = vmax.f32 %v2844, 0.0
        %v3242 = vmax.f32 %v2873, 0.0
        %v3243 = vmax.f32 %v2902, 0.0
        %v3244 = vmax.f32 %v2931, 0.0
        %v3245 = vmax.f32 %v2960, 0.0
        %v3246 = vmax.f32 %v2989, 0.0
        %v3247 = vmax.f32 %v3018, 0.0
        %v3248 = vmax.f32 %v3047, 0.0
        %v3249 = vmax.f32 %v3076, 0.0
        %v3250 = vmax.f32 %v3105, 0.0
        %v3251 = vmax.f32 %v3134, 0.0
        %v3252 = vmax.f32 %v3163, 0.0
        %v3253 = vmax.f32 %v3192, 0.0
        %v3254 = vmax.f32 %v2759, 0.0
        %v3255 = vmax.f32 %v2788, 0.0
        %v3256 = vmax.f32 %v2817, 0.0
        %v3257 = vmax.f32 %v2846, 0.0
        %v3258 = vmax.f32 %v2875, 0.0
        %v3259 = vmax.f32 %v2904, 0.0
        %v3260 = vmax.f32 %v2933, 0.0
        %v3261 = vmax.f32 %v2962, 0.0
        %v3262 = vmax.f32 %v2991, 0.0
        %v3263 = vmax.f32 %v3020, 0.0
        %v3264 = vmax.f32 %v3049, 0.0
        %v3265 = vmax.f32 %v3078, 0.0
        %v3266 = vmax.f32 %v3107, 0.0
        %v3267 = vmax.f32 %v3136, 0.0
        %v3268 = vmax.f32 %v3165, 0.0
        %v3269 = vmax.f32 %v3194, 0.0
        %v3270 = vmax.f32 %v2762, 0.0
        %v3271 = vmax.f32 %v2791, 0.0
        %v3272 = vmax.f32 %v2820, 0.0
        %v3273 = vmax.f32 %v2849, 0.0
        %v3274 = vmax.f32 %v2878, 0.0
        %v3275 = vmax.f32 %v2907, 0.0
        %v3276 = vmax.f32 %v2936, 0.0
        %v3277 = vmax.f32 %v2965, 0.0
        %v3278 = vmax.f32 %v2994, 0.0
        %v3279 = vmax.f32 %v3023, 0.0
        %v3280 = vmax.f32 %v3052, 0.0
        %v3281 = vmax.f32 %v3081, 0.0
        %v3282 = vmax.f32 %v3110, 0.0
        %v3283 = vmax.f32 %v3139, 0.0
        %v3284 = vmax.f32 %v3168, 0.0
        %v3285 = vmax.f32 %v3197, 0.0
        %v3286 = vmax.f32 %v2764, 0.0
        %v3287 = vmax.f32 %v2793, 0.0
        %v3288 = vmax.f32 %v2822, 0.0
        %v3289 = vmax.f32 %v2851, 0.0
        %v3290 = vmax.f32 %v2880, 0.0
        %v3291 = vmax.f32 %v2909, 0.0
        %v3292 = vmax.f32 %v2938, 0.0
        %v3293 = vmax.f32 %v2967, 0.0
        %v3294 = vmax.f32 %v2996, 0.0
        %v3295 = vmax.f32 %v3025, 0.0
        %v3296 = vmax.f32 %v3054, 0.0
        %v3297 = vmax.f32 %v3083, 0.0
        %v3298 = vmax.f32 %v3112, 0.0
        %v3299 = vmax.f32 %v3141, 0.0
        %v3300 = vmax.f32 %v3170, 0.0
        %v3301 = vmax.f32 %v3199, 0.0
        %v3302 = vmax.f32 %v2767, 0.0
        %v3303 = vmax.f32 %v2796, 0.0
        %v3304 = vmax.f32 %v2825, 0.0
        %v3305 = vmax.f32 %v2854, 0.0
        %v3306 = vmax.f32 %v2883, 0.0
        %v3307 = vmax.f32 %v2912, 0.0
        %v3308 = vmax.f32 %v2941, 0.0
        %v3309 = vmax.f32 %v2970, 0.0
        %v3310 = vmax.f32 %v2999, 0.0
        %v3311 = vmax.f32 %v3028, 0.0
        %v3312 = vmax.f32 %v3057, 0.0
        %v3313 = vmax.f32 %v3086, 0.0
        %v3314 = vmax.f32 %v3115, 0.0
        %v3315 = vmax.f32 %v3144, 0.0
        %v3316 = vmax.f32 %v3173, 0.0
        %v3317 = vmax.f32 %v3202, 0.0
        %v3318 = vmax.f32 %v2769, 0.0
        %v3319 = vmax.f32 %v2798, 0.0
        %v3320 = vmax.f32 %v2827, 0.0
        %v3321 = vmax.f32 %v2856, 0.0
        %v3322 = vmax.f32 %v2885, 0.0
        %v3323 = vmax.f32 %v2914, 0.0
        %v3324 = vmax.f32 %v2943, 0.0
        %v3325 = vmax.f32 %v2972, 0.0
        %v3326 = vmax.f32 %v3001, 0.0
        %v3327 = vmax.f32 %v3030, 0.0
        %v3328 = vmax.f32 %v3059, 0.0
        %v3329 = vmax.f32 %v3088, 0.0
        %v3330 = vmax.f32 %v3117, 0.0
        %v3331 = vmax.f32 %v3146, 0.0
        %v3332 = vmax.f32 %v3175, 0.0
        %v3333 = vmax.f32 %v3204, 0.0
        %v3334 = vpack.c.bf16 %v3222, %v3206
        %v3335 = vpack.c.bf16 %v3223, %v3207
        %v3336 = vpack.c.bf16 %v3224, %v3208
        %v3337 = vpack.c.bf16 %v3225, %v3209
        %v3338 = vpack.c.bf16 %v3226, %v3210
        %v3339 = vpack.c.bf16 %v3227, %v3211
        %v3340 = vpack.c.bf16 %v3228, %v3212
        %v3341 = vpack.c.bf16 %v3229, %v3213
        %v3342 = vpack.c.bf16 %v3230, %v3214
        %v3343 = vpack.c.bf16 %v3231, %v3215
        %v3344 = vpack.c.bf16 %v3232, %v3216
        %v3345 = vpack.c.bf16 %v3233, %v3217
        %v3346 = vpack.c.bf16 %v3234, %v3218
        %v3347 = vpack.c.bf16 %v3235, %v3219
        %v3348 = vpack.c.bf16 %v3236, %v3220
        %v3349 = vpack.c.bf16 %v3237, %v3221
        %v3350 = vpack.c.bf16 %v3254, %v3238
        %v3351 = vpack.c.bf16 %v3255, %v3239
        %v3352 = vpack.c.bf16 %v3256, %v3240
        %v3353 = vpack.c.bf16 %v3257, %v3241
        %v3354 = vpack.c.bf16 %v3258, %v3242
        %v3355 = vpack.c.bf16 %v3259, %v3243
        %v3356 = vpack.c.bf16 %v3260, %v3244
        %v3357 = vpack.c.bf16 %v3261, %v3245
        %v3358 = vpack.c.bf16 %v3262, %v3246
        %v3359 = vpack.c.bf16 %v3263, %v3247
        %v3360 = vpack.c.bf16 %v3264, %v3248
        %v3361 = vpack.c.bf16 %v3265, %v3249
        %v3362 = vpack.c.bf16 %v3266, %v3250
        %v3363 = vpack.c.bf16 %v3267, %v3251
        %v3364 = vpack.c.bf16 %v3268, %v3252
        %v3365 = vpack.c.bf16 %v3269, %v3253
        %v3366 = vpack.c.bf16 %v3286, %v3270
        %v3367 = vpack.c.bf16 %v3287, %v3271
        %v3368 = vpack.c.bf16 %v3288, %v3272
        %v3369 = vpack.c.bf16 %v3289, %v3273
        %v3370 = vpack.c.bf16 %v3290, %v3274
        %v3371 = vpack.c.bf16 %v3291, %v3275
        %v3372 = vpack.c.bf16 %v3292, %v3276
        %v3373 = vpack.c.bf16 %v3293, %v3277
        %v3374 = vpack.c.bf16 %v3294, %v3278
        %v3375 = vpack.c.bf16 %v3295, %v3279
        %v3376 = vpack.c.bf16 %v3296, %v3280
        %v3377 = vpack.c.bf16 %v3297, %v3281
        %v3378 = vpack.c.bf16 %v3298, %v3282
        %v3379 = vpack.c.bf16 %v3299, %v3283
        %v3380 = vpack.c.bf16 %v3300, %v3284
        %v3381 = vpack.c.bf16 %v3301, %v3285
        %v3382 = vpack.c.bf16 %v3318, %v3302
        %v3383 = vpack.c.bf16 %v3319, %v3303
        %v3384 = vpack.c.bf16 %v3320, %v3304
        %v3385 = vpack.c.bf16 %v3321, %v3305
        %v3386 = vpack.c.bf16 %v3322, %v3306
        %v3387 = vpack.c.bf16 %v3323, %v3307
        %v3388 = vpack.c.bf16 %v3324, %v3308
        %v3389 = vpack.c.bf16 %v3325, %v3309
        %v3390 = vpack.c.bf16 %v3326, %v3310
        %v3391 = vpack.c.bf16 %v3327, %v3311
        %v3392 = vpack.c.bf16 %v3328, %v3312
        %v3393 = vpack.c.bf16 %v3329, %v3313
        %v3394 = vpack.c.bf16 %v3330, %v3314
        %v3395 = vpack.c.bf16 %v3331, %v3315
        %v3396 = vpack.c.bf16 %v3332, %v3316
        %v3397 = vpack.c.bf16 %v3333, %v3317
        %v3398 = vld [vmem:[%s800] sm:$0xf]
        %v3399 = vld [vmem:[%s800 + $0x4] sm:$0xf]
        %v3400 = vld [vmem:[%s800 + $0x8] sm:$0xf]
        %v3401 = vld [vmem:[%s800 + $0xc] sm:$0xf]
        %v3402 = vld [vmem:[%s800 + $0x10] sm:$0xf]
        %v3403 = vld [vmem:[%s800 + $0x14] sm:$0xf]
        %v3404 = vld [vmem:[%s800 + $0x18] sm:$0xf]
        %v3405 = vld [vmem:[%s800 + $0x1c] sm:$0xf]
        %v3406 = vld [vmem:[%s800 + $0x20] sm:$0xf]
        %v3407 = vld [vmem:[%s800 + $0x24] sm:$0xf]
        %v3408 = vld [vmem:[%s800 + $0x28] sm:$0xf]
        %v3409 = vld [vmem:[%s800 + $0x2c] sm:$0xf]
        %v3410 = vld [vmem:[%s800 + $0x30] sm:$0xf]
        %v3411 = vld [vmem:[%s800 + $0x34] sm:$0xf]
        %v3412 = vld [vmem:[%s800 + $0x38] sm:$0xf]
        %v3413 = vld [vmem:[%s800 + $0x3c] sm:$0xf]
        %v3414 = vld [vmem:[%s800 + $0x40] sm:$0xf]
        %v3415 = vld [vmem:[%s800 + $0x44] sm:$0xf]
        %v3416 = vld [vmem:[%s800 + $0x48] sm:$0xf]
        %v3417 = vld [vmem:[%s800 + $0x4c] sm:$0xf]
        %v3418 = vld [vmem:[%s800 + $0x50] sm:$0xf]
        %v3419 = vld [vmem:[%s800 + $0x54] sm:$0xf]
        %v3420 = vld [vmem:[%s800 + $0x58] sm:$0xf]
        %v3421 = vld [vmem:[%s800 + $0x5c] sm:$0xf]
        %v3422 = vld [vmem:[%s800 + $0x60] sm:$0xf]
        %v3423 = vld [vmem:[%s800 + $0x64] sm:$0xf]
        %v3424 = vld [vmem:[%s800 + $0x68] sm:$0xf]
        %v3425 = vld [vmem:[%s800 + $0x6c] sm:$0xf]
        %v3426 = vld [vmem:[%s800 + $0x70] sm:$0xf]
        %v3427 = vld [vmem:[%s800 + $0x74] sm:$0xf]
        %v3428 = vld [vmem:[%s800 + $0x78] sm:$0xf]
        %v3429 = vld [vmem:[%s800 + $0x7c] sm:$0xf]
        %v3430 = vld [vmem:[%s800 + $0x80] sm:$0xf]
        %v3431 = vld [vmem:[%s800 + $0x84] sm:$0xf]
        %v3432 = vld [vmem:[%s800 + $0x88] sm:$0xf]
        %v3433 = vld [vmem:[%s800 + $0x8c] sm:$0xf]
        %v3434 = vld [vmem:[%s800 + $0x90] sm:$0xf]
        %v3435 = vld [vmem:[%s800 + $0x94] sm:$0xf]
        %v3436 = vld [vmem:[%s800 + $0x98] sm:$0xf]
        %v3437 = vld [vmem:[%s800 + $0x9c] sm:$0xf]
        %v3438 = vld [vmem:[%s800 + $0xa0] sm:$0xf]
        %v3439 = vld [vmem:[%s800 + $0xa4] sm:$0xf]
        %v3440 = vld [vmem:[%s800 + $0xa8] sm:$0xf]
        %v3441 = vld [vmem:[%s800 + $0xac] sm:$0xf]
        %v3442 = vld [vmem:[%s800 + $0xb0] sm:$0xf]
        %v3443 = vld [vmem:[%s800 + $0xb4] sm:$0xf]
        %v3444 = vld [vmem:[%s800 + $0xb8] sm:$0xf]
        %v3445 = vld [vmem:[%s800 + $0xbc] sm:$0xf]
        %v3446 = vld [vmem:[%s800 + $0xc0] sm:$0xf]
        %v3447 = vld [vmem:[%s800 + $0xc4] sm:$0xf]
        %v3448 = vld [vmem:[%s800 + $0xc8] sm:$0xf]
        %v3449 = vld [vmem:[%s800 + $0xcc] sm:$0xf]
        %v3450 = vld [vmem:[%s800 + $0xd0] sm:$0xf]
        %v3451 = vld [vmem:[%s800 + $0xd4] sm:$0xf]
        %v3452 = vld [vmem:[%s800 + $0xd8] sm:$0xf]
        %v3453 = vld [vmem:[%s800 + $0xdc] sm:$0xf]
        %v3454 = vld [vmem:[%s800 + $0xe0] sm:$0xf]
        %v3455 = vld [vmem:[%s800 + $0xe4] sm:$0xf]
        %v3456 = vld [vmem:[%s800 + $0xe8] sm:$0xf]
        %v3457 = vld [vmem:[%s800 + $0xec] sm:$0xf]
        %v3458 = vld [vmem:[%s800 + $0xf0] sm:$0xf]
        %v3459 = vld [vmem:[%s800 + $0xf4] sm:$0xf]
        %v3460 = vld [vmem:[%s800 + $0xf8] sm:$0xf]
        %v3461 = vld [vmem:[%s800 + $0xfc] sm:$0xf]
        %v3462 = vld [vmem:[%s800 + $0x100] sm:$0xf]
        %v3463 = vld [vmem:[%s800 + $0x104] sm:$0xf]
        %v3464 = vld [vmem:[%s800 + $0x108] sm:$0xf]
        %v3465 = vld [vmem:[%s800 + $0x10c] sm:$0xf]
        %v3466 = vld [vmem:[%s800 + $0x110] sm:$0xf]
        %v3467 = vld [vmem:[%s800 + $0x114] sm:$0xf]
        %v3468 = vld [vmem:[%s800 + $0x118] sm:$0xf]
        %v3469 = vld [vmem:[%s800 + $0x11c] sm:$0xf]
        %v3470 = vld [vmem:[%s800 + $0x120] sm:$0xf]
        %v3471 = vld [vmem:[%s800 + $0x124] sm:$0xf]
        %v3472 = vld [vmem:[%s800 + $0x128] sm:$0xf]
        %v3473 = vld [vmem:[%s800 + $0x12c] sm:$0xf]
        %v3474 = vld [vmem:[%s800 + $0x130] sm:$0xf]
        %v3475 = vld [vmem:[%s800 + $0x134] sm:$0xf]
        %v3476 = vld [vmem:[%s800 + $0x138] sm:$0xf]
        %v3477 = vld [vmem:[%s800 + $0x13c] sm:$0xf]
        %v3478 = vld [vmem:[%s800 + $0x140] sm:$0xf]
        %v3479 = vld [vmem:[%s800 + $0x144] sm:$0xf]
        %v3480 = vld [vmem:[%s800 + $0x148] sm:$0xf]
        %v3481 = vld [vmem:[%s800 + $0x14c] sm:$0xf]
        %v3482 = vld [vmem:[%s800 + $0x150] sm:$0xf]
        %v3483 = vld [vmem:[%s800 + $0x154] sm:$0xf]
        %v3484 = vld [vmem:[%s800 + $0x158] sm:$0xf]
        %v3485 = vld [vmem:[%s800 + $0x15c] sm:$0xf]
        %v3486 = vld [vmem:[%s800 + $0x160] sm:$0xf]
        %v3487 = vld [vmem:[%s800 + $0x164] sm:$0xf]
        %v3488 = vld [vmem:[%s800 + $0x168] sm:$0xf]
        %v3489 = vld [vmem:[%s800 + $0x16c] sm:$0xf]
        %v3490 = vld [vmem:[%s800 + $0x170] sm:$0xf]
        %v3491 = vld [vmem:[%s800 + $0x174] sm:$0xf]
        %v3492 = vld [vmem:[%s800 + $0x178] sm:$0xf]
        %v3493 = vld [vmem:[%s800 + $0x17c] sm:$0xf]
        %v3494 = vld [vmem:[%s800 + $0x180] sm:$0xf]
        %v3495 = vld [vmem:[%s800 + $0x184] sm:$0xf]
        %v3496 = vld [vmem:[%s800 + $0x188] sm:$0xf]
        %v3497 = vld [vmem:[%s800 + $0x18c] sm:$0xf]
        %v3498 = vld [vmem:[%s800 + $0x190] sm:$0xf]
        %v3499 = vld [vmem:[%s800 + $0x194] sm:$0xf]
        %v3500 = vld [vmem:[%s800 + $0x198] sm:$0xf]
        %v3501 = vld [vmem:[%s800 + $0x19c] sm:$0xf]
        %v3502 = vld [vmem:[%s800 + $0x1a0] sm:$0xf]
        %v3503 = vld [vmem:[%s800 + $0x1a4] sm:$0xf]
        %v3504 = vld [vmem:[%s800 + $0x1a8] sm:$0xf]
        %v3505 = vld [vmem:[%s800 + $0x1ac] sm:$0xf]
        %v3506 = vld [vmem:[%s800 + $0x1b0] sm:$0xf]
        %v3507 = vld [vmem:[%s800 + $0x1b4] sm:$0xf]
        %v3508 = vld [vmem:[%s800 + $0x1b8] sm:$0xf]
        %v3509 = vld [vmem:[%s800 + $0x1bc] sm:$0xf]
        %v3510 = vld [vmem:[%s800 + $0x1c0] sm:$0xf]
        %v3511 = vld [vmem:[%s800 + $0x1c4] sm:$0xf]
        %v3512 = vld [vmem:[%s800 + $0x1c8] sm:$0xf]
        %v3513 = vld [vmem:[%s800 + $0x1cc] sm:$0xf]
        %v3514 = vld [vmem:[%s800 + $0x1d0] sm:$0xf]
        %v3515 = vld [vmem:[%s800 + $0x1d4] sm:$0xf]
        %v3516 = vld [vmem:[%s800 + $0x1d8] sm:$0xf]
        %v3517 = vld [vmem:[%s800 + $0x1dc] sm:$0xf]
        %v3518 = vld [vmem:[%s800 + $0x1e0] sm:$0xf]
        %v3519 = vld [vmem:[%s800 + $0x1e4] sm:$0xf]
        %v3520 = vld [vmem:[%s800 + $0x1e8] sm:$0xf]
        %v3521 = vld [vmem:[%s800 + $0x1ec] sm:$0xf]
        %v3522 = vld [vmem:[%s800 + $0x1f0] sm:$0xf]
        %v3523 = vld [vmem:[%s800 + $0x1f4] sm:$0xf]
        %v3524 = vld [vmem:[%s800 + $0x1f8] sm:$0xf]
        %v3525 = vld [vmem:[%s800 + $0x1fc] sm:$0xf]
        %v3526 = vld [vmem:[%s800 + $0x200] sm:$0xf]
        %v3527 = vld [vmem:[%s800 + $0x204] sm:$0xf]
        %v3528 = vld [vmem:[%s800 + $0x208] sm:$0xf]
        %v3529 = vld [vmem:[%s800 + $0x20c] sm:$0xf]
        %v3530 = vld [vmem:[%s800 + $0x210] sm:$0xf]
        %v3531 = vld [vmem:[%s800 + $0x214] sm:$0xf]
        %v3532 = vld [vmem:[%s800 + $0x218] sm:$0xf]
        %v3533 = vld [vmem:[%s800 + $0x21c] sm:$0xf]
        %v3534 = vld [vmem:[%s800 + $0x220] sm:$0xf]
        %v3535 = vld [vmem:[%s800 + $0x224] sm:$0xf]
        %v3536 = vld [vmem:[%s800 + $0x228] sm:$0xf]
        %v3537 = vld [vmem:[%s800 + $0x22c] sm:$0xf]
        %v3538 = vld [vmem:[%s800 + $0x230] sm:$0xf]
        %v3539 = vld [vmem:[%s800 + $0x234] sm:$0xf]
        %v3540 = vld [vmem:[%s800 + $0x238] sm:$0xf]
        %v3541 = vld [vmem:[%s800 + $0x23c] sm:$0xf]
        %v3542 = vld [vmem:[%s800 + $0x240] sm:$0xf]
        %v3543 = vld [vmem:[%s800 + $0x244] sm:$0xf]
        %v3544 = vld [vmem:[%s800 + $0x248] sm:$0xf]
        %v3545 = vld [vmem:[%s800 + $0x24c] sm:$0xf]
        %v3546 = vld [vmem:[%s800 + $0x250] sm:$0xf]
        %v3547 = vld [vmem:[%s800 + $0x254] sm:$0xf]
        %v3548 = vld [vmem:[%s800 + $0x258] sm:$0xf]
        %v3549 = vld [vmem:[%s800 + $0x25c] sm:$0xf]
        %v3550 = vld [vmem:[%s800 + $0x260] sm:$0xf]
        %v3551 = vld [vmem:[%s800 + $0x264] sm:$0xf]
        %v3552 = vld [vmem:[%s800 + $0x268] sm:$0xf]
        %v3553 = vld [vmem:[%s800 + $0x26c] sm:$0xf]
        %v3554 = vld [vmem:[%s800 + $0x270] sm:$0xf]
        %v3555 = vld [vmem:[%s800 + $0x274] sm:$0xf]
        %v3556 = vld [vmem:[%s800 + $0x278] sm:$0xf]
        %v3557 = vld [vmem:[%s800 + $0x27c] sm:$0xf]
        %v3558 = vld [vmem:[%s800 + $0x280] sm:$0xf]
        %v3559 = vld [vmem:[%s800 + $0x284] sm:$0xf]
        %v3560 = vld [vmem:[%s800 + $0x288] sm:$0xf]
        %v3561 = vld [vmem:[%s800 + $0x28c] sm:$0xf]
        %v3562 = vld [vmem:[%s800 + $0x290] sm:$0xf]
        %v3563 = vld [vmem:[%s800 + $0x294] sm:$0xf]
        %v3564 = vld [vmem:[%s800 + $0x298] sm:$0xf]
        %v3565 = vld [vmem:[%s800 + $0x29c] sm:$0xf]
        %v3566 = vld [vmem:[%s800 + $0x2a0] sm:$0xf]
        %v3567 = vld [vmem:[%s800 + $0x2a4] sm:$0xf]
        %v3568 = vld [vmem:[%s800 + $0x2a8] sm:$0xf]
        %v3569 = vld [vmem:[%s800 + $0x2ac] sm:$0xf]
        %v3570 = vld [vmem:[%s800 + $0x2b0] sm:$0xf]
        %v3571 = vld [vmem:[%s800 + $0x2b4] sm:$0xf]
        %v3572 = vld [vmem:[%s800 + $0x2b8] sm:$0xf]
        %v3573 = vld [vmem:[%s800 + $0x2bc] sm:$0xf]
        %v3574 = vld [vmem:[%s800 + $0x2c0] sm:$0xf]
        %v3575 = vld [vmem:[%s800 + $0x2c4] sm:$0xf]
        %v3576 = vld [vmem:[%s800 + $0x2c8] sm:$0xf]
        %v3577 = vld [vmem:[%s800 + $0x2cc] sm:$0xf]
        %v3578 = vld [vmem:[%s800 + $0x2d0] sm:$0xf]
        %v3579 = vld [vmem:[%s800 + $0x2d4] sm:$0xf]
        %v3580 = vld [vmem:[%s800 + $0x2d8] sm:$0xf]
        %v3581 = vld [vmem:[%s800 + $0x2dc] sm:$0xf]
        %v3582 = vld [vmem:[%s800 + $0x2e0] sm:$0xf]
        %v3583 = vld [vmem:[%s800 + $0x2e4] sm:$0xf]
        %v3584 = vld [vmem:[%s800 + $0x2e8] sm:$0xf]
        %v3585 = vld [vmem:[%s800 + $0x2ec] sm:$0xf]
        %v3586 = vld [vmem:[%s800 + $0x2f0] sm:$0xf]
        %v3587 = vld [vmem:[%s800 + $0x2f4] sm:$0xf]
        %v3588 = vld [vmem:[%s800 + $0x2f8] sm:$0xf]
        %v3589 = vld [vmem:[%s800 + $0x2fc] sm:$0xf]
        %v3590 = vld [vmem:[%s800 + $0x300] sm:$0xf]
        %v3591 = vld [vmem:[%s800 + $0x304] sm:$0xf]
        %v3592 = vld [vmem:[%s800 + $0x308] sm:$0xf]
        %v3593 = vld [vmem:[%s800 + $0x30c] sm:$0xf]
        %v3594 = vld [vmem:[%s800 + $0x310] sm:$0xf]
        %v3595 = vld [vmem:[%s800 + $0x314] sm:$0xf]
        %v3596 = vld [vmem:[%s800 + $0x318] sm:$0xf]
        %v3597 = vld [vmem:[%s800 + $0x31c] sm:$0xf]
        %v3598 = vld [vmem:[%s800 + $0x320] sm:$0xf]
        %v3599 = vld [vmem:[%s800 + $0x324] sm:$0xf]
        %v3600 = vld [vmem:[%s800 + $0x328] sm:$0xf]
        %v3601 = vld [vmem:[%s800 + $0x32c] sm:$0xf]
        %v3602 = vld [vmem:[%s800 + $0x330] sm:$0xf]
        %v3603 = vld [vmem:[%s800 + $0x334] sm:$0xf]
        %v3604 = vld [vmem:[%s800 + $0x338] sm:$0xf]
        %v3605 = vld [vmem:[%s800 + $0x33c] sm:$0xf]
        %v3606 = vld [vmem:[%s800 + $0x340] sm:$0xf]
        %v3607 = vld [vmem:[%s800 + $0x344] sm:$0xf]
        %v3608 = vld [vmem:[%s800 + $0x348] sm:$0xf]
        %v3609 = vld [vmem:[%s800 + $0x34c] sm:$0xf]
        %v3610 = vld [vmem:[%s800 + $0x350] sm:$0xf]
        %v3611 = vld [vmem:[%s800 + $0x354] sm:$0xf]
        %v3612 = vld [vmem:[%s800 + $0x358] sm:$0xf]
        %v3613 = vld [vmem:[%s800 + $0x35c] sm:$0xf]
        %v3614 = vld [vmem:[%s800 + $0x360] sm:$0xf]
        %v3615 = vld [vmem:[%s800 + $0x364] sm:$0xf]
        %v3616 = vld [vmem:[%s800 + $0x368] sm:$0xf]
        %v3617 = vld [vmem:[%s800 + $0x36c] sm:$0xf]
        %v3618 = vld [vmem:[%s800 + $0x370] sm:$0xf]
        %v3619 = vld [vmem:[%s800 + $0x374] sm:$0xf]
        %v3620 = vld [vmem:[%s800 + $0x378] sm:$0xf]
        %v3621 = vld [vmem:[%s800 + $0x37c] sm:$0xf]
        %v3622 = vld [vmem:[%s800 + $0x380] sm:$0xf]
        %v3623 = vld [vmem:[%s800 + $0x384] sm:$0xf]
        %v3624 = vld [vmem:[%s800 + $0x388] sm:$0xf]
        %v3625 = vld [vmem:[%s800 + $0x38c] sm:$0xf]
        %v3626 = vld [vmem:[%s800 + $0x390] sm:$0xf]
        %v3627 = vld [vmem:[%s800 + $0x394] sm:$0xf]
        %v3628 = vld [vmem:[%s800 + $0x398] sm:$0xf]
        %v3629 = vld [vmem:[%s800 + $0x39c] sm:$0xf]
        %v3630 = vld [vmem:[%s800 + $0x3a0] sm:$0xf]
        %v3631 = vld [vmem:[%s800 + $0x3a4] sm:$0xf]
        %v3632 = vld [vmem:[%s800 + $0x3a8] sm:$0xf]
        %v3633 = vld [vmem:[%s800 + $0x3ac] sm:$0xf]
        %v3634 = vld [vmem:[%s800 + $0x3b0] sm:$0xf]
        %v3635 = vld [vmem:[%s800 + $0x3b4] sm:$0xf]
        %v3636 = vld [vmem:[%s800 + $0x3b8] sm:$0xf]
        %v3637 = vld [vmem:[%s800 + $0x3bc] sm:$0xf]
        %v3638 = vld [vmem:[%s800 + $0x3c0] sm:$0xf]
        %v3639 = vld [vmem:[%s800 + $0x3c4] sm:$0xf]
        %v3640 = vld [vmem:[%s800 + $0x3c8] sm:$0xf]
        %v3641 = vld [vmem:[%s800 + $0x3cc] sm:$0xf]
        %v3642 = vld [vmem:[%s800 + $0x3d0] sm:$0xf]
        %v3643 = vld [vmem:[%s800 + $0x3d4] sm:$0xf]
        %v3644 = vld [vmem:[%s800 + $0x3d8] sm:$0xf]
        %v3645 = vld [vmem:[%s800 + $0x3dc] sm:$0xf]
        %v3646 = vld [vmem:[%s800 + $0x3e0] sm:$0xf]
        %v3647 = vld [vmem:[%s800 + $0x3e4] sm:$0xf]
        %v3648 = vld [vmem:[%s800 + $0x3e8] sm:$0xf]
        %v3649 = vld [vmem:[%s800 + $0x3ec] sm:$0xf]
        %v3650 = vld [vmem:[%s800 + $0x3f0] sm:$0xf]
        %v3651 = vld [vmem:[%s800 + $0x3f4] sm:$0xf]
        %v3652 = vld [vmem:[%s800 + $0x3f8] sm:$0xf]
        %v3653 = vld [vmem:[%s800 + $0x3fc] sm:$0xf]
        %v3654 = vld [vmem:[%s803] sm:$0x1]
        %v3656 = vperm.slane %v3654, 0
        %v3914 = vunpack.c.l.b16 %v3398
        %v3915 = vunpack.c.l.b16 %v3399
        %v3916 = vunpack.c.l.b16 %v3400
        %v3917 = vunpack.c.l.b16 %v3401
        %v3918 = vunpack.c.l.b16 %v3402
        %v3919 = vunpack.c.l.b16 %v3403
        %v3920 = vunpack.c.l.b16 %v3404
        %v3921 = vunpack.c.l.b16 %v3405
        %v3922 = vunpack.c.l.b16 %v3406
        %v3923 = vunpack.c.l.b16 %v3407
        %v3924 = vunpack.c.l.b16 %v3408
        %v3925 = vunpack.c.l.b16 %v3409
        %v3926 = vunpack.c.l.b16 %v3410
        %v3927 = vunpack.c.l.b16 %v3411
        %v3928 = vunpack.c.l.b16 %v3412
        %v3929 = vunpack.c.l.b16 %v3413
        %v3930 = vunpack.c.l.b16 %v3414
        %v3931 = vunpack.c.l.b16 %v3415
        %v3932 = vunpack.c.l.b16 %v3416
        %v3933 = vunpack.c.l.b16 %v3417
        %v3934 = vunpack.c.l.b16 %v3418
        %v3935 = vunpack.c.l.b16 %v3419
        %v3936 = vunpack.c.l.b16 %v3420
        %v3937 = vunpack.c.l.b16 %v3421
        %v3938 = vunpack.c.l.b16 %v3422
        %v3939 = vunpack.c.l.b16 %v3423
        %v3940 = vunpack.c.l.b16 %v3424
        %v3941 = vunpack.c.l.b16 %v3425
        %v3942 = vunpack.c.l.b16 %v3426
        %v3943 = vunpack.c.l.b16 %v3427
        %v3944 = vunpack.c.l.b16 %v3428
        %v3945 = vunpack.c.l.b16 %v3429
        %v3946 = vunpack.c.l.b16 %v3430
        %v3947 = vunpack.c.l.b16 %v3431
        %v3948 = vunpack.c.l.b16 %v3432
        %v3949 = vunpack.c.l.b16 %v3433
        %v3950 = vunpack.c.l.b16 %v3434
        %v3951 = vunpack.c.l.b16 %v3435
        %v3952 = vunpack.c.l.b16 %v3436
        %v3953 = vunpack.c.l.b16 %v3437
        %v3954 = vunpack.c.l.b16 %v3438
        %v3955 = vunpack.c.l.b16 %v3439
        %v3956 = vunpack.c.l.b16 %v3440
        %v3957 = vunpack.c.l.b16 %v3441
        %v3958 = vunpack.c.l.b16 %v3442
        %v3959 = vunpack.c.l.b16 %v3443
        %v3960 = vunpack.c.l.b16 %v3444
        %v3961 = vunpack.c.l.b16 %v3445
        %v3962 = vunpack.c.l.b16 %v3446
        %v3963 = vunpack.c.l.b16 %v3447
        %v3964 = vunpack.c.l.b16 %v3448
        %v3965 = vunpack.c.l.b16 %v3449
        %v3966 = vunpack.c.l.b16 %v3450
        %v3967 = vunpack.c.l.b16 %v3451
        %v3968 = vunpack.c.l.b16 %v3452
        %v3969 = vunpack.c.l.b16 %v3453
        %v3970 = vunpack.c.l.b16 %v3454
        %v3971 = vunpack.c.l.b16 %v3455
        %v3972 = vunpack.c.l.b16 %v3456
        %v3973 = vunpack.c.l.b16 %v3457
        %v3974 = vunpack.c.l.b16 %v3458
        %v3975 = vunpack.c.l.b16 %v3459
        %v3976 = vunpack.c.l.b16 %v3460
        %v3977 = vunpack.c.l.b16 %v3461
        %v3978 = vunpack.c.l.b16 %v3462
        %v3979 = vunpack.c.l.b16 %v3463
        %v3980 = vunpack.c.l.b16 %v3464
        %v3981 = vunpack.c.l.b16 %v3465
        %v3982 = vunpack.c.l.b16 %v3466
        %v3983 = vunpack.c.l.b16 %v3467
        %v3984 = vunpack.c.l.b16 %v3468
        %v3985 = vunpack.c.l.b16 %v3469
        %v3986 = vunpack.c.l.b16 %v3470
        %v3987 = vunpack.c.l.b16 %v3471
        %v3988 = vunpack.c.l.b16 %v3472
        %v3989 = vunpack.c.l.b16 %v3473
        %v3990 = vunpack.c.l.b16 %v3474
        %v3991 = vunpack.c.l.b16 %v3475
        %v3992 = vunpack.c.l.b16 %v3476
        %v3993 = vunpack.c.l.b16 %v3477
        %v3994 = vunpack.c.l.b16 %v3478
        %v3995 = vunpack.c.l.b16 %v3479
        %v3996 = vunpack.c.l.b16 %v3480
        %v3997 = vunpack.c.l.b16 %v3481
        %v3998 = vunpack.c.l.b16 %v3482
        %v3999 = vunpack.c.l.b16 %v3483
        %v4000 = vunpack.c.l.b16 %v3484
        %v4001 = vunpack.c.l.b16 %v3485
        %v4002 = vunpack.c.l.b16 %v3486
        %v4003 = vunpack.c.l.b16 %v3487
        %v4004 = vunpack.c.l.b16 %v3488
        %v4005 = vunpack.c.l.b16 %v3489
        %v4006 = vunpack.c.l.b16 %v3490
        %v4007 = vunpack.c.l.b16 %v3491
        %v4008 = vunpack.c.l.b16 %v3492
        %v4009 = vunpack.c.l.b16 %v3493
        %v4010 = vunpack.c.l.b16 %v3494
        %v4011 = vunpack.c.l.b16 %v3495
        %v4012 = vunpack.c.l.b16 %v3496
        %v4013 = vunpack.c.l.b16 %v3497
        %v4014 = vunpack.c.l.b16 %v3498
        %v4015 = vunpack.c.l.b16 %v3499
        %v4016 = vunpack.c.l.b16 %v3500
        %v4017 = vunpack.c.l.b16 %v3501
        %v4018 = vunpack.c.l.b16 %v3502
        %v4019 = vunpack.c.l.b16 %v3503
        %v4020 = vunpack.c.l.b16 %v3504
        %v4021 = vunpack.c.l.b16 %v3505
        %v4022 = vunpack.c.l.b16 %v3506
        %v4023 = vunpack.c.l.b16 %v3507
        %v4024 = vunpack.c.l.b16 %v3508
        %v4025 = vunpack.c.l.b16 %v3509
        %v4026 = vunpack.c.l.b16 %v3510
        %v4027 = vunpack.c.l.b16 %v3511
        %v4028 = vunpack.c.l.b16 %v3512
        %v4029 = vunpack.c.l.b16 %v3513
        %v4030 = vunpack.c.l.b16 %v3514
        %v4031 = vunpack.c.l.b16 %v3515
        %v4032 = vunpack.c.l.b16 %v3516
        %v4033 = vunpack.c.l.b16 %v3517
        %v4034 = vunpack.c.l.b16 %v3518
        %v4035 = vunpack.c.l.b16 %v3519
        %v4036 = vunpack.c.l.b16 %v3520
        %v4037 = vunpack.c.l.b16 %v3521
        %v4038 = vunpack.c.l.b16 %v3522
        %v4039 = vunpack.c.l.b16 %v3523
        %v4040 = vunpack.c.l.b16 %v3524
        %v4041 = vunpack.c.l.b16 %v3525
        %v4042 = vunpack.c.l.b16 %v3526
        %v4043 = vunpack.c.l.b16 %v3527
        %v4044 = vunpack.c.l.b16 %v3528
        %v4045 = vunpack.c.l.b16 %v3529
        %v4046 = vunpack.c.l.b16 %v3530
        %v4047 = vunpack.c.l.b16 %v3531
        %v4048 = vunpack.c.l.b16 %v3532
        %v4049 = vunpack.c.l.b16 %v3533
        %v4050 = vunpack.c.l.b16 %v3534
        %v4051 = vunpack.c.l.b16 %v3535
        %v4052 = vunpack.c.l.b16 %v3536
        %v4053 = vunpack.c.l.b16 %v3537
        %v4054 = vunpack.c.l.b16 %v3538
        %v4055 = vunpack.c.l.b16 %v3539
        %v4056 = vunpack.c.l.b16 %v3540
        %v4057 = vunpack.c.l.b16 %v3541
        %v4058 = vunpack.c.l.b16 %v3542
        %v4059 = vunpack.c.l.b16 %v3543
        %v4060 = vunpack.c.l.b16 %v3544
        %v4061 = vunpack.c.l.b16 %v3545
        %v4062 = vunpack.c.l.b16 %v3546
        %v4063 = vunpack.c.l.b16 %v3547
        %v4064 = vunpack.c.l.b16 %v3548
        %v4065 = vunpack.c.l.b16 %v3549
        %v4066 = vunpack.c.l.b16 %v3550
        %v4067 = vunpack.c.l.b16 %v3551
        %v4068 = vunpack.c.l.b16 %v3552
        %v4069 = vunpack.c.l.b16 %v3553
        %v4070 = vunpack.c.l.b16 %v3554
        %v4071 = vunpack.c.l.b16 %v3555
        %v4072 = vunpack.c.l.b16 %v3556
        %v4073 = vunpack.c.l.b16 %v3557
        %v4074 = vunpack.c.l.b16 %v3558
        %v4075 = vunpack.c.l.b16 %v3559
        %v4076 = vunpack.c.l.b16 %v3560
        %v4077 = vunpack.c.l.b16 %v3561
        %v4078 = vunpack.c.l.b16 %v3562
        %v4079 = vunpack.c.l.b16 %v3563
        %v4080 = vunpack.c.l.b16 %v3564
        %v4081 = vunpack.c.l.b16 %v3565
        %v4082 = vunpack.c.l.b16 %v3566
        %v4083 = vunpack.c.l.b16 %v3567
        %v4084 = vunpack.c.l.b16 %v3568
        %v4085 = vunpack.c.l.b16 %v3569
        %v4086 = vunpack.c.l.b16 %v3570
        %v4087 = vunpack.c.l.b16 %v3571
        %v4088 = vunpack.c.l.b16 %v3572
        %v4089 = vunpack.c.l.b16 %v3573
        %v4090 = vunpack.c.l.b16 %v3574
        %v4091 = vunpack.c.l.b16 %v3575
        %v4092 = vunpack.c.l.b16 %v3576
        %v4093 = vunpack.c.l.b16 %v3577
        %v4094 = vunpack.c.l.b16 %v3578
        %v4095 = vunpack.c.l.b16 %v3579
        %v4096 = vunpack.c.l.b16 %v3580
        %v4097 = vunpack.c.l.b16 %v3581
        %v4098 = vunpack.c.l.b16 %v3582
        %v4099 = vunpack.c.l.b16 %v3583
        %v4100 = vunpack.c.l.b16 %v3584
        %v4101 = vunpack.c.l.b16 %v3585
        %v4102 = vunpack.c.l.b16 %v3586
        %v4103 = vunpack.c.l.b16 %v3587
        %v4104 = vunpack.c.l.b16 %v3588
        %v4105 = vunpack.c.l.b16 %v3589
        %v4106 = vunpack.c.l.b16 %v3590
        %v4107 = vunpack.c.l.b16 %v3591
        %v4108 = vunpack.c.l.b16 %v3592
        %v4109 = vunpack.c.l.b16 %v3593
        %v4110 = vunpack.c.l.b16 %v3594
        %v4111 = vunpack.c.l.b16 %v3595
        %v4112 = vunpack.c.l.b16 %v3596
        %v4113 = vunpack.c.l.b16 %v3597
        %v4114 = vunpack.c.l.b16 %v3598
        %v4115 = vunpack.c.l.b16 %v3599
        %v4116 = vunpack.c.l.b16 %v3600
        %v4117 = vunpack.c.l.b16 %v3601
        %v4118 = vunpack.c.l.b16 %v3602
        %v4119 = vunpack.c.l.b16 %v3603
        %v4120 = vunpack.c.l.b16 %v3604
        %v4121 = vunpack.c.l.b16 %v3605
        %v4122 = vunpack.c.l.b16 %v3606
        %v4123 = vunpack.c.l.b16 %v3607
        %v4124 = vunpack.c.l.b16 %v3608
        %v4125 = vunpack.c.l.b16 %v3609
        %v4126 = vunpack.c.l.b16 %v3610
        %v4127 = vunpack.c.l.b16 %v3611
        %v4128 = vunpack.c.l.b16 %v3612
        %v4129 = vunpack.c.l.b16 %v3613
        %v4130 = vunpack.c.l.b16 %v3614
        %v4131 = vunpack.c.l.b16 %v3615
        %v4132 = vunpack.c.l.b16 %v3616
        %v4133 = vunpack.c.l.b16 %v3617
        %v4134 = vunpack.c.l.b16 %v3618
        %v4135 = vunpack.c.l.b16 %v3619
        %v4136 = vunpack.c.l.b16 %v3620
        %v4137 = vunpack.c.l.b16 %v3621
        %v4138 = vunpack.c.l.b16 %v3622
        %v4139 = vunpack.c.l.b16 %v3623
        %v4140 = vunpack.c.l.b16 %v3624
        %v4141 = vunpack.c.l.b16 %v3625
        %v4142 = vunpack.c.l.b16 %v3626
        %v4143 = vunpack.c.l.b16 %v3627
        %v4144 = vunpack.c.l.b16 %v3628
        %v4145 = vunpack.c.l.b16 %v3629
        %v4146 = vunpack.c.l.b16 %v3630
        %v4147 = vunpack.c.l.b16 %v3631
        %v4148 = vunpack.c.l.b16 %v3632
        %v4149 = vunpack.c.l.b16 %v3633
        %v4150 = vunpack.c.l.b16 %v3634
        %v4151 = vunpack.c.l.b16 %v3635
        %v4152 = vunpack.c.l.b16 %v3636
        %v4153 = vunpack.c.l.b16 %v3637
        %v4154 = vunpack.c.l.b16 %v3638
        %v4155 = vunpack.c.l.b16 %v3639
        %v4156 = vunpack.c.l.b16 %v3640
        %v4157 = vunpack.c.l.b16 %v3641
        %v4158 = vunpack.c.l.b16 %v3642
        %v4159 = vunpack.c.l.b16 %v3643
        %v4160 = vunpack.c.l.b16 %v3644
        %v4161 = vunpack.c.l.b16 %v3645
        %v4162 = vunpack.c.l.b16 %v3646
        %v4163 = vunpack.c.l.b16 %v3647
        %v4164 = vunpack.c.l.b16 %v3648
        %v4165 = vunpack.c.l.b16 %v3649
        %v4166 = vunpack.c.l.b16 %v3650
        %v4167 = vunpack.c.l.b16 %v3651
        %v4168 = vunpack.c.l.b16 %v3652
        %v4169 = vunpack.c.l.b16 %v3653
        %v4170 = vpack.c.b16 %v3915, %v3914
        %v4171 = vpack.c.b16 %v3917, %v3916
        %v4172 = vpack.c.b16 %v3919, %v3918
        %v4173 = vpack.c.b16 %v3921, %v3920
        %v4174 = vpack.c.b16 %v3923, %v3922
        %v4175 = vpack.c.b16 %v3925, %v3924
        %v4176 = vpack.c.b16 %v3927, %v3926
        %v4177 = vpack.c.b16 %v3929, %v3928
        %v4178 = vpack.c.b16 %v3931, %v3930
        %v4179 = vpack.c.b16 %v3933, %v3932
        %v4180 = vpack.c.b16 %v3935, %v3934
        %v4181 = vpack.c.b16 %v3937, %v3936
        %v4182 = vpack.c.b16 %v3939, %v3938
        %v4183 = vpack.c.b16 %v3941, %v3940
        %v4184 = vpack.c.b16 %v3943, %v3942
        %v4185 = vpack.c.b16 %v3945, %v3944
        %v4186 = vpack.c.b16 %v3947, %v3946
        %v4187 = vpack.c.b16 %v3949, %v3948
        %v4188 = vpack.c.b16 %v3951, %v3950
        %v4189 = vpack.c.b16 %v3953, %v3952
        %v4190 = vpack.c.b16 %v3955, %v3954
        %v4191 = vpack.c.b16 %v3957, %v3956
        %v4192 = vpack.c.b16 %v3959, %v3958
        %v4193 = vpack.c.b16 %v3961, %v3960
        %v4194 = vpack.c.b16 %v3963, %v3962
        %v4195 = vpack.c.b16 %v3965, %v3964
        %v4196 = vpack.c.b16 %v3967, %v3966
        %v4197 = vpack.c.b16 %v3969, %v3968
        %v4198 = vpack.c.b16 %v3971, %v3970
        %v4199 = vpack.c.b16 %v3973, %v3972
        %v4200 = vpack.c.b16 %v3975, %v3974
        %v4201 = vpack.c.b16 %v3977, %v3976
        %v4202 = vpack.c.b16 %v3979, %v3978
        %v4203 = vpack.c.b16 %v3981, %v3980
        %v4204 = vpack.c.b16 %v3983, %v3982
        %v4205 = vpack.c.b16 %v3985, %v3984
        %v4206 = vpack.c.b16 %v3987, %v3986
        %v4207 = vpack.c.b16 %v3989, %v3988
        %v4208 = vpack.c.b16 %v3991, %v3990
        %v4209 = vpack.c.b16 %v3993, %v3992
        %v4210 = vpack.c.b16 %v3995, %v3994
        %v4211 = vpack.c.b16 %v3997, %v3996
        %v4212 = vpack.c.b16 %v3999, %v3998
        %v4213 = vpack.c.b16 %v4001, %v4000
        %v4214 = vpack.c.b16 %v4003, %v4002
        %v4215 = vpack.c.b16 %v4005, %v4004
        %v4216 = vpack.c.b16 %v4007, %v4006
        %v4217 = vpack.c.b16 %v4009, %v4008
        %v4218 = vpack.c.b16 %v4011, %v4010
        %v4219 = vpack.c.b16 %v4013, %v4012
        %v4220 = vpack.c.b16 %v4015, %v4014
        %v4221 = vpack.c.b16 %v4017, %v4016
        %v4222 = vpack.c.b16 %v4019, %v4018
        %v4223 = vpack.c.b16 %v4021, %v4020
        %v4224 = vpack.c.b16 %v4023, %v4022
        %v4225 = vpack.c.b16 %v4025, %v4024
        %v4226 = vpack.c.b16 %v4027, %v4026
        %v4227 = vpack.c.b16 %v4029, %v4028
        %v4228 = vpack.c.b16 %v4031, %v4030
        %v4229 = vpack.c.b16 %v4033, %v4032
        %v4230 = vpack.c.b16 %v4035, %v4034
        %v4231 = vpack.c.b16 %v4037, %v4036
        %v4232 = vpack.c.b16 %v4039, %v4038
        %v4233 = vpack.c.b16 %v4041, %v4040
        %v4234 = vpack.c.b16 %v4043, %v4042
        %v4235 = vpack.c.b16 %v4045, %v4044
        %v4236 = vpack.c.b16 %v4047, %v4046
        %v4237 = vpack.c.b16 %v4049, %v4048
        %v4238 = vpack.c.b16 %v4051, %v4050
        %v4239 = vpack.c.b16 %v4053, %v4052
        %v4240 = vpack.c.b16 %v4055, %v4054
        %v4241 = vpack.c.b16 %v4057, %v4056
        %v4242 = vpack.c.b16 %v4059, %v4058
        %v4243 = vpack.c.b16 %v4061, %v4060
        %v4244 = vpack.c.b16 %v4063, %v4062
        %v4245 = vpack.c.b16 %v4065, %v4064
        %v4246 = vpack.c.b16 %v4067, %v4066
        %v4247 = vpack.c.b16 %v4069, %v4068
        %v4248 = vpack.c.b16 %v4071, %v4070
        %v4249 = vpack.c.b16 %v4073, %v4072
        %v4250 = vpack.c.b16 %v4075, %v4074
        %v4251 = vpack.c.b16 %v4077, %v4076
        %v4252 = vpack.c.b16 %v4079, %v4078
        %v4253 = vpack.c.b16 %v4081, %v4080
        %v4254 = vpack.c.b16 %v4083, %v4082
        %v4255 = vpack.c.b16 %v4085, %v4084
        %v4256 = vpack.c.b16 %v4087, %v4086
        %v4257 = vpack.c.b16 %v4089, %v4088
        %v4258 = vpack.c.b16 %v4091, %v4090
        %v4259 = vpack.c.b16 %v4093, %v4092
        %v4260 = vpack.c.b16 %v4095, %v4094
        %v4261 = vpack.c.b16 %v4097, %v4096
        %v4262 = vpack.c.b16 %v4099, %v4098
        %v4263 = vpack.c.b16 %v4101, %v4100
        %v4264 = vpack.c.b16 %v4103, %v4102
        %v4265 = vpack.c.b16 %v4105, %v4104
        %v4266 = vpack.c.b16 %v4107, %v4106
        %v4267 = vpack.c.b16 %v4109, %v4108
        %v4268 = vpack.c.b16 %v4111, %v4110
        %v4269 = vpack.c.b16 %v4113, %v4112
        %v4270 = vpack.c.b16 %v4115, %v4114
        %v4271 = vpack.c.b16 %v4117, %v4116
        %v4272 = vpack.c.b16 %v4119, %v4118
        %v4273 = vpack.c.b16 %v4121, %v4120
        %v4274 = vpack.c.b16 %v4123, %v4122
        %v4275 = vpack.c.b16 %v4125, %v4124
        %v4276 = vpack.c.b16 %v4127, %v4126
        %v4277 = vpack.c.b16 %v4129, %v4128
        %v4278 = vpack.c.b16 %v4131, %v4130
        %v4279 = vpack.c.b16 %v4133, %v4132
        %v4280 = vpack.c.b16 %v4135, %v4134
        %v4281 = vpack.c.b16 %v4137, %v4136
        %v4282 = vpack.c.b16 %v4139, %v4138
        %v4283 = vpack.c.b16 %v4141, %v4140
        %v4284 = vpack.c.b16 %v4143, %v4142
        %v4285 = vpack.c.b16 %v4145, %v4144
        %v4286 = vpack.c.b16 %v4147, %v4146
        %v4287 = vpack.c.b16 %v4149, %v4148
        %v4288 = vpack.c.b16 %v4151, %v4150
        %v4289 = vpack.c.b16 %v4153, %v4152
        %v4290 = vpack.c.b16 %v4155, %v4154
        %v4291 = vpack.c.b16 %v4157, %v4156
        %v4292 = vpack.c.b16 %v4159, %v4158
        %v4293 = vpack.c.b16 %v4161, %v4160
        %v4294 = vpack.c.b16 %v4163, %v4162
        %v4295 = vpack.c.b16 %v4165, %v4164
        %v4296 = vpack.c.b16 %v4167, %v4166
        %v4297 = vpack.c.b16 %v4169, %v4168
        %4426 = vmatpush.bf16.msra.mxu0 %v4177
        %4427 = vmatpush.bf16.msra.mxu0 %v4176
        %4428 = vmatpush.bf16.msra.mxu0 %v4175
        %4429 = vmatpush.bf16.msra.mxu0 %v4174
        %4430 = vmatpush.bf16.msra.mxu0 %v4173
        %4431 = vmatpush.bf16.msra.mxu0 %v4172
        %4432 = vmatpush.bf16.msra.mxu0 %v4171
        %4433 = vmatpush.bf16.msra.mxu0 %v4170
        %4434 = vmatmul.bf16.gmra.mxu0 %v3334
        %v4435 = vpop.f32.mrf.mxu0
        %v4436 = vadd.f32 %v3656, %v4435
        %v4437 = vpop.f32.mrf.mxu0
        %v4438 = vadd.f32 %v3656, %v4437
        %4439 = vmatmul.bf16.gmra.mxu0 %v3350
        %v4440 = vpop.f32.mrf.mxu0
        %v4441 = vadd.f32 %v3656, %v4440
        %v4442 = vpop.f32.mrf.mxu0
        %v4443 = vadd.f32 %v3656, %v4442
        %4444 = vmatmul.bf16.gmra.mxu0 %v3366
        %v4445 = vpop.f32.mrf.mxu0
        %v4446 = vadd.f32 %v3656, %v4445
        %v4447 = vpop.f32.mrf.mxu0
        %v4448 = vadd.f32 %v3656, %v4447
        %4449 = vmatmul.bf16.gmra.mxu0 %v3382
        %v4450 = vpop.f32.mrf.mxu0
        %v4451 = vadd.f32 %v3656, %v4450
        %v4452 = vpop.f32.mrf.mxu0
        %v4453 = vadd.f32 %v3656, %v4452
        %4454 = vdwg.mxu0
        %4455 = vmatpush.bf16.msra.mxu0 %v4185
        %4456 = vmatpush.bf16.msra.mxu0 %v4184
        %4457 = vmatpush.bf16.msra.mxu0 %v4183
        %4458 = vmatpush.bf16.msra.mxu0 %v4182
        %4459 = vmatpush.bf16.msra.mxu0 %v4181
        %4460 = vmatpush.bf16.msra.mxu0 %v4180
        %4461 = vmatpush.bf16.msra.mxu0 %v4179
        %4462 = vmatpush.bf16.msra.mxu0 %v4178
        %4463 = vmatmul.bf16.gmra.mxu0 %v3335
        %v4464 = vpop.f32.mrf.mxu0
        %v4465 = vadd.f32 %v4436, %v4464
        %v4466 = vpop.f32.mrf.mxu0
        %v4467 = vadd.f32 %v4438, %v4466
        %4468 = vmatmul.bf16.gmra.mxu0 %v3351
        %v4469 = vpop.f32.mrf.mxu0
        %v4470 = vadd.f32 %v4441, %v4469
        %v4471 = vpop.f32.mrf.mxu0
        %v4472 = vadd.f32 %v4443, %v4471
        %4473 = vmatmul.bf16.gmra.mxu0 %v3367
        %v4474 = vpop.f32.mrf.mxu0
        %v4475 = vadd.f32 %v4446, %v4474
        %v4476 = vpop.f32.mrf.mxu0
        %v4477 = vadd.f32 %v4448, %v4476
        %4478 = vmatmul.bf16.gmra.mxu0 %v3383
        %v4479 = vpop.f32.mrf.mxu0
        %v4480 = vadd.f32 %v4451, %v4479
        %v4481 = vpop.f32.mrf.mxu0
        %v4482 = vadd.f32 %v4453, %v4481
        %4483 = vdwg.mxu0
        %4484 = vmatpush.bf16.msra.mxu0 %v4193
        %4485 = vmatpush.bf16.msra.mxu0 %v4192
        %4486 = vmatpush.bf16.msra.mxu0 %v4191
        %4487 = vmatpush.bf16.msra.mxu0 %v4190
        %4488 = vmatpush.bf16.msra.mxu0 %v4189
        %4489 = vmatpush.bf16.msra.mxu0 %v4188
        %4490 = vmatpush.bf16.msra.mxu0 %v4187
        %4491 = vmatpush.bf16.msra.mxu0 %v4186
        %4492 = vmatmul.bf16.gmra.mxu0 %v3336
        %v4493 = vpop.f32.mrf.mxu0
        %v4494 = vadd.f32 %v4465, %v4493
        %v4495 = vpop.f32.mrf.mxu0
        %v4496 = vadd.f32 %v4467, %v4495
        %4497 = vmatmul.bf16.gmra.mxu0 %v3352
        %v4498 = vpop.f32.mrf.mxu0
        %v4499 = vadd.f32 %v4470, %v4498
        %v4500 = vpop.f32.mrf.mxu0
        %v4501 = vadd.f32 %v4472, %v4500
        %4502 = vmatmul.bf16.gmra.mxu0 %v3368
        %v4503 = vpop.f32.mrf.mxu0
        %v4504 = vadd.f32 %v4475, %v4503
        %v4505 = vpop.f32.mrf.mxu0
        %v4506 = vadd.f32 %v4477, %v4505
        %4507 = vmatmul.bf16.gmra.mxu0 %v3384
        %v4508 = vpop.f32.mrf.mxu0
        %v4509 = vadd.f32 %v4480, %v4508
        %v4510 = vpop.f32.mrf.mxu0
        %v4511 = vadd.f32 %v4482, %v4510
        %4512 = vdwg.mxu0
        %4513 = vmatpush.bf16.msra.mxu0 %v4201
        %4514 = vmatpush.bf16.msra.mxu0 %v4200
        %4515 = vmatpush.bf16.msra.mxu0 %v4199
        %4516 = vmatpush.bf16.msra.mxu0 %v4198
        %4517 = vmatpush.bf16.msra.mxu0 %v4197
        %4518 = vmatpush.bf16.msra.mxu0 %v4196
        %4519 = vmatpush.bf16.msra.mxu0 %v4195
        %4520 = vmatpush.bf16.msra.mxu0 %v4194
        %4521 = vmatmul.bf16.gmra.mxu0 %v3337
        %v4522 = vpop.f32.mrf.mxu0
        %v4523 = vadd.f32 %v4494, %v4522
        %v4524 = vpop.f32.mrf.mxu0
        %v4525 = vadd.f32 %v4496, %v4524
        %4526 = vmatmul.bf16.gmra.mxu0 %v3353
        %v4527 = vpop.f32.mrf.mxu0
        %v4528 = vadd.f32 %v4499, %v4527
        %v4529 = vpop.f32.mrf.mxu0
        %v4530 = vadd.f32 %v4501, %v4529
        %4531 = vmatmul.bf16.gmra.mxu0 %v3369
        %v4532 = vpop.f32.mrf.mxu0
        %v4533 = vadd.f32 %v4504, %v4532
        %v4534 = vpop.f32.mrf.mxu0
        %v4535 = vadd.f32 %v4506, %v4534
        %4536 = vmatmul.bf16.gmra.mxu0 %v3385
        %v4537 = vpop.f32.mrf.mxu0
        %v4538 = vadd.f32 %v4509, %v4537
        %v4539 = vpop.f32.mrf.mxu0
        %v4540 = vadd.f32 %v4511, %v4539
        %4541 = vdwg.mxu0
        %4542 = vmatpush.bf16.msra.mxu0 %v4209
        %4543 = vmatpush.bf16.msra.mxu0 %v4208
        %4544 = vmatpush.bf16.msra.mxu0 %v4207
        %4545 = vmatpush.bf16.msra.mxu0 %v4206
        %4546 = vmatpush.bf16.msra.mxu0 %v4205
        %4547 = vmatpush.bf16.msra.mxu0 %v4204
        %4548 = vmatpush.bf16.msra.mxu0 %v4203
        %4549 = vmatpush.bf16.msra.mxu0 %v4202
        %4550 = vmatmul.bf16.gmra.mxu0 %v3338
        %v4551 = vpop.f32.mrf.mxu0
        %v4552 = vadd.f32 %v4523, %v4551
        %v4553 = vpop.f32.mrf.mxu0
        %v4554 = vadd.f32 %v4525, %v4553
        %4555 = vmatmul.bf16.gmra.mxu0 %v3354
        %v4556 = vpop.f32.mrf.mxu0
        %v4557 = vadd.f32 %v4528, %v4556
        %v4558 = vpop.f32.mrf.mxu0
        %v4559 = vadd.f32 %v4530, %v4558
        %4560 = vmatmul.bf16.gmra.mxu0 %v3370
        %v4561 = vpop.f32.mrf.mxu0
        %v4562 = vadd.f32 %v4533, %v4561
        %v4563 = vpop.f32.mrf.mxu0
        %v4564 = vadd.f32 %v4535, %v4563
        %4565 = vmatmul.bf16.gmra.mxu0 %v3386
        %v4566 = vpop.f32.mrf.mxu0
        %v4567 = vadd.f32 %v4538, %v4566
        %v4568 = vpop.f32.mrf.mxu0
        %v4569 = vadd.f32 %v4540, %v4568
        %4570 = vdwg.mxu0
        %4571 = vmatpush.bf16.msra.mxu0 %v4217
        %4572 = vmatpush.bf16.msra.mxu0 %v4216
        %4573 = vmatpush.bf16.msra.mxu0 %v4215
        %4574 = vmatpush.bf16.msra.mxu0 %v4214
        %4575 = vmatpush.bf16.msra.mxu0 %v4213
        %4576 = vmatpush.bf16.msra.mxu0 %v4212
        %4577 = vmatpush.bf16.msra.mxu0 %v4211
        %4578 = vmatpush.bf16.msra.mxu0 %v4210
        %4579 = vmatmul.bf16.gmra.mxu0 %v3339
        %v4580 = vpop.f32.mrf.mxu0
        %v4581 = vadd.f32 %v4552, %v4580
        %v4582 = vpop.f32.mrf.mxu0
        %v4583 = vadd.f32 %v4554, %v4582
        %4584 = vmatmul.bf16.gmra.mxu0 %v3355
        %v4585 = vpop.f32.mrf.mxu0
        %v4586 = vadd.f32 %v4557, %v4585
        %v4587 = vpop.f32.mrf.mxu0
        %v4588 = vadd.f32 %v4559, %v4587
        %4589 = vmatmul.bf16.gmra.mxu0 %v3371
        %v4590 = vpop.f32.mrf.mxu0
        %v4591 = vadd.f32 %v4562, %v4590
        %v4592 = vpop.f32.mrf.mxu0
        %v4593 = vadd.f32 %v4564, %v4592
        %4594 = vmatmul.bf16.gmra.mxu0 %v3387
        %v4595 = vpop.f32.mrf.mxu0
        %v4596 = vadd.f32 %v4567, %v4595
        %v4597 = vpop.f32.mrf.mxu0
        %v4598 = vadd.f32 %v4569, %v4597
        %4599 = vdwg.mxu0
        %4600 = vmatpush.bf16.msra.mxu0 %v4225
        %4601 = vmatpush.bf16.msra.mxu0 %v4224
        %4602 = vmatpush.bf16.msra.mxu0 %v4223
        %4603 = vmatpush.bf16.msra.mxu0 %v4222
        %4604 = vmatpush.bf16.msra.mxu0 %v4221
        %4605 = vmatpush.bf16.msra.mxu0 %v4220
        %4606 = vmatpush.bf16.msra.mxu0 %v4219
        %4607 = vmatpush.bf16.msra.mxu0 %v4218
        %4608 = vmatmul.bf16.gmra.mxu0 %v3340
        %v4609 = vpop.f32.mrf.mxu0
        %v4610 = vadd.f32 %v4581, %v4609
        %v4611 = vpop.f32.mrf.mxu0
        %v4612 = vadd.f32 %v4583, %v4611
        %4613 = vmatmul.bf16.gmra.mxu0 %v3356
        %v4614 = vpop.f32.mrf.mxu0
        %v4615 = vadd.f32 %v4586, %v4614
        %v4616 = vpop.f32.mrf.mxu0
        %v4617 = vadd.f32 %v4588, %v4616
        %4618 = vmatmul.bf16.gmra.mxu0 %v3372
        %v4619 = vpop.f32.mrf.mxu0
        %v4620 = vadd.f32 %v4591, %v4619
        %v4621 = vpop.f32.mrf.mxu0
        %v4622 = vadd.f32 %v4593, %v4621
        %4623 = vmatmul.bf16.gmra.mxu0 %v3388
        %v4624 = vpop.f32.mrf.mxu0
        %v4625 = vadd.f32 %v4596, %v4624
        %v4626 = vpop.f32.mrf.mxu0
        %v4627 = vadd.f32 %v4598, %v4626
        %4628 = vdwg.mxu0
        %4629 = vmatpush.bf16.msra.mxu0 %v4233
        %4630 = vmatpush.bf16.msra.mxu0 %v4232
        %4631 = vmatpush.bf16.msra.mxu0 %v4231
        %4632 = vmatpush.bf16.msra.mxu0 %v4230
        %4633 = vmatpush.bf16.msra.mxu0 %v4229
        %4634 = vmatpush.bf16.msra.mxu0 %v4228
        %4635 = vmatpush.bf16.msra.mxu0 %v4227
        %4636 = vmatpush.bf16.msra.mxu0 %v4226
        %4637 = vmatmul.bf16.gmra.mxu0 %v3341
        %v4638 = vpop.f32.mrf.mxu0
        %v4639 = vadd.f32 %v4610, %v4638
        %v4640 = vpop.f32.mrf.mxu0
        %v4641 = vadd.f32 %v4612, %v4640
        %4642 = vmatmul.bf16.gmra.mxu0 %v3357
        %v4643 = vpop.f32.mrf.mxu0
        %v4644 = vadd.f32 %v4615, %v4643
        %v4645 = vpop.f32.mrf.mxu0
        %v4646 = vadd.f32 %v4617, %v4645
        %4647 = vmatmul.bf16.gmra.mxu0 %v3373
        %v4648 = vpop.f32.mrf.mxu0
        %v4649 = vadd.f32 %v4620, %v4648
        %v4650 = vpop.f32.mrf.mxu0
        %v4651 = vadd.f32 %v4622, %v4650
        %4652 = vmatmul.bf16.gmra.mxu0 %v3389
        %v4653 = vpop.f32.mrf.mxu0
        %v4654 = vadd.f32 %v4625, %v4653
        %v4655 = vpop.f32.mrf.mxu0
        %v4656 = vadd.f32 %v4627, %v4655
        %4657 = vdwg.mxu0
        %4658 = vmatpush.bf16.msra.mxu0 %v4241
        %4659 = vmatpush.bf16.msra.mxu0 %v4240
        %4660 = vmatpush.bf16.msra.mxu0 %v4239
        %4661 = vmatpush.bf16.msra.mxu0 %v4238
        %4662 = vmatpush.bf16.msra.mxu0 %v4237
        %4663 = vmatpush.bf16.msra.mxu0 %v4236
        %4664 = vmatpush.bf16.msra.mxu0 %v4235
        %4665 = vmatpush.bf16.msra.mxu0 %v4234
        %4666 = vmatmul.bf16.gmra.mxu0 %v3342
        %v4667 = vpop.f32.mrf.mxu0
        %v4668 = vadd.f32 %v4639, %v4667
        %v4669 = vpop.f32.mrf.mxu0
        %v4670 = vadd.f32 %v4641, %v4669
        %4671 = vmatmul.bf16.gmra.mxu0 %v3358
        %v4672 = vpop.f32.mrf.mxu0
        %v4673 = vadd.f32 %v4644, %v4672
        %v4674 = vpop.f32.mrf.mxu0
        %v4675 = vadd.f32 %v4646, %v4674
        %4676 = vmatmul.bf16.gmra.mxu0 %v3374
        %v4677 = vpop.f32.mrf.mxu0
        %v4678 = vadd.f32 %v4649, %v4677
        %v4679 = vpop.f32.mrf.mxu0
        %v4680 = vadd.f32 %v4651, %v4679
        %4681 = vmatmul.bf16.gmra.mxu0 %v3390
        %v4682 = vpop.f32.mrf.mxu0
        %v4683 = vadd.f32 %v4654, %v4682
        %v4684 = vpop.f32.mrf.mxu0
        %v4685 = vadd.f32 %v4656, %v4684
        %4686 = vdwg.mxu0
        %4687 = vmatpush.bf16.msra.mxu0 %v4249
        %4688 = vmatpush.bf16.msra.mxu0 %v4248
        %4689 = vmatpush.bf16.msra.mxu0 %v4247
        %4690 = vmatpush.bf16.msra.mxu0 %v4246
        %4691 = vmatpush.bf16.msra.mxu0 %v4245
        %4692 = vmatpush.bf16.msra.mxu0 %v4244
        %4693 = vmatpush.bf16.msra.mxu0 %v4243
        %4694 = vmatpush.bf16.msra.mxu0 %v4242
        %4695 = vmatmul.bf16.gmra.mxu0 %v3343
        %v4696 = vpop.f32.mrf.mxu0
        %v4697 = vadd.f32 %v4668, %v4696
        %v4698 = vpop.f32.mrf.mxu0
        %v4699 = vadd.f32 %v4670, %v4698
        %4700 = vmatmul.bf16.gmra.mxu0 %v3359
        %v4701 = vpop.f32.mrf.mxu0
        %v4702 = vadd.f32 %v4673, %v4701
        %v4703 = vpop.f32.mrf.mxu0
        %v4704 = vadd.f32 %v4675, %v4703
        %4705 = vmatmul.bf16.gmra.mxu0 %v3375
        %v4706 = vpop.f32.mrf.mxu0
        %v4707 = vadd.f32 %v4678, %v4706
        %v4708 = vpop.f32.mrf.mxu0
        %v4709 = vadd.f32 %v4680, %v4708
        %4710 = vmatmul.bf16.gmra.mxu0 %v3391
        %v4711 = vpop.f32.mrf.mxu0
        %v4712 = vadd.f32 %v4683, %v4711
        %v4713 = vpop.f32.mrf.mxu0
        %v4714 = vadd.f32 %v4685, %v4713
        %4715 = vdwg.mxu0
        %4716 = vmatpush.bf16.msra.mxu0 %v4257
        %4717 = vmatpush.bf16.msra.mxu0 %v4256
        %4718 = vmatpush.bf16.msra.mxu0 %v4255
        %4719 = vmatpush.bf16.msra.mxu0 %v4254
        %4720 = vmatpush.bf16.msra.mxu0 %v4253
        %4721 = vmatpush.bf16.msra.mxu0 %v4252
        %4722 = vmatpush.bf16.msra.mxu0 %v4251
        %4723 = vmatpush.bf16.msra.mxu0 %v4250
        %4724 = vmatmul.bf16.gmra.mxu0 %v3344
        %v4725 = vpop.f32.mrf.mxu0
        %v4726 = vadd.f32 %v4697, %v4725
        %v4727 = vpop.f32.mrf.mxu0
        %v4728 = vadd.f32 %v4699, %v4727
        %4729 = vmatmul.bf16.gmra.mxu0 %v3360
        %v4730 = vpop.f32.mrf.mxu0
        %v4731 = vadd.f32 %v4702, %v4730
        %v4732 = vpop.f32.mrf.mxu0
        %v4733 = vadd.f32 %v4704, %v4732
        %4734 = vmatmul.bf16.gmra.mxu0 %v3376
        %v4735 = vpop.f32.mrf.mxu0
        %v4736 = vadd.f32 %v4707, %v4735
        %v4737 = vpop.f32.mrf.mxu0
        %v4738 = vadd.f32 %v4709, %v4737
        %4739 = vmatmul.bf16.gmra.mxu0 %v3392
        %v4740 = vpop.f32.mrf.mxu0
        %v4741 = vadd.f32 %v4712, %v4740
        %v4742 = vpop.f32.mrf.mxu0
        %v4743 = vadd.f32 %v4714, %v4742
        %4744 = vdwg.mxu0
        %4745 = vmatpush.bf16.msra.mxu0 %v4265
        %4746 = vmatpush.bf16.msra.mxu0 %v4264
        %4747 = vmatpush.bf16.msra.mxu0 %v4263
        %4748 = vmatpush.bf16.msra.mxu0 %v4262
        %4749 = vmatpush.bf16.msra.mxu0 %v4261
        %4750 = vmatpush.bf16.msra.mxu0 %v4260
        %4751 = vmatpush.bf16.msra.mxu0 %v4259
        %4752 = vmatpush.bf16.msra.mxu0 %v4258
        %4753 = vmatmul.bf16.gmra.mxu0 %v3345
        %v4754 = vpop.f32.mrf.mxu0
        %v4755 = vadd.f32 %v4726, %v4754
        %v4756 = vpop.f32.mrf.mxu0
        %v4757 = vadd.f32 %v4728, %v4756
        %4758 = vmatmul.bf16.gmra.mxu0 %v3361
        %v4759 = vpop.f32.mrf.mxu0
        %v4760 = vadd.f32 %v4731, %v4759
        %v4761 = vpop.f32.mrf.mxu0
        %v4762 = vadd.f32 %v4733, %v4761
        %4763 = vmatmul.bf16.gmra.mxu0 %v3377
        %v4764 = vpop.f32.mrf.mxu0
        %v4765 = vadd.f32 %v4736, %v4764
        %v4766 = vpop.f32.mrf.mxu0
        %v4767 = vadd.f32 %v4738, %v4766
        %4768 = vmatmul.bf16.gmra.mxu0 %v3393
        %v4769 = vpop.f32.mrf.mxu0
        %v4770 = vadd.f32 %v4741, %v4769
        %v4771 = vpop.f32.mrf.mxu0
        %v4772 = vadd.f32 %v4743, %v4771
        %4773 = vdwg.mxu0
        %4774 = vmatpush.bf16.msra.mxu0 %v4273
        %4775 = vmatpush.bf16.msra.mxu0 %v4272
        %4776 = vmatpush.bf16.msra.mxu0 %v4271
        %4777 = vmatpush.bf16.msra.mxu0 %v4270
        %4778 = vmatpush.bf16.msra.mxu0 %v4269
        %4779 = vmatpush.bf16.msra.mxu0 %v4268
        %4780 = vmatpush.bf16.msra.mxu0 %v4267
        %4781 = vmatpush.bf16.msra.mxu0 %v4266
        %4782 = vmatmul.bf16.gmra.mxu0 %v3346
        %v4783 = vpop.f32.mrf.mxu0
        %v4784 = vadd.f32 %v4755, %v4783
        %v4785 = vpop.f32.mrf.mxu0
        %v4786 = vadd.f32 %v4757, %v4785
        %4787 = vmatmul.bf16.gmra.mxu0 %v3362
        %v4788 = vpop.f32.mrf.mxu0
        %v4789 = vadd.f32 %v4760, %v4788
        %v4790 = vpop.f32.mrf.mxu0
        %v4791 = vadd.f32 %v4762, %v4790
        %4792 = vmatmul.bf16.gmra.mxu0 %v3378
        %v4793 = vpop.f32.mrf.mxu0
        %v4794 = vadd.f32 %v4765, %v4793
        %v4795 = vpop.f32.mrf.mxu0
        %v4796 = vadd.f32 %v4767, %v4795
        %4797 = vmatmul.bf16.gmra.mxu0 %v3394
        %v4798 = vpop.f32.mrf.mxu0
        %v4799 = vadd.f32 %v4770, %v4798
        %v4800 = vpop.f32.mrf.mxu0
        %v4801 = vadd.f32 %v4772, %v4800
        %4802 = vdwg.mxu0
        %4803 = vmatpush.bf16.msra.mxu0 %v4281
        %4804 = vmatpush.bf16.msra.mxu0 %v4280
        %4805 = vmatpush.bf16.msra.mxu0 %v4279
        %4806 = vmatpush.bf16.msra.mxu0 %v4278
        %4807 = vmatpush.bf16.msra.mxu0 %v4277
        %4808 = vmatpush.bf16.msra.mxu0 %v4276
        %4809 = vmatpush.bf16.msra.mxu0 %v4275
        %4810 = vmatpush.bf16.msra.mxu0 %v4274
        %4811 = vmatmul.bf16.gmra.mxu0 %v3347
        %v4812 = vpop.f32.mrf.mxu0
        %v4813 = vadd.f32 %v4784, %v4812
        %v4814 = vpop.f32.mrf.mxu0
        %v4815 = vadd.f32 %v4786, %v4814
        %4816 = vmatmul.bf16.gmra.mxu0 %v3363
        %v4817 = vpop.f32.mrf.mxu0
        %v4818 = vadd.f32 %v4789, %v4817
        %v4819 = vpop.f32.mrf.mxu0
        %v4820 = vadd.f32 %v4791, %v4819
        %4821 = vmatmul.bf16.gmra.mxu0 %v3379
        %v4822 = vpop.f32.mrf.mxu0
        %v4823 = vadd.f32 %v4794, %v4822
        %v4824 = vpop.f32.mrf.mxu0
        %v4825 = vadd.f32 %v4796, %v4824
        %4826 = vmatmul.bf16.gmra.mxu0 %v3395
        %v4827 = vpop.f32.mrf.mxu0
        %v4828 = vadd.f32 %v4799, %v4827
        %v4829 = vpop.f32.mrf.mxu0
        %v4830 = vadd.f32 %v4801, %v4829
        %4831 = vdwg.mxu0
        %4832 = vmatpush.bf16.msra.mxu0 %v4289
        %4833 = vmatpush.bf16.msra.mxu0 %v4288
        %4834 = vmatpush.bf16.msra.mxu0 %v4287
        %4835 = vmatpush.bf16.msra.mxu0 %v4286
        %4836 = vmatpush.bf16.msra.mxu0 %v4285
        %4837 = vmatpush.bf16.msra.mxu0 %v4284
        %4838 = vmatpush.bf16.msra.mxu0 %v4283
        %4839 = vmatpush.bf16.msra.mxu0 %v4282
        %4840 = vmatmul.bf16.gmra.mxu0 %v3348
        %v4841 = vpop.f32.mrf.mxu0
        %v4842 = vadd.f32 %v4813, %v4841
        %v4843 = vpop.f32.mrf.mxu0
        %v4844 = vadd.f32 %v4815, %v4843
        %4845 = vmatmul.bf16.gmra.mxu0 %v3364
        %v4846 = vpop.f32.mrf.mxu0
        %v4847 = vadd.f32 %v4818, %v4846
        %v4848 = vpop.f32.mrf.mxu0
        %v4849 = vadd.f32 %v4820, %v4848
        %4850 = vmatmul.bf16.gmra.mxu0 %v3380
        %v4851 = vpop.f32.mrf.mxu0
        %v4852 = vadd.f32 %v4823, %v4851
        %v4853 = vpop.f32.mrf.mxu0
        %v4854 = vadd.f32 %v4825, %v4853
        %4855 = vmatmul.bf16.gmra.mxu0 %v3396
        %v4856 = vpop.f32.mrf.mxu0
        %v4857 = vadd.f32 %v4828, %v4856
        %v4858 = vpop.f32.mrf.mxu0
        %v4859 = vadd.f32 %v4830, %v4858
        %4860 = vdwg.mxu0
        %4861 = vmatpush.bf16.msra.mxu0 %v4297
        %4862 = vmatpush.bf16.msra.mxu0 %v4296
        %4863 = vmatpush.bf16.msra.mxu0 %v4295
        %4864 = vmatpush.bf16.msra.mxu0 %v4294
        %4865 = vmatpush.bf16.msra.mxu0 %v4293
        %4866 = vmatpush.bf16.msra.mxu0 %v4292
        %4867 = vmatpush.bf16.msra.mxu0 %v4291
        %4868 = vmatpush.bf16.msra.mxu0 %v4290
        %4869 = vmatmul.bf16.gmra.mxu0 %v3349
        %v4870 = vpop.f32.mrf.mxu0
        %v4871 = vadd.f32 %v4842, %v4870
        %v4872 = vpop.f32.mrf.mxu0
        %v4873 = vadd.f32 %v4844, %v4872
        %4874 = vmatmul.bf16.gmra.mxu0 %v3365
        %v4875 = vpop.f32.mrf.mxu0
        %v4876 = vadd.f32 %v4847, %v4875
        %v4877 = vpop.f32.mrf.mxu0
        %v4878 = vadd.f32 %v4849, %v4877
        %4879 = vmatmul.bf16.gmra.mxu0 %v3381
        %v4880 = vpop.f32.mrf.mxu0
        %v4881 = vadd.f32 %v4852, %v4880
        %v4882 = vpop.f32.mrf.mxu0
        %v4883 = vadd.f32 %v4854, %v4882
        %4884 = vmatmul.bf16.gmra.mxu0 %v3397
        %v4885 = vpop.f32.mrf.mxu0
        %v4886 = vadd.f32 %v4857, %v4885
        %v4887 = vpop.f32.mrf.mxu0
        %v4888 = vadd.f32 %v4859, %v4887
        %4889 = vdwg.mxu0
        %v4890 = vadd.f32 %v2490, %v4871
        %v4891 = vadd.f32 %v2491, %v4873
        %v4892 = vadd.f32 %v2492, %v4876
        %v4893 = vadd.f32 %v2493, %v4878
        %v4894 = vadd.f32 %v2494, %v4881
        %v4895 = vadd.f32 %v2495, %v4883
        %v4896 = vadd.f32 %v2496, %v4886
        %v4897 = vadd.f32 %v2497, %v4888
        %v4898 = vld [vmem:[%s806] sm:$0x1]
        %v4899 = vld [vmem:[%s809] sm:$0x1]
        %v4900 = vsel %vm1020, %v4890, 0.0
        %4901 = vadd.xlane.f32.xlu0 %v4900
        %v4902 = vpop.xlane.xlu0 %4901
        %v4903 = vsel %vm1020, %v4891, 0.0
        %4904 = vadd.xlane.f32.xlu0 %v4903
        %v4905 = vpop.xlane.xlu0 %4904
        %v4906 = vsel %vm1020, %v4892, 0.0
        %4907 = vadd.xlane.f32.xlu0 %v4906
        %v4908 = vpop.xlane.xlu0 %4907
        %v4909 = vsel %vm1020, %v4893, 0.0
        %4910 = vadd.xlane.f32.xlu0 %v4909
        %v4911 = vpop.xlane.xlu0 %4910
        %v4912 = vsel %vm1020, %v4894, 0.0
        %4913 = vadd.xlane.f32.xlu0 %v4912
        %v4914 = vpop.xlane.xlu0 %4913
        %v4915 = vsel %vm1020, %v4895, 0.0
        %4916 = vadd.xlane.f32.xlu0 %v4915
        %v4917 = vpop.xlane.xlu0 %4916
        %v4918 = vsel %vm1020, %v4896, 0.0
        %4919 = vadd.xlane.f32.xlu0 %v4918
        %v4920 = vpop.xlane.xlu0 %4919
        %v4921 = vsel %vm1020, %v4897, 0.0
        %4922 = vadd.xlane.f32.xlu0 %v4921
        %v4923 = vpop.xlane.xlu0 %4922
        %v4924 = vmul.f32 %v4902, %v2323
        %v4925 = vmul.f32 %v4905, %v2323
        %v4926 = vmul.f32 %v4908, %v2323
        %v4927 = vmul.f32 %v4911, %v2323
        %v4928 = vmul.f32 %v4914, %v2323
        %v4929 = vmul.f32 %v4917, %v2323
        %v4930 = vmul.f32 %v4920, %v2323
        %v4931 = vmul.f32 %v4923, %v2323
        %v4932 = vsub.f32 %v4890, %v4924
        %v4933 = vsub.f32 %v4891, %v4925
        %v4934 = vsub.f32 %v4892, %v4926
        %v4935 = vsub.f32 %v4893, %v4927
        %v4936 = vsub.f32 %v4894, %v4928
        %v4937 = vsub.f32 %v4895, %v4929
        %v4938 = vsub.f32 %v4896, %v4930
        %v4939 = vsub.f32 %v4897, %v4931
        %v4940 = vmul.f32 %v4932, %v4932
        %v4941 = vmul.f32 %v4933, %v4933
        %v4942 = vmul.f32 %v4934, %v4934
        %v4943 = vmul.f32 %v4935, %v4935
        %v4944 = vmul.f32 %v4936, %v4936
        %v4945 = vmul.f32 %v4937, %v4937
        %v4946 = vmul.f32 %v4938, %v4938
        %v4947 = vmul.f32 %v4939, %v4939
        %v4948 = vsel %vm1020, %v4940, 0.0
        %4949 = vadd.xlane.f32.xlu0 %v4948
        %v4950 = vpop.xlane.xlu0 %4949
        %v4951 = vsel %vm1020, %v4941, 0.0
        %4952 = vadd.xlane.f32.xlu0 %v4951
        %v4953 = vpop.xlane.xlu0 %4952
        %v4954 = vsel %vm1020, %v4942, 0.0
        %4955 = vadd.xlane.f32.xlu0 %v4954
        %v4956 = vpop.xlane.xlu0 %4955
        %v4957 = vsel %vm1020, %v4943, 0.0
        %4958 = vadd.xlane.f32.xlu0 %v4957
        %v4959 = vpop.xlane.xlu0 %4958
        %v4960 = vsel %vm1020, %v4944, 0.0
        %4961 = vadd.xlane.f32.xlu0 %v4960
        %v4962 = vpop.xlane.xlu0 %4961
        %v4963 = vsel %vm1020, %v4945, 0.0
        %4964 = vadd.xlane.f32.xlu0 %v4963
        %v4965 = vpop.xlane.xlu0 %4964
        %v4966 = vsel %vm1020, %v4946, 0.0
        %4967 = vadd.xlane.f32.xlu0 %v4966
        %v4968 = vpop.xlane.xlu0 %4967
        %v4969 = vsel %vm1020, %v4947, 0.0
        %4970 = vadd.xlane.f32.xlu0 %v4969
        %v4971 = vpop.xlane.xlu0 %4970
        %v4972 = vmul.f32 %v4950, %v2323
        %v4973 = vmul.f32 %v4953, %v2323
        %v4974 = vmul.f32 %v4956, %v2323
        %v4975 = vmul.f32 %v4959, %v2323
        %v4976 = vmul.f32 %v4962, %v2323
        %v4977 = vmul.f32 %v4965, %v2323
        %v4978 = vmul.f32 %v4968, %v2323
        %v4979 = vmul.f32 %v4971, %v2323
        %v4980 = vadd.f32 %v4972, 1e-05
        %v4981 = vadd.f32 %v4973, 1e-05
        %v4982 = vadd.f32 %v4974, 1e-05
        %v4983 = vadd.f32 %v4975, 1e-05
        %v4984 = vadd.f32 %v4976, 1e-05
        %v4985 = vadd.f32 %v4977, 1e-05
        %v4986 = vadd.f32 %v4978, 1e-05
        %v4987 = vadd.f32 %v4979, 1e-05
        %v4988 = vrsqrt.pop %v4980
        %v4989 = vmul.f32 %v4988, %v4980
        %v4990 = vmul.f32 %v4989, %v4988
        %v4991 = vmul.f32 0.5, %v4990
        %v4992 = vsub.f32 1.5, %v4991
        %v4993 = vmul.f32 %v4988, %v4992
        %vm4994 = vweird.f32 %v4980
        %vm4995 = vweird.f32 %v4988
        %vm4996 = vmor %vm4994, %vm4995
        %v4997 = vsel %vm4996, %v4988, %v4993
        %v4998 = vrsqrt.pop %v4981
        %v4999 = vmul.f32 %v4998, %v4981
        %v5000 = vmul.f32 %v4999, %v4998
        %v5001 = vmul.f32 0.5, %v5000
        %v5002 = vsub.f32 1.5, %v5001
        %v5003 = vmul.f32 %v4998, %v5002
        %vm5004 = vweird.f32 %v4981
        %vm5005 = vweird.f32 %v4998
        %vm5006 = vmor %vm5004, %vm5005
        %v5007 = vsel %vm5006, %v4998, %v5003
        %v5008 = vrsqrt.pop %v4982
        %v5009 = vmul.f32 %v5008, %v4982
        %v5010 = vmul.f32 %v5009, %v5008
        %v5011 = vmul.f32 0.5, %v5010
        %v5012 = vsub.f32 1.5, %v5011
        %v5013 = vmul.f32 %v5008, %v5012
        %vm5014 = vweird.f32 %v4982
        %vm5015 = vweird.f32 %v5008
        %vm5016 = vmor %vm5014, %vm5015
        %v5017 = vsel %vm5016, %v5008, %v5013
        %v5018 = vrsqrt.pop %v4983
        %v5019 = vmul.f32 %v5018, %v4983
        %v5020 = vmul.f32 %v5019, %v5018
        %v5021 = vmul.f32 0.5, %v5020
        %v5022 = vsub.f32 1.5, %v5021
        %v5023 = vmul.f32 %v5018, %v5022
        %vm5024 = vweird.f32 %v4983
        %vm5025 = vweird.f32 %v5018
        %vm5026 = vmor %vm5024, %vm5025
        %v5027 = vsel %vm5026, %v5018, %v5023
        %v5028 = vrsqrt.pop %v4984
        %v5029 = vmul.f32 %v5028, %v4984
        %v5030 = vmul.f32 %v5029, %v5028
        %v5031 = vmul.f32 0.5, %v5030
        %v5032 = vsub.f32 1.5, %v5031
        %v5033 = vmul.f32 %v5028, %v5032
        %vm5034 = vweird.f32 %v4984
        %vm5035 = vweird.f32 %v5028
        %vm5036 = vmor %vm5034, %vm5035
        %v5037 = vsel %vm5036, %v5028, %v5033
        %v5038 = vrsqrt.pop %v4985
        %v5039 = vmul.f32 %v5038, %v4985
        %v5040 = vmul.f32 %v5039, %v5038
        %v5041 = vmul.f32 0.5, %v5040
        %v5042 = vsub.f32 1.5, %v5041
        %v5043 = vmul.f32 %v5038, %v5042
        %vm5044 = vweird.f32 %v4985
        %vm5045 = vweird.f32 %v5038
        %vm5046 = vmor %vm5044, %vm5045
        %v5047 = vsel %vm5046, %v5038, %v5043
        %v5048 = vrsqrt.pop %v4986
        %v5049 = vmul.f32 %v5048, %v4986
        %v5050 = vmul.f32 %v5049, %v5048
        %v5051 = vmul.f32 0.5, %v5050
        %v5052 = vsub.f32 1.5, %v5051
        %v5053 = vmul.f32 %v5048, %v5052
        %vm5054 = vweird.f32 %v4986
        %vm5055 = vweird.f32 %v5048
        %vm5056 = vmor %vm5054, %vm5055
        %v5057 = vsel %vm5056, %v5048, %v5053
        %v5058 = vrsqrt.pop %v4987
        %v5059 = vmul.f32 %v5058, %v4987
        %v5060 = vmul.f32 %v5059, %v5058
        %v5061 = vmul.f32 0.5, %v5060
        %v5062 = vsub.f32 1.5, %v5061
        %v5063 = vmul.f32 %v5058, %v5062
        %vm5064 = vweird.f32 %v4987
        %vm5065 = vweird.f32 %v5058
        %vm5066 = vmor %vm5064, %vm5065
        %v5067 = vsel %vm5066, %v5058, %v5063
        %v5068 = vmul.f32 %v4932, %v4997
        %v5069 = vmul.f32 %v4933, %v5007
        %v5070 = vmul.f32 %v4934, %v5017
        %v5071 = vmul.f32 %v4935, %v5027
        %v5072 = vmul.f32 %v4936, %v5037
        %v5073 = vmul.f32 %v4937, %v5047
        %v5074 = vmul.f32 %v4938, %v5057
        %v5075 = vmul.f32 %v4939, %v5067
        %v5077 = vperm.slane %v4898, 0
        %v5079 = vmul.f32 %v5068, %v5077
        %v5080 = vmul.f32 %v5069, %v5077
        %v5081 = vmul.f32 %v5070, %v5077
        %v5082 = vmul.f32 %v5071, %v5077
        %v5083 = vmul.f32 %v5072, %v5077
        %v5084 = vmul.f32 %v5073, %v5077
        %v5085 = vmul.f32 %v5074, %v5077
        %v5086 = vmul.f32 %v5075, %v5077
        %v5088 = vperm.slane %v4899, 0
        %v5090 = vadd.f32 %v5079, %v5088
        %v5091 = vadd.f32 %v5080, %v5088
        %v5092 = vadd.f32 %v5081, %v5088
        %v5093 = vadd.f32 %v5082, %v5088
        %v5094 = vadd.f32 %v5083, %v5088
        %v5095 = vadd.f32 %v5084, %v5088
        %v5096 = vadd.f32 %v5085, %v5088
        %v5097 = vadd.f32 %v5086, %v5088
        %5098 = vst.msk [vmem:[#allocation2] sm:$0xff] %vm1020, %v5090
        %5099 = vst.msk [vmem:[#allocation2 + $0x8] sm:$0xff] %vm1020, %v5091
        %5100 = vst.msk [vmem:[#allocation2 + $0x10] sm:$0xff] %vm1020, %v5092
        %5101 = vst.msk [vmem:[#allocation2 + $0x18] sm:$0xff] %vm1020, %v5093
        %5102 = vst.msk [vmem:[#allocation2 + $0x20] sm:$0xff] %vm1020, %v5094
        %5103 = vst.msk [vmem:[#allocation2 + $0x28] sm:$0xff] %vm1020, %v5095
        %5104 = vst.msk [vmem:[#allocation2 + $0x30] sm:$0xff] %vm1020, %v5096
        %5105 = vst.msk [vmem:[#allocation2 + $0x38] sm:$0xff] %vm1020, %v5097
        %p5106 = scmp.eq.s32.totalorder %s38, 1
        // Predicated region
        $region101: #{_lambda_.1} parent=95 // pred_check
          %p5107 = pneg %p5106
        $region102: #{_lambda_.1} parent=95 // pred_check_branch
          %5109 = sbr.rel (%p5107) target = $region104
        $region103: #{_lambda_.1} parent=95 // pred_region
          %v5110 = vld [vmem:[%s15] sm:$0x1]
          %v5111 = vld [vmem:[%s16] sm:$0x1]
          %v5112 = vsel %vm1020, %v5090, 0.0
          %5113 = vadd.xlane.f32.xlu0 %v5112
          %v5114 = vpop.xlane.xlu0 %5113
          %v5115 = vsel %vm1020, %v5091, 0.0
          %5116 = vadd.xlane.f32.xlu0 %v5115
          %v5117 = vpop.xlane.xlu0 %5116
          %v5118 = vsel %vm1020, %v5092, 0.0
          %5119 = vadd.xlane.f32.xlu0 %v5118
          %v5120 = vpop.xlane.xlu0 %5119
          %v5121 = vsel %vm1020, %v5093, 0.0
          %5122 = vadd.xlane.f32.xlu0 %v5121
          %v5123 = vpop.xlane.xlu0 %5122
          %v5124 = vsel %vm1020, %v5094, 0.0
          %5125 = vadd.xlane.f32.xlu0 %v5124
          %v5126 = vpop.xlane.xlu0 %5125
          %v5127 = vsel %vm1020, %v5095, 0.0
          %5128 = vadd.xlane.f32.xlu0 %v5127
          %v5129 = vpop.xlane.xlu0 %5128
          %v5130 = vsel %vm1020, %v5096, 0.0
          %5131 = vadd.xlane.f32.xlu0 %v5130
          %v5132 = vpop.xlane.xlu0 %5131
          %v5133 = vsel %vm1020, %v5097, 0.0
          %5134 = vadd.xlane.f32.xlu0 %v5133
          %v5135 = vpop.xlane.xlu0 %5134
          %v5136 = vmul.f32 %v5114, %v2323
          %v5137 = vmul.f32 %v5117, %v2323
          %v5138 = vmul.f32 %v5120, %v2323
          %v5139 = vmul.f32 %v5123, %v2323
          %v5140 = vmul.f32 %v5126, %v2323
          %v5141 = vmul.f32 %v5129, %v2323
          %v5142 = vmul.f32 %v5132, %v2323
          %v5143 = vmul.f32 %v5135, %v2323
          %v5144 = vsub.f32 %v5090, %v5136
          %v5145 = vsub.f32 %v5091, %v5137
          %v5146 = vsub.f32 %v5092, %v5138
          %v5147 = vsub.f32 %v5093, %v5139
          %v5148 = vsub.f32 %v5094, %v5140
          %v5149 = vsub.f32 %v5095, %v5141
          %v5150 = vsub.f32 %v5096, %v5142
          %v5151 = vsub.f32 %v5097, %v5143
          %v5152 = vmul.f32 %v5144, %v5144
          %v5153 = vmul.f32 %v5145, %v5145
          %v5154 = vmul.f32 %v5146, %v5146
          %v5155 = vmul.f32 %v5147, %v5147
          %v5156 = vmul.f32 %v5148, %v5148
          %v5157 = vmul.f32 %v5149, %v5149
          %v5158 = vmul.f32 %v5150, %v5150
          %v5159 = vmul.f32 %v5151, %v5151
          %v5160 = vsel %vm1020, %v5152, 0.0
          %5161 = vadd.xlane.f32.xlu0 %v5160
          %v5162 = vpop.xlane.xlu0 %5161
          %v5163 = vsel %vm1020, %v5153, 0.0
          %5164 = vadd.xlane.f32.xlu0 %v5163
          %v5165 = vpop.xlane.xlu0 %5164
          %v5166 = vsel %vm1020, %v5154, 0.0
          %5167 = vadd.xlane.f32.xlu0 %v5166
          %v5168 = vpop.xlane.xlu0 %5167
          %v5169 = vsel %vm1020, %v5155, 0.0
          %5170 = vadd.xlane.f32.xlu0 %v5169
          %v5171 = vpop.xlane.xlu0 %5170
          %v5172 = vsel %vm1020, %v5156, 0.0
          %5173 = vadd.xlane.f32.xlu0 %v5172
          %v5174 = vpop.xlane.xlu0 %5173
          %v5175 = vsel %vm1020, %v5157, 0.0
          %5176 = vadd.xlane.f32.xlu0 %v5175
          %v5177 = vpop.xlane.xlu0 %5176
          %v5178 = vsel %vm1020, %v5158, 0.0
          %5179 = vadd.xlane.f32.xlu0 %v5178
          %v5180 = vpop.xlane.xlu0 %5179
          %v5181 = vsel %vm1020, %v5159, 0.0
          %5182 = vadd.xlane.f32.xlu0 %v5181
          %v5183 = vpop.xlane.xlu0 %5182
          %v5184 = vmul.f32 %v5162, %v2323
          %v5185 = vmul.f32 %v5165, %v2323
          %v5186 = vmul.f32 %v5168, %v2323
          %v5187 = vmul.f32 %v5171, %v2323
          %v5188 = vmul.f32 %v5174, %v2323
          %v5189 = vmul.f32 %v5177, %v2323
          %v5190 = vmul.f32 %v5180, %v2323
          %v5191 = vmul.f32 %v5183, %v2323
          %v5192 = vadd.f32 %v5184, 1e-05
          %v5193 = vadd.f32 %v5185, 1e-05
          %v5194 = vadd.f32 %v5186, 1e-05
          %v5195 = vadd.f32 %v5187, 1e-05
          %v5196 = vadd.f32 %v5188, 1e-05
          %v5197 = vadd.f32 %v5189, 1e-05
          %v5198 = vadd.f32 %v5190, 1e-05
          %v5199 = vadd.f32 %v5191, 1e-05
          %v5200 = vrsqrt.pop %v5192
          %v5201 = vmul.f32 %v5200, %v5192
          %v5202 = vmul.f32 %v5201, %v5200
          %v5203 = vmul.f32 0.5, %v5202
          %v5204 = vsub.f32 1.5, %v5203
          %v5205 = vmul.f32 %v5200, %v5204
          %vm5206 = vweird.f32 %v5192
          %vm5207 = vweird.f32 %v5200
          %vm5208 = vmor %vm5206, %vm5207
          %v5209 = vsel %vm5208, %v5200, %v5205
          %v5210 = vrsqrt.pop %v5193
          %v5211 = vmul.f32 %v5210, %v5193
          %v5212 = vmul.f32 %v5211, %v5210
          %v5213 = vmul.f32 0.5, %v5212
          %v5214 = vsub.f32 1.5, %v5213
          %v5215 = vmul.f32 %v5210, %v5214
          %vm5216 = vweird.f32 %v5193
          %vm5217 = vweird.f32 %v5210
          %vm5218 = vmor %vm5216, %vm5217
          %v5219 = vsel %vm5218, %v5210, %v5215
          %v5220 = vrsqrt.pop %v5194
          %v5221 = vmul.f32 %v5220, %v5194
          %v5222 = vmul.f32 %v5221, %v5220
          %v5223 = vmul.f32 0.5, %v5222
          %v5224 = vsub.f32 1.5, %v5223
          %v5225 = vmul.f32 %v5220, %v5224
          %vm5226 = vweird.f32 %v5194
          %vm5227 = vweird.f32 %v5220
          %vm5228 = vmor %vm5226, %vm5227
          %v5229 = vsel %vm5228, %v5220, %v5225
          %v5230 = vrsqrt.pop %v5195
          %v5231 = vmul.f32 %v5230, %v5195
          %v5232 = vmul.f32 %v5231, %v5230
          %v5233 = vmul.f32 0.5, %v5232
          %v5234 = vsub.f32 1.5, %v5233
          %v5235 = vmul.f32 %v5230, %v5234
          %vm5236 = vweird.f32 %v5195
          %vm5237 = vweird.f32 %v5230
          %vm5238 = vmor %vm5236, %vm5237
          %v5239 = vsel %vm5238, %v5230, %v5235
          %v5240 = vrsqrt.pop %v5196
          %v5241 = vmul.f32 %v5240, %v5196
          %v5242 = vmul.f32 %v5241, %v5240
          %v5243 = vmul.f32 0.5, %v5242
          %v5244 = vsub.f32 1.5, %v5243
          %v5245 = vmul.f32 %v5240, %v5244
          %vm5246 = vweird.f32 %v5196
          %vm5247 = vweird.f32 %v5240
          %vm5248 = vmor %vm5246, %vm5247
          %v5249 = vsel %vm5248, %v5240, %v5245
          %v5250 = vrsqrt.pop %v5197
          %v5251 = vmul.f32 %v5250, %v5197
          %v5252 = vmul.f32 %v5251, %v5250
          %v5253 = vmul.f32 0.5, %v5252
          %v5254 = vsub.f32 1.5, %v5253
          %v5255 = vmul.f32 %v5250, %v5254
          %vm5256 = vweird.f32 %v5197
          %vm5257 = vweird.f32 %v5250
          %vm5258 = vmor %vm5256, %vm5257
          %v5259 = vsel %vm5258, %v5250, %v5255
          %v5260 = vrsqrt.pop %v5198
          %v5261 = vmul.f32 %v5260, %v5198
          %v5262 = vmul.f32 %v5261, %v5260
          %v5263 = vmul.f32 0.5, %v5262
          %v5264 = vsub.f32 1.5, %v5263
          %v5265 = vmul.f32 %v5260, %v5264
          %vm5266 = vweird.f32 %v5198
          %vm5267 = vweird.f32 %v5260
          %vm5268 = vmor %vm5266, %vm5267
          %v5269 = vsel %vm5268, %v5260, %v5265
          %v5270 = vrsqrt.pop %v5199
          %v5271 = vmul.f32 %v5270, %v5199
          %v5272 = vmul.f32 %v5271, %v5270
          %v5273 = vmul.f32 0.5, %v5272
          %v5274 = vsub.f32 1.5, %v5273
          %v5275 = vmul.f32 %v5270, %v5274
          %vm5276 = vweird.f32 %v5199
          %vm5277 = vweird.f32 %v5270
          %vm5278 = vmor %vm5276, %vm5277
          %v5279 = vsel %vm5278, %v5270, %v5275
          %v5280 = vmul.f32 %v5144, %v5209
          %v5281 = vmul.f32 %v5145, %v5219
          %v5282 = vmul.f32 %v5146, %v5229
          %v5283 = vmul.f32 %v5147, %v5239
          %v5284 = vmul.f32 %v5148, %v5249
          %v5285 = vmul.f32 %v5149, %v5259
          %v5286 = vmul.f32 %v5150, %v5269
          %v5287 = vmul.f32 %v5151, %v5279
          %v5289 = vperm.slane %v5110, 0
          %v5291 = vmul.f32 %v5280, %v5289
          %v5292 = vmul.f32 %v5281, %v5289
          %v5293 = vmul.f32 %v5282, %v5289
          %v5294 = vmul.f32 %v5283, %v5289
          %v5295 = vmul.f32 %v5284, %v5289
          %v5296 = vmul.f32 %v5285, %v5289
          %v5297 = vmul.f32 %v5286, %v5289
          %v5298 = vmul.f32 %v5287, %v5289
          %v5300 = vperm.slane %v5111, 0
          %v5302 = vadd.f32 %v5291, %v5300
          %v5303 = vadd.f32 %v5292, %v5300
          %v5304 = vadd.f32 %v5293, %v5300
          %v5305 = vadd.f32 %v5294, %v5300
          %v5306 = vadd.f32 %v5295, %v5300
          %v5307 = vadd.f32 %v5296, %v5300
          %v5308 = vadd.f32 %v5297, %v5300
          %v5309 = vadd.f32 %v5298, %v5300
          %v5310 = vpack.c.bf16 %v5303, %v5302
          %v5311 = vpack.c.bf16 %v5305, %v5304
          %v5312 = vpack.c.bf16 %v5307, %v5306
          %v5313 = vpack.c.bf16 %v5309, %v5308
          %v5314 = vld [vmem:[%s17] sm:$0xf]
          %v5315 = vld [vmem:[%s17 + $0x4] sm:$0xf]
          %v5316 = vld [vmem:[%s17 + $0x8] sm:$0xf]
          %v5317 = vld [vmem:[%s17 + $0xc] sm:$0xf]
          %v5318 = vld [vmem:[%s18] sm:$0x1]
          %v5320 = vperm.slane %v5318, 0
          %v5326 = vunpack.c.l.b16 %v5314
          %v5327 = vunpack.c.l.b16 %v5315
          %v5328 = vunpack.c.l.b16 %v5316
          %v5329 = vunpack.c.l.b16 %v5317
          %v5330 = vpack.c.b16 %v5327, %v5326
          %v5331 = vpack.c.b16 %v5329, %v5328
          %v5335 = vsel %vm1020, %v5310, 0
          %v5338 = vsel %vm1020, %v5311, 0
          %v5341 = vsel %vm1020, %v5312, 0
          %v5344 = vsel %vm1020, %v5313, 0
          %5346 = vmatpush.bf16.msra.mxu0 0
          %5347 = vmatpush.bf16.msra.mxu0 0
          %5348 = vmatpush.bf16.msra.mxu0 0
          %5349 = vmatpush.bf16.msra.mxu0 0
          %5350 = vmatpush.bf16.msra.mxu0 0
          %5351 = vmatpush.bf16.msra.mxu0 0
          %5352 = vmatpush.bf16.msra.mxu0 %v5331
          %5353 = vmatpush.bf16.msra.mxu0 %v5330
          %5354 = vmatmul.bf16.gmra.mxu0 %v5335
          %v5355 = vpop.f32.mrf.mxu0
          %v5356 = vadd.f32 %v5320, %v5355
          %v5357 = vpop.f32.mrf.mxu0
          %v5358 = vadd.f32 %v5320, %v5357
          %5359 = vmatmul.bf16.gmra.mxu0 %v5338
          %v5360 = vpop.f32.mrf.mxu0
          %v5361 = vadd.f32 %v5320, %v5360
          %v5362 = vpop.f32.mrf.mxu0
          %v5363 = vadd.f32 %v5320, %v5362
          %5364 = vmatmul.bf16.gmra.mxu0 %v5341
          %v5365 = vpop.f32.mrf.mxu0
          %v5366 = vadd.f32 %v5320, %v5365
          %v5367 = vpop.f32.mrf.mxu0
          %v5368 = vadd.f32 %v5320, %v5367
          %5369 = vmatmul.bf16.gmra.mxu0 %v5344
          %v5370 = vpop.f32.mrf.mxu0
          %v5371 = vadd.f32 %v5320, %v5370
          %v5372 = vpop.f32.mrf.mxu0
          %v5373 = vadd.f32 %v5320, %v5372
          %5374 = vdwg.mxu0
          %5375 = vst [vmem:[%s758] sm:$0xff] %v5356
          %5376 = vst [vmem:[%s758 + $0x8] sm:$0xff] %v5358
          %5377 = vst [vmem:[%s758 + $0x10] sm:$0xff] %v5361
          %5378 = vst [vmem:[%s758 + $0x18] sm:$0xff] %v5363
          %5379 = vst [vmem:[%s758 + $0x20] sm:$0xff] %v5366
          %5380 = vst [vmem:[%s758 + $0x28] sm:$0xff] %v5368
          %5381 = vst [vmem:[%s758 + $0x30] sm:$0xff] %v5371
          %5382 = vst [vmem:[%s758 + $0x38] sm:$0xff] %v5373
        $region104: #{_lambda_.1} parent=95 // pred_fallthru
          _
        %s5383 = sand.u32 %s517, 1
        %s5384 = scalar_lea.sflag [#allocation4], %s5383
        %s5385 = sand.u32 %s517, 1
        %s5386 = smul.addr %s5385, 64
        %s5387 = scalar_lea.vmem [#allocation3], %s5386
        // Predicated region
        $region105: #{_lambda_.1} parent=95 // pred_check
          %p5388 = pneg %p527
        $region106: #{_lambda_.1} parent=95 // pred_check_branch
          %5390 = sbr.rel (%p5388) target = $region108
        $region107: #{_lambda_.1} parent=95 // pred_region
          %s5391 = smul.u32 8, %s37
          %5393 = vsyncadd %s5384, 0
          %s5394 = smul.addr %s5391, 8
          %s5395 = scalar_lea.hbm %s19, %s5394
          %s5396 = sshll.u32 %s5387, 4
          %s5397 = int_to_ptr.vmem [resolvable:$true] %s5396
          %s5398 = sshll.u32 %s5395, 4
          %s5399 = int_to_ptr.hbm [resolvable:$true] %s5398
          %5404 = dma.vmem_to_hbm [thread:$0]  %s5397, 1024, %s5399, %s5384, 128, 128, 8
        $region108: #{_lambda_.1} parent=95 // pred_fallthru
          _
      $region96: #{_lambda_.1} parent=5 // pred_fallthru
        _
      %p5405 = scmp.le.s32.totalorder 2, %s28
      // Predicated region
      $region109: #{_lambda_.1} parent=5 // pred_check
        %p5406 = pneg %p5405
      $region110: #{_lambda_.1} parent=5 // pred_check_branch
        %5408 = sbr.rel (%p5406) target = $region112
      $region111: #{_lambda_.1} parent=5 // pred_region
        %s5409 = ssub.s32 %s28, 2
        // Predicated region
        $region113: #{_lambda_.1} parent=111 // pred_check
          %p5410 = pneg %p533
        $region114: #{_lambda_.1} parent=111 // pred_check_branch
          %5412 = sbr.rel (%p5410) target = $region116
        $region115: #{_lambda_.1} parent=111 // pred_region
          %s5413 = sand.u32 %s518, 1
          %s5414 = scalar_lea.sflag [#allocation4], %s5413
          %s5415 = sand.u32 %s518, 1
          %s5416 = smul.addr %s5415, 64
          %s5417 = scalar_lea.vmem [#allocation3], %s5416
          %5419 = dma.done %s5414, 1024
        $region116: #{_lambda_.1} parent=111 // pred_fallthru
          _
      $region112: #{_lambda_.1} parent=5 // pred_fallthru
        _
    $region6: #{_lambda_.1} parent=1 // loop_footer
      %s32 = sadd.s32 1, %s28
    $region7: #{_lambda_.1} parent=1 // loop_footer_branch
      %27 = sbr.rel target = $region3
    $region8: #{_lambda_.1} parent=1 // loop_exit
      _
    %5420 = vsyncpa [#allocation4], 1
    %s5421 = scalar_lea.sflag [#allocation4], 1
    %5422 = vsyncpa %s5421, 1

</llo_original>
